<compile_context>
chip_gen: v7x
topology: tpu7x:2x2x1
jax: 0.10.0
libtpu: 0.0.40
codegen_flags: <defaults>
</compile_context>

<pallas_src>
import math
from functools import partial

import jax
import jax.numpy as jnp
from jax.experimental import pallas as pl
from jax.experimental.pallas import tpu as pltpu


# ----------------------------------------------------------------------------
# Helpers
# ----------------------------------------------------------------------------
def _resident_spec(shape):
    """BlockSpec for a weight slab: whole array, constant index map (stays
    VMEM-resident across all grid steps)."""
    nd = len(shape)
    return pl.BlockSpec(shape, lambda b, _nd=nd: (0,) * _nd)


# ----------------------------------------------------------------------------
# Fused per-batch forward kernel (one grid step == one sequence)
# ----------------------------------------------------------------------------
def _gpt2_batch_kernel(
    # inputs
    h_ref,        # [S, D]        embeddings for this batch (leading B squeezed)
    mask_ref,     # [S, S]        additive mask: 0 (keep) / -1e9 (masked)
    qkvw_ref,     # [L*H*3, D, Dh] per-head q/k/v weights
    qkvb_ref,     # [L*H*3, 1, Dh] per-head q/k/v biases
    projw_ref,    # [L, D, D]      attention output projection
    fcw_ref,      # [L, D, 4D]     MLP fc weight
    fcb_ref,      # [L, 1, 4D]     MLP fc bias
    mprojw_ref,   # [L, 4D, D]     MLP proj weight
    dvec_ref,     # [L, 6, D]      ln1_g, ln1_b, ln2_g, ln2_b, proj_b, mproj_b
    fvec_ref,     # [4, D]         lnf_g, lnf_b, reg_w, reg_b(bcast)
    # outputs
    logits_ref,   # [1, 1]
    *, n_layer, n_head, S, D,
):
    Dh = D // n_head
    scale = jnp.float32(1.0 / math.sqrt(Dh))
    gelu_c = jnp.float32(math.sqrt(2.0 / math.pi))

    def layer_norm(x, g, b):
        # one-pass: var = E[x^2] - E[x]^2
        mu = jnp.mean(x, axis=-1, keepdims=True)
        m2 = jnp.mean(x * x, axis=-1, keepdims=True)
        var = m2 - mu * mu
        return (x - mu) * jax.lax.rsqrt(var + 1e-5) * g + b

    h = h_ref[...].astype(jnp.float32)       # [S, D]
    amask = mask_ref[...]                    # [S, S]

    for l in range(n_layer):                 # static unroll (small L)
        dv = dvec_ref[l]                     # [6, D]
        ln1_g, ln1_b = dv[0:1, :], dv[1:2, :]
        ln2_g, ln2_b = dv[2:3, :], dv[3:4, :]
        proj_b, mproj_b = dv[4:5, :], dv[5:6, :]

        # ---- self-attention sublayer (pre-LN) ----
        a_in = layer_norm(h, ln1_g, ln1_b)

        attn = None
        for hh in range(n_head):             # static unroll (small H)
            base = (l * n_head + hh) * 3
            q = jnp.dot(a_in, qkvw_ref[base + 0],
                        preferred_element_type=jnp.float32) + qkvb_ref[base + 0]
            k = jnp.dot(a_in, qkvw_ref[base + 1],
                        preferred_element_type=jnp.float32) + qkvb_ref[base + 1]
            v = jnp.dot(a_in, qkvw_ref[base + 2],
                        preferred_element_type=jnp.float32) + qkvb_ref[base + 2]

            s = jax.lax.dot_general(q, k, (((1,), (1,)), ((), ())),
                                    preferred_element_type=jnp.float32)
            s = s * scale + amask            # scale + additive mask, one pass
            s = s - jnp.max(s, axis=-1, keepdims=True)
            p = jnp.exp(s)
            p = p * pl.reciprocal(jnp.sum(p, axis=-1, keepdims=True), approx=True)

            ctx = jnp.dot(p, v, preferred_element_type=jnp.float32)     # [S, Dh]
            # fold the head straight into the output projection (no ctx scratch)
            contrib = jnp.dot(ctx, projw_ref[l, hh * Dh:(hh + 1) * Dh, :],
                              preferred_element_type=jnp.float32)       # [S, D]
            attn = contrib if attn is None else attn + contrib

        h = h + attn + proj_b

        # ---- MLP sublayer (pre-LN) ----
        m_in = layer_norm(h, ln2_g, ln2_b)
        u = jnp.dot(m_in, fcw_ref[l],
                    preferred_element_type=jnp.float32) + fcb_ref[l]    # [S, 4D]
        u = 0.5 * u * (1.0 + jnp.tanh(gelu_c * (u + 0.044715 * u * u * u)))  # gelu_new
        h = h + jnp.dot(u, mprojw_ref[l],
                        preferred_element_type=jnp.float32) + mproj_b

    # ---- final LN + regression head (last token, matches hidden[:, -1, :]) ----
    fv = fvec_ref[...]                       # [4, D]
    hf = layer_norm(h, fv[0:1, :], fv[1:2, :])
    h_last = hf[S - 1:S, :]                  # [1, D]
    logits_ref[...] = (jnp.sum(h_last * fv[2:3, :], axis=-1, keepdims=True)
                       + fv[3:4, 0:1])


# ----------------------------------------------------------------------------
# Parameters (deterministic synthetic init; GPT-2 style normal(0, 0.02)),
# packed directly into the kernel's slab layout.
# ----------------------------------------------------------------------------
# TODO(synk): GPT2Model.from_pretrained('gpt2') checkpoint loading is replaced
# by a deterministic synthetic small config (no file/network access allowed).
def init_params(key, *, vocab, n_pos, d, n_head, n_layer):
    dh = d // n_head

    def nrm(k, shape):
        return 0.02 * jax.random.normal(k, shape, jnp.float32)

    keys = jax.random.split(key, 3 + n_layer)
    attn_w, proj_w, fc_w, mproj_w = [], [], [], []
    for li in range(n_layer):
        bk = jax.random.split(keys[3 + li], 4)
        attn_w.append(nrm(bk[0], (d, 3 * d)))
        proj_w.append(nrm(bk[1], (d, d)))
        fc_w.append(nrm(bk[2], (d, 4 * d)))
        mproj_w.append(nrm(bk[3], (4 * d, d)))
    attn_b = [jnp.zeros((3 * d,), jnp.float32) for _ in range(n_layer)]

    # per-head q/k/v weight/bias slabs: index = (l*H + h)*3 + {q:0, k:1, v:2}
    qkv_w_list, qkv_b_list = [], []
    for li in range(n_layer):
        for hh in range(n_head):
            for j in range(3):
                c0 = j * d + hh * dh
                qkv_w_list.append(attn_w[li][:, c0:c0 + dh])            # [D, Dh]
                qkv_b_list.append(attn_b[li][c0:c0 + dh].reshape(1, dh))
    qkv_w = jnp.stack(qkv_w_list)            # [L*H*3, D, Dh]
    qkv_b = jnp.stack(qkv_b_list)            # [L*H*3, 1, Dh]

    # packed per-layer D-vectors: ln1_g, ln1_b, ln2_g, ln2_b, proj_b, mproj_b
    one, zero = jnp.ones((d,), jnp.float32), jnp.zeros((d,), jnp.float32)
    dvec = jnp.stack([jnp.stack([one, zero, one, zero, zero, zero])
                      for _ in range(n_layer)])                          # [L, 6, D]

    reg_w = nrm(keys[2], (1, d))             # nn.Linear(d, 1) weight as row [1, D]
    reg_b = jnp.float32(0.0)
    fvec = jnp.concatenate([jnp.ones((1, d), jnp.float32),               # lnf_g
                            jnp.zeros((1, d), jnp.float32),              # lnf_b
                            reg_w,                                       # reg_w
                            jnp.full((1, d), reg_b, jnp.float32)],       # reg_b bcast
                           axis=0)                                       # [4, D]

    return {
        "wte": nrm(keys[0], (vocab, d)),
        "wpe": nrm(keys[1], (n_pos, d)),
        "qkv_w": qkv_w,
        "qkv_b": qkv_b,
        "proj_w": jnp.stack(proj_w),                 # [L, D, D]
        "fc_w": jnp.stack(fc_w),                     # [L, D, 4D]
        "fc_b": jnp.zeros((n_layer, 1, 4 * d), jnp.float32),
        "mproj_w": jnp.stack(mproj_w),               # [L, 4D, D]
        "dvec": dvec,
        "fvec": fvec,
    }


# ----------------------------------------------------------------------------
# Forward pass (mirrors GPT2Regressor.forward) — one pallas_call, grid over B
# ----------------------------------------------------------------------------
def gpt2_regressor_forward(params, n_head, input_ids, attention_mask=None, labels=None):
    B, S = input_ids.shape
    D = params["wte"].shape[1]
    L = params["dvec"].shape[0]

    if attention_mask is None:
        attention_mask = jnp.ones((B, S), jnp.float32)
    attention_mask = attention_mask.astype(jnp.float32)

    # --- glue (plain JAX, fused into the same XLA program by jit) ---
    h = params["wte"][input_ids] + params["wpe"][:S][None, :, :]          # [B, S, D]

    # additive causal + key-padding mask, per batch: [B, S, S] of {0, -1e9}
    causal = jnp.tril(jnp.ones((S, S), jnp.bool_))
    key_valid = attention_mask[:, None, :] > 0.5                          # [B, 1, S]
    allowed = causal[None, :, :] & key_valid
    amask = jnp.where(allowed, 0.0, -1e9).astype(jnp.float32)

    kernel = partial(_gpt2_batch_kernel, n_layer=int(L), n_head=int(n_head),
                     S=int(S), D=int(D))

    in_specs = [
        pl.BlockSpec((None, S, D), lambda b: (b, 0, 0)),   # h  (per-batch block)
        pl.BlockSpec((None, S, S), lambda b: (b, 0, 0)),   # additive mask
        _resident_spec(params["qkv_w"].shape),
        _resident_spec(params["qkv_b"].shape),
        _resident_spec(params["proj_w"].shape),
        _resident_spec(params["fc_w"].shape),
        _resident_spec(params["fc_b"].shape),
        _resident_spec(params["mproj_w"].shape),
        _resident_spec(params["dvec"].shape),
        _resident_spec(params["fvec"].shape),
    ]

    logits3 = pl.pallas_call(
        kernel,
        out_shape=jax.ShapeDtypeStruct((B, 1, 1), jnp.float32),
        grid=(B,),
        in_specs=in_specs,
        out_specs=pl.BlockSpec((None, 1, 1), lambda b: (b, 0, 0)),
        compiler_params=pltpu.CompilerParams(
            dimension_semantics=("parallel",)),    # shards batch across TCs on v7x
    )(h, amask, params["qkv_w"], params["qkv_b"], params["proj_w"],
      params["fc_w"], params["fc_b"], params["mproj_w"],
      params["dvec"], params["fvec"])

    logits = logits3.reshape(B, 1)

    if labels is not None:
        # MSE over B elements; trivially fused by XLA (cannot accumulate a
        # cross-batch scalar inside a *parallel* grid axis safely).
        diff = logits.reshape(-1) - labels.reshape(-1).astype(jnp.float32)
        loss = jnp.mean(diff * diff)
        return {"loss": loss, "logits": logits}
    return {"logits": logits}


# ----------------------------------------------------------------------------
if __name__ == "__main__":
    VOCAB, N_POS, D, N_HEAD, N_LAYER = 128, 64, 32, 4, 2
    B, S = 2, 8

    params = init_params(jax.random.PRNGKey(42),
                         vocab=VOCAB, n_pos=N_POS, d=D,
                         n_head=N_HEAD, n_layer=N_LAYER)

    key = jax.random.PRNGKey(0)
    k_ids, k_lbl = jax.random.split(key)
    input_ids = jax.random.randint(k_ids, (B, S), 0, VOCAB, dtype=jnp.int32)
    attention_mask = jnp.ones((B, S), jnp.float32)
    labels = jax.random.normal(k_lbl, (B,), jnp.float32)

    # jit the whole forward: embedding gather + mask build + fused kernel + loss
    fwd = jax.jit(partial(gpt2_regressor_forward, params, N_HEAD))
    out = fwd(input_ids, attention_mask=attention_mask, labels=labels)

    jax.block_until_ready(out["logits"])
    jax.block_until_ready(out["loss"])

    assert out["logits"].shape == (B, 1)
    assert out["loss"].shape == ()
    print("KERNEL_OK")
</pallas_src>

<mosaic_0001>
module attributes {stable_mosaic.version = 11 : i64} {
  func.func @_gpt2_batch_kernel(%arg0: i32, %arg1: memref<1x8x32xf32, #tpu.memory_space<vmem>>, %arg2: memref<1x8x8xf32, #tpu.memory_space<vmem>>, %arg3: memref<24x32x8xf32, #tpu.memory_space<vmem>>, %arg4: memref<24x1x8xf32, #tpu.memory_space<vmem>>, %arg5: memref<2x32x32xf32, #tpu.memory_space<vmem>>, %arg6: memref<2x32x128xf32, #tpu.memory_space<vmem>>, %arg7: memref<2x1x128xf32, #tpu.memory_space<vmem>>, %arg8: memref<2x128x32xf32, #tpu.memory_space<vmem>>, %arg9: memref<2x6x32xf32, #tpu.memory_space<vmem>>, %arg10: memref<4x32xf32, #tpu.memory_space<vmem>>, %arg11: memref<1x1x1xf32, #tpu.memory_space<vmem>>) attributes {dimension_semantics = [#tpu.dimension_semantics<parallel>], iteration_bounds = array<i64: 2>, scalar_prefetch = 0 : i64, scratch_operands = 0 : i64, tpu.core_type = #tpu.core_type<tc>, window_params = [{transform_indices = @transform_0, window_bounds = array<i64: 1, 8, 32>}, {transform_indices = @transform_1, window_bounds = array<i64: 1, 8, 8>}, {pipeline_mode = #tpu.pipeline_mode<synchronous>, transform_indices = @transform_2, window_bounds = array<i64: 24, 32, 8>}, {pipeline_mode = #tpu.pipeline_mode<synchronous>, transform_indices = @transform_3, window_bounds = array<i64: 24, 1, 8>}, {pipeline_mode = #tpu.pipeline_mode<synchronous>, transform_indices = @transform_4, window_bounds = array<i64: 2, 32, 32>}, {pipeline_mode = #tpu.pipeline_mode<synchronous>, transform_indices = @transform_5, window_bounds = array<i64: 2, 32, 128>}, {pipeline_mode = #tpu.pipeline_mode<synchronous>, transform_indices = @transform_6, window_bounds = array<i64: 2, 1, 128>}, {pipeline_mode = #tpu.pipeline_mode<synchronous>, transform_indices = @transform_7, window_bounds = array<i64: 2, 128, 32>}, {pipeline_mode = #tpu.pipeline_mode<synchronous>, transform_indices = @transform_8, window_bounds = array<i64: 2, 6, 32>}, {pipeline_mode = #tpu.pipeline_mode<synchronous>, transform_indices = @transform_9, window_bounds = array<i64: 4, 32>}, {transform_indices = @transform_10, window_bounds = array<i64: 1, 1, 1>}]} {
    %c0 = arith.constant 0 : index
    %c0_0 = arith.constant 0 : index
    %c0_1 = arith.constant 0 : index
    %0 = vector.load %arg1[%c0, %c0_0, %c0_1] : memref<1x8x32xf32, #tpu.memory_space<vmem>>, vector<1x8x32xf32>
    %1 = vector.shape_cast %0 : vector<1x8x32xf32> to vector<8x32xf32>
    %c0_2 = arith.constant 0 : index
    %c0_3 = arith.constant 0 : index
    %c0_4 = arith.constant 0 : index
    %2 = vector.load %arg2[%c0_2, %c0_3, %c0_4] : memref<1x8x8xf32, #tpu.memory_space<vmem>>, vector<1x8x8xf32>
    %3 = vector.shape_cast %2 : vector<1x8x8xf32> to vector<8x8xf32>
    %c0_5 = arith.constant 0 : index
    %c0_6 = arith.constant 0 : index
    %c0_7 = arith.constant 0 : index
    %4 = vector.load %arg9[%c0_5, %c0_6, %c0_7] : memref<2x6x32xf32, #tpu.memory_space<vmem>>, vector<1x6x32xf32>
    %5 = vector.shape_cast %4 : vector<1x6x32xf32> to vector<6x32xf32>
    %6 = vector.extract_strided_slice %5 {offsets = [0, 0], sizes = [1, 32], strides = [1, 1]} : vector<6x32xf32> to vector<1x32xf32>
    %7 = vector.extract_strided_slice %5 {offsets = [1, 0], sizes = [1, 32], strides = [1, 1]} : vector<6x32xf32> to vector<1x32xf32>
    %8 = vector.extract_strided_slice %5 {offsets = [2, 0], sizes = [1, 32], strides = [1, 1]} : vector<6x32xf32> to vector<1x32xf32>
    %9 = vector.extract_strided_slice %5 {offsets = [3, 0], sizes = [1, 32], strides = [1, 1]} : vector<6x32xf32> to vector<1x32xf32>
    %10 = vector.extract_strided_slice %5 {offsets = [4, 0], sizes = [1, 32], strides = [1, 1]} : vector<6x32xf32> to vector<1x32xf32>
    %11 = vector.extract_strided_slice %5 {offsets = [5, 0], sizes = [1, 32], strides = [1, 1]} : vector<6x32xf32> to vector<1x32xf32>
    %cst = arith.constant dense<0.000000e+00> : vector<8xf32>
    %12 = vector.multi_reduction <add>, %1, %cst [1] : vector<8x32xf32> to vector<8xf32>
    %13 = vector.shape_cast %12 : vector<8xf32> to vector<8x1xf32>
    %cst_8 = arith.constant 3.200000e+01 : f32
    %14 = vector.broadcast %cst_8 : f32 to vector<8x1xf32>
    %15 = arith.divf %13, %14 : vector<8x1xf32>
    %16 = arith.mulf %1, %1 : vector<8x32xf32>
    %cst_9 = arith.constant dense<0.000000e+00> : vector<8xf32>
    %17 = vector.multi_reduction <add>, %16, %cst_9 [1] : vector<8x32xf32> to vector<8xf32>
    %18 = vector.shape_cast %17 : vector<8xf32> to vector<8x1xf32>
    %cst_10 = arith.constant 3.200000e+01 : f32
    %19 = vector.broadcast %cst_10 : f32 to vector<8x1xf32>
    %20 = arith.divf %18, %19 : vector<8x1xf32>
    %21 = arith.mulf %15, %15 : vector<8x1xf32>
    %22 = arith.subf %20, %21 : vector<8x1xf32>
    %23 = vector.broadcast %15 : vector<8x1xf32> to vector<8x32xf32>
    %24 = arith.subf %1, %23 : vector<8x32xf32>
    %cst_11 = arith.constant 9.99999974E-6 : f32
    %25 = vector.broadcast %cst_11 : f32 to vector<8x1xf32>
    %26 = arith.addf %22, %25 : vector<8x1xf32>
    %27 = math.rsqrt %26 : vector<8x1xf32>
    %28 = vector.broadcast %27 : vector<8x1xf32> to vector<8x32xf32>
    %29 = arith.mulf %24, %28 : vector<8x32xf32>
    %30 = vector.broadcast %6 : vector<1x32xf32> to vector<8x32xf32>
    %31 = arith.mulf %29, %30 : vector<8x32xf32>
    %32 = vector.broadcast %7 : vector<1x32xf32> to vector<8x32xf32>
    %33 = arith.addf %31, %32 : vector<8x32xf32>
    %c0_12 = arith.constant 0 : index
    %c0_13 = arith.constant 0 : index
    %c0_14 = arith.constant 0 : index
    %34 = vector.load %arg3[%c0_12, %c0_13, %c0_14] : memref<24x32x8xf32, #tpu.memory_space<vmem>>, vector<1x32x8xf32>
    %35 = vector.shape_cast %34 : vector<1x32x8xf32> to vector<32x8xf32>
    %cst_15 = arith.constant dense<0.000000e+00> : vector<8x8xf32>
    %36 = tpu.matmul %33, %35, %cst_15 {dimension_numbers = #tpu.dot_dimension_numbers<[1], [0], [0], [1], [0, 0, 1, 1], [], []>} : vector<8x32xf32>, vector<32x8xf32>, vector<8x8xf32> -> vector<8x8xf32>
    %c0_16 = arith.constant 0 : index
    %c0_17 = arith.constant 0 : index
    %c0_18 = arith.constant 0 : index
    %37 = vector.load %arg4[%c0_16, %c0_17, %c0_18] : memref<24x1x8xf32, #tpu.memory_space<vmem>>, vector<1x1x8xf32>
    %38 = vector.shape_cast %37 : vector<1x1x8xf32> to vector<1x8xf32>
    %39 = vector.broadcast %38 : vector<1x8xf32> to vector<8x8xf32>
    %40 = arith.addf %36, %39 : vector<8x8xf32>
    %c1 = arith.constant 1 : index
    %c0_19 = arith.constant 0 : index
    %c0_20 = arith.constant 0 : index
    %41 = vector.load %arg3[%c1, %c0_19, %c0_20] : memref<24x32x8xf32, #tpu.memory_space<vmem>>, vector<1x32x8xf32>
    %42 = vector.shape_cast %41 : vector<1x32x8xf32> to vector<32x8xf32>
    %cst_21 = arith.constant dense<0.000000e+00> : vector<8x8xf32>
    %43 = tpu.matmul %33, %42, %cst_21 {dimension_numbers = #tpu.dot_dimension_numbers<[1], [0], [0], [1], [0, 0, 1, 1], [], []>} : vector<8x32xf32>, vector<32x8xf32>, vector<8x8xf32> -> vector<8x8xf32>
    %c1_22 = arith.constant 1 : index
    %c0_23 = arith.constant 0 : index
    %c0_24 = arith.constant 0 : index
    %44 = vector.load %arg4[%c1_22, %c0_23, %c0_24] : memref<24x1x8xf32, #tpu.memory_space<vmem>>, vector<1x1x8xf32>
    %45 = vector.shape_cast %44 : vector<1x1x8xf32> to vector<1x8xf32>
    %46 = vector.broadcast %45 : vector<1x8xf32> to vector<8x8xf32>
    %47 = arith.addf %43, %46 : vector<8x8xf32>
    %c2 = arith.constant 2 : index
    %c0_25 = arith.constant 0 : index
    %c0_26 = arith.constant 0 : index
    %48 = vector.load %arg3[%c2, %c0_25, %c0_26] : memref<24x32x8xf32, #tpu.memory_space<vmem>>, vector<1x32x8xf32>
    %49 = vector.shape_cast %48 : vector<1x32x8xf32> to vector<32x8xf32>
    %cst_27 = arith.constant dense<0.000000e+00> : vector<8x8xf32>
    %50 = tpu.matmul %33, %49, %cst_27 {dimension_numbers = #tpu.dot_dimension_numbers<[1], [0], [0], [1], [0, 0, 1, 1], [], []>} : vector<8x32xf32>, vector<32x8xf32>, vector<8x8xf32> -> vector<8x8xf32>
    %c2_28 = arith.constant 2 : index
    %c0_29 = arith.constant 0 : index
    %c0_30 = arith.constant 0 : index
    %51 = vector.load %arg4[%c2_28, %c0_29, %c0_30] : memref<24x1x8xf32, #tpu.memory_space<vmem>>, vector<1x1x8xf32>
    %52 = vector.shape_cast %51 : vector<1x1x8xf32> to vector<1x8xf32>
    %53 = vector.broadcast %52 : vector<1x8xf32> to vector<8x8xf32>
    %54 = arith.addf %50, %53 : vector<8x8xf32>
    %cst_31 = arith.constant dense<0.000000e+00> : vector<8x8xf32>
    %55 = tpu.matmul %40, %47, %cst_31 {dimension_numbers = #tpu.dot_dimension_numbers<[1], [1], [0], [0], [0, 0, 1, 0], [], []>} : vector<8x8xf32>, vector<8x8xf32>, vector<8x8xf32> -> vector<8x8xf32>
    %cst_32 = arith.constant 0.353553385 : f32
    %56 = vector.broadcast %cst_32 : f32 to vector<8x8xf32>
    %57 = arith.mulf %55, %56 : vector<8x8xf32>
    %58 = arith.addf %57, %3 : vector<8x8xf32>
    %cst_33 = arith.constant dense<0xFF800000> : vector<8xf32>
    %59 = vector.multi_reduction <maximumf>, %58, %cst_33 [1] : vector<8x8xf32> to vector<8xf32>
    %60 = vector.shape_cast %59 : vector<8xf32> to vector<8x1xf32>
    %61 = vector.broadcast %60 : vector<8x1xf32> to vector<8x8xf32>
    %62 = arith.subf %58, %61 : vector<8x8xf32>
    %63 = math.exp %62 : vector<8x8xf32>
    %cst_34 = arith.constant dense<0.000000e+00> : vector<8xf32>
    %64 = vector.multi_reduction <add>, %63, %cst_34 [1] : vector<8x8xf32> to vector<8xf32>
    %65 = vector.shape_cast %64 : vector<8xf32> to vector<8x1xf32>
    %66 = tpu.reciprocal %65 {approx = true} : vector<8x1xf32> -> vector<8x1xf32>
    %67 = vector.broadcast %66 : vector<8x1xf32> to vector<8x8xf32>
    %68 = arith.mulf %63, %67 : vector<8x8xf32>
    %cst_35 = arith.constant dense<0.000000e+00> : vector<8x8xf32>
    %69 = tpu.matmul %68, %54, %cst_35 {dimension_numbers = #tpu.dot_dimension_numbers<[1], [0], [0], [1], [0, 0, 1, 1], [], []>} : vector<8x8xf32>, vector<8x8xf32>, vector<8x8xf32> -> vector<8x8xf32>
    %c0_36 = arith.constant 0 : index
    %c0_37 = arith.constant 0 : index
    %c0_38 = arith.constant 0 : index
    %70 = vector.load %arg5[%c0_36, %c0_37, %c0_38] : memref<2x32x32xf32, #tpu.memory_space<vmem>>, vector<1x8x32xf32>
    %71 = vector.shape_cast %70 : vector<1x8x32xf32> to vector<8x32xf32>
    %cst_39 = arith.constant dense<0.000000e+00> : vector<8x32xf32>
    %72 = tpu.matmul %69, %71, %cst_39 {dimension_numbers = #tpu.dot_dimension_numbers<[1], [0], [0], [1], [0, 0, 1, 1], [], []>} : vector<8x8xf32>, vector<8x32xf32>, vector<8x32xf32> -> vector<8x32xf32>
    %c3 = arith.constant 3 : index
    %c0_40 = arith.constant 0 : index
    %c0_41 = arith.constant 0 : index
    %73 = vector.load %arg3[%c3, %c0_40, %c0_41] : memref<24x32x8xf32, #tpu.memory_space<vmem>>, vector<1x32x8xf32>
    %74 = vector.shape_cast %73 : vector<1x32x8xf32> to vector<32x8xf32>
    %cst_42 = arith.constant dense<0.000000e+00> : vector<8x8xf32>
    %75 = tpu.matmul %33, %74, %cst_42 {dimension_numbers = #tpu.dot_dimension_numbers<[1], [0], [0], [1], [0, 0, 1, 1], [], []>} : vector<8x32xf32>, vector<32x8xf32>, vector<8x8xf32> -> vector<8x8xf32>
    %c3_43 = arith.constant 3 : index
    %c0_44 = arith.constant 0 : index
    %c0_45 = arith.constant 0 : index
    %76 = vector.load %arg4[%c3_43, %c0_44, %c0_45] : memref<24x1x8xf32, #tpu.memory_space<vmem>>, vector<1x1x8xf32>
    %77 = vector.shape_cast %76 : vector<1x1x8xf32> to vector<1x8xf32>
    %78 = vector.broadcast %77 : vector<1x8xf32> to vector<8x8xf32>
    %79 = arith.addf %75, %78 : vector<8x8xf32>
    %c4 = arith.constant 4 : index
    %c0_46 = arith.constant 0 : index
    %c0_47 = arith.constant 0 : index
    %80 = vector.load %arg3[%c4, %c0_46, %c0_47] : memref<24x32x8xf32, #tpu.memory_space<vmem>>, vector<1x32x8xf32>
    %81 = vector.shape_cast %80 : vector<1x32x8xf32> to vector<32x8xf32>
    %cst_48 = arith.constant dense<0.000000e+00> : vector<8x8xf32>
    %82 = tpu.matmul %33, %81, %cst_48 {dimension_numbers = #tpu.dot_dimension_numbers<[1], [0], [0], [1], [0, 0, 1, 1], [], []>} : vector<8x32xf32>, vector<32x8xf32>, vector<8x8xf32> -> vector<8x8xf32>
    %c4_49 = arith.constant 4 : index
    %c0_50 = arith.constant 0 : index
    %c0_51 = arith.constant 0 : index
    %83 = vector.load %arg4[%c4_49, %c0_50, %c0_51] : memref<24x1x8xf32, #tpu.memory_space<vmem>>, vector<1x1x8xf32>
    %84 = vector.shape_cast %83 : vector<1x1x8xf32> to vector<1x8xf32>
    %85 = vector.broadcast %84 : vector<1x8xf32> to vector<8x8xf32>
    %86 = arith.addf %82, %85 : vector<8x8xf32>
    %c5 = arith.constant 5 : index
    %c0_52 = arith.constant 0 : index
    %c0_53 = arith.constant 0 : index
    %87 = vector.load %arg3[%c5, %c0_52, %c0_53] : memref<24x32x8xf32, #tpu.memory_space<vmem>>, vector<1x32x8xf32>
    %88 = vector.shape_cast %87 : vector<1x32x8xf32> to vector<32x8xf32>
    %cst_54 = arith.constant dense<0.000000e+00> : vector<8x8xf32>
    %89 = tpu.matmul %33, %88, %cst_54 {dimension_numbers = #tpu.dot_dimension_numbers<[1], [0], [0], [1], [0, 0, 1, 1], [], []>} : vector<8x32xf32>, vector<32x8xf32>, vector<8x8xf32> -> vector<8x8xf32>
    %c5_55 = arith.constant 5 : index
    %c0_56 = arith.constant 0 : index
    %c0_57 = arith.constant 0 : index
    %90 = vector.load %arg4[%c5_55, %c0_56, %c0_57] : memref<24x1x8xf32, #tpu.memory_space<vmem>>, vector<1x1x8xf32>
    %91 = vector.shape_cast %90 : vector<1x1x8xf32> to vector<1x8xf32>
    %92 = vector.broadcast %91 : vector<1x8xf32> to vector<8x8xf32>
    %93 = arith.addf %89, %92 : vector<8x8xf32>
    %cst_58 = arith.constant dense<0.000000e+00> : vector<8x8xf32>
    %94 = tpu.matmul %79, %86, %cst_58 {dimension_numbers = #tpu.dot_dimension_numbers<[1], [1], [0], [0], [0, 0, 1, 0], [], []>} : vector<8x8xf32>, vector<8x8xf32>, vector<8x8xf32> -> vector<8x8xf32>
    %cst_59 = arith.constant 0.353553385 : f32
    %95 = vector.broadcast %cst_59 : f32 to vector<8x8xf32>
    %96 = arith.mulf %94, %95 : vector<8x8xf32>
    %97 = arith.addf %96, %3 : vector<8x8xf32>
    %cst_60 = arith.constant dense<0xFF800000> : vector<8xf32>
    %98 = vector.multi_reduction <maximumf>, %97, %cst_60 [1] : vector<8x8xf32> to vector<8xf32>
    %99 = vector.shape_cast %98 : vector<8xf32> to vector<8x1xf32>
    %100 = vector.broadcast %99 : vector<8x1xf32> to vector<8x8xf32>
    %101 = arith.subf %97, %100 : vector<8x8xf32>
    %102 = math.exp %101 : vector<8x8xf32>
    %cst_61 = arith.constant dense<0.000000e+00> : vector<8xf32>
    %103 = vector.multi_reduction <add>, %102, %cst_61 [1] : vector<8x8xf32> to vector<8xf32>
    %104 = vector.shape_cast %103 : vector<8xf32> to vector<8x1xf32>
    %105 = tpu.reciprocal %104 {approx = true} : vector<8x1xf32> -> vector<8x1xf32>
    %106 = vector.broadcast %105 : vector<8x1xf32> to vector<8x8xf32>
    %107 = arith.mulf %102, %106 : vector<8x8xf32>
    %cst_62 = arith.constant dense<0.000000e+00> : vector<8x8xf32>
    %108 = tpu.matmul %107, %93, %cst_62 {dimension_numbers = #tpu.dot_dimension_numbers<[1], [0], [0], [1], [0, 0, 1, 1], [], []>} : vector<8x8xf32>, vector<8x8xf32>, vector<8x8xf32> -> vector<8x8xf32>
    %c0_63 = arith.constant 0 : index
    %c8 = arith.constant 8 : index
    %c0_64 = arith.constant 0 : index
    %109 = vector.load %arg5[%c0_63, %c8, %c0_64] : memref<2x32x32xf32, #tpu.memory_space<vmem>>, vector<1x8x32xf32>
    %110 = vector.shape_cast %109 : vector<1x8x32xf32> to vector<8x32xf32>
    %cst_65 = arith.constant dense<0.000000e+00> : vector<8x32xf32>
    %111 = tpu.matmul %108, %110, %cst_65 {dimension_numbers = #tpu.dot_dimension_numbers<[1], [0], [0], [1], [0, 0, 1, 1], [], []>} : vector<8x8xf32>, vector<8x32xf32>, vector<8x32xf32> -> vector<8x32xf32>
    %112 = arith.addf %72, %111 : vector<8x32xf32>
    %c6 = arith.constant 6 : index
    %c0_66 = arith.constant 0 : index
    %c0_67 = arith.constant 0 : index
    %113 = vector.load %arg3[%c6, %c0_66, %c0_67] : memref<24x32x8xf32, #tpu.memory_space<vmem>>, vector<1x32x8xf32>
    %114 = vector.shape_cast %113 : vector<1x32x8xf32> to vector<32x8xf32>
    %cst_68 = arith.constant dense<0.000000e+00> : vector<8x8xf32>
    %115 = tpu.matmul %33, %114, %cst_68 {dimension_numbers = #tpu.dot_dimension_numbers<[1], [0], [0], [1], [0, 0, 1, 1], [], []>} : vector<8x32xf32>, vector<32x8xf32>, vector<8x8xf32> -> vector<8x8xf32>
    %c6_69 = arith.constant 6 : index
    %c0_70 = arith.constant 0 : index
    %c0_71 = arith.constant 0 : index
    %116 = vector.load %arg4[%c6_69, %c0_70, %c0_71] : memref<24x1x8xf32, #tpu.memory_space<vmem>>, vector<1x1x8xf32>
    %117 = vector.shape_cast %116 : vector<1x1x8xf32> to vector<1x8xf32>
    %118 = vector.broadcast %117 : vector<1x8xf32> to vector<8x8xf32>
    %119 = arith.addf %115, %118 : vector<8x8xf32>
    %c7 = arith.constant 7 : index
    %c0_72 = arith.constant 0 : index
    %c0_73 = arith.constant 0 : index
    %120 = vector.load %arg3[%c7, %c0_72, %c0_73] : memref<24x32x8xf32, #tpu.memory_space<vmem>>, vector<1x32x8xf32>
    %121 = vector.shape_cast %120 : vector<1x32x8xf32> to vector<32x8xf32>
    %cst_74 = arith.constant dense<0.000000e+00> : vector<8x8xf32>
    %122 = tpu.matmul %33, %121, %cst_74 {dimension_numbers = #tpu.dot_dimension_numbers<[1], [0], [0], [1], [0, 0, 1, 1], [], []>} : vector<8x32xf32>, vector<32x8xf32>, vector<8x8xf32> -> vector<8x8xf32>
    %c7_75 = arith.constant 7 : index
    %c0_76 = arith.constant 0 : index
    %c0_77 = arith.constant 0 : index
    %123 = vector.load %arg4[%c7_75, %c0_76, %c0_77] : memref<24x1x8xf32, #tpu.memory_space<vmem>>, vector<1x1x8xf32>
    %124 = vector.shape_cast %123 : vector<1x1x8xf32> to vector<1x8xf32>
    %125 = vector.broadcast %124 : vector<1x8xf32> to vector<8x8xf32>
    %126 = arith.addf %122, %125 : vector<8x8xf32>
    %c8_78 = arith.constant 8 : index
    %c0_79 = arith.constant 0 : index
    %c0_80 = arith.constant 0 : index
    %127 = vector.load %arg3[%c8_78, %c0_79, %c0_80] : memref<24x32x8xf32, #tpu.memory_space<vmem>>, vector<1x32x8xf32>
    %128 = vector.shape_cast %127 : vector<1x32x8xf32> to vector<32x8xf32>
    %cst_81 = arith.constant dense<0.000000e+00> : vector<8x8xf32>
    %129 = tpu.matmul %33, %128, %cst_81 {dimension_numbers = #tpu.dot_dimension_numbers<[1], [0], [0], [1], [0, 0, 1, 1], [], []>} : vector<8x32xf32>, vector<32x8xf32>, vector<8x8xf32> -> vector<8x8xf32>
    %c8_82 = arith.constant 8 : index
    %c0_83 = arith.constant 0 : index
    %c0_84 = arith.constant 0 : index
    %130 = vector.load %arg4[%c8_82, %c0_83, %c0_84] : memref<24x1x8xf32, #tpu.memory_space<vmem>>, vector<1x1x8xf32>
    %131 = vector.shape_cast %130 : vector<1x1x8xf32> to vector<1x8xf32>
    %132 = vector.broadcast %131 : vector<1x8xf32> to vector<8x8xf32>
    %133 = arith.addf %129, %132 : vector<8x8xf32>
    %cst_85 = arith.constant dense<0.000000e+00> : vector<8x8xf32>
    %134 = tpu.matmul %119, %126, %cst_85 {dimension_numbers = #tpu.dot_dimension_numbers<[1], [1], [0], [0], [0, 0, 1, 0], [], []>} : vector<8x8xf32>, vector<8x8xf32>, vector<8x8xf32> -> vector<8x8xf32>
    %cst_86 = arith.constant 0.353553385 : f32
    %135 = vector.broadcast %cst_86 : f32 to vector<8x8xf32>
    %136 = arith.mulf %134, %135 : vector<8x8xf32>
    %137 = arith.addf %136, %3 : vector<8x8xf32>
    %cst_87 = arith.constant dense<0xFF800000> : vector<8xf32>
    %138 = vector.multi_reduction <maximumf>, %137, %cst_87 [1] : vector<8x8xf32> to vector<8xf32>
    %139 = vector.shape_cast %138 : vector<8xf32> to vector<8x1xf32>
    %140 = vector.broadcast %139 : vector<8x1xf32> to vector<8x8xf32>
    %141 = arith.subf %137, %140 : vector<8x8xf32>
    %142 = math.exp %141 : vector<8x8xf32>
    %cst_88 = arith.constant dense<0.000000e+00> : vector<8xf32>
    %143 = vector.multi_reduction <add>, %142, %cst_88 [1] : vector<8x8xf32> to vector<8xf32>
    %144 = vector.shape_cast %143 : vector<8xf32> to vector<8x1xf32>
    %145 = tpu.reciprocal %144 {approx = true} : vector<8x1xf32> -> vector<8x1xf32>
    %146 = vector.broadcast %145 : vector<8x1xf32> to vector<8x8xf32>
    %147 = arith.mulf %142, %146 : vector<8x8xf32>
    %cst_89 = arith.constant dense<0.000000e+00> : vector<8x8xf32>
    %148 = tpu.matmul %147, %133, %cst_89 {dimension_numbers = #tpu.dot_dimension_numbers<[1], [0], [0], [1], [0, 0, 1, 1], [], []>} : vector<8x8xf32>, vector<8x8xf32>, vector<8x8xf32> -> vector<8x8xf32>
    %c0_90 = arith.constant 0 : index
    %c16 = arith.constant 16 : index
    %c0_91 = arith.constant 0 : index
    %149 = vector.load %arg5[%c0_90, %c16, %c0_91] : memref<2x32x32xf32, #tpu.memory_space<vmem>>, vector<1x8x32xf32>
    %150 = vector.shape_cast %149 : vector<1x8x32xf32> to vector<8x32xf32>
    %cst_92 = arith.constant dense<0.000000e+00> : vector<8x32xf32>
    %151 = tpu.matmul %148, %150, %cst_92 {dimension_numbers = #tpu.dot_dimension_numbers<[1], [0], [0], [1], [0, 0, 1, 1], [], []>} : vector<8x8xf32>, vector<8x32xf32>, vector<8x32xf32> -> vector<8x32xf32>
    %152 = arith.addf %112, %151 : vector<8x32xf32>
    %c9 = arith.constant 9 : index
    %c0_93 = arith.constant 0 : index
    %c0_94 = arith.constant 0 : index
    %153 = vector.load %arg3[%c9, %c0_93, %c0_94] : memref<24x32x8xf32, #tpu.memory_space<vmem>>, vector<1x32x8xf32>
    %154 = vector.shape_cast %153 : vector<1x32x8xf32> to vector<32x8xf32>
    %cst_95 = arith.constant dense<0.000000e+00> : vector<8x8xf32>
    %155 = tpu.matmul %33, %154, %cst_95 {dimension_numbers = #tpu.dot_dimension_numbers<[1], [0], [0], [1], [0, 0, 1, 1], [], []>} : vector<8x32xf32>, vector<32x8xf32>, vector<8x8xf32> -> vector<8x8xf32>
    %c9_96 = arith.constant 9 : index
    %c0_97 = arith.constant 0 : index
    %c0_98 = arith.constant 0 : index
    %156 = vector.load %arg4[%c9_96, %c0_97, %c0_98] : memref<24x1x8xf32, #tpu.memory_space<vmem>>, vector<1x1x8xf32>
    %157 = vector.shape_cast %156 : vector<1x1x8xf32> to vector<1x8xf32>
    %158 = vector.broadcast %157 : vector<1x8xf32> to vector<8x8xf32>
    %159 = arith.addf %155, %158 : vector<8x8xf32>
    %c10 = arith.constant 10 : index
    %c0_99 = arith.constant 0 : index
    %c0_100 = arith.constant 0 : index
    %160 = vector.load %arg3[%c10, %c0_99, %c0_100] : memref<24x32x8xf32, #tpu.memory_space<vmem>>, vector<1x32x8xf32>
    %161 = vector.shape_cast %160 : vector<1x32x8xf32> to vector<32x8xf32>
    %cst_101 = arith.constant dense<0.000000e+00> : vector<8x8xf32>
    %162 = tpu.matmul %33, %161, %cst_101 {dimension_numbers = #tpu.dot_dimension_numbers<[1], [0], [0], [1], [0, 0, 1, 1], [], []>} : vector<8x32xf32>, vector<32x8xf32>, vector<8x8xf32> -> vector<8x8xf32>
    %c10_102 = arith.constant 10 : index
    %c0_103 = arith.constant 0 : index
    %c0_104 = arith.constant 0 : index
    %163 = vector.load %arg4[%c10_102, %c0_103, %c0_104] : memref<24x1x8xf32, #tpu.memory_space<vmem>>, vector<1x1x8xf32>
    %164 = vector.shape_cast %163 : vector<1x1x8xf32> to vector<1x8xf32>
    %165 = vector.broadcast %164 : vector<1x8xf32> to vector<8x8xf32>
    %166 = arith.addf %162, %165 : vector<8x8xf32>
    %c11 = arith.constant 11 : index
    %c0_105 = arith.constant 0 : index
    %c0_106 = arith.constant 0 : index
    %167 = vector.load %arg3[%c11, %c0_105, %c0_106] : memref<24x32x8xf32, #tpu.memory_space<vmem>>, vector<1x32x8xf32>
    %168 = vector.shape_cast %167 : vector<1x32x8xf32> to vector<32x8xf32>
    %cst_107 = arith.constant dense<0.000000e+00> : vector<8x8xf32>
    %169 = tpu.matmul %33, %168, %cst_107 {dimension_numbers = #tpu.dot_dimension_numbers<[1], [0], [0], [1], [0, 0, 1, 1], [], []>} : vector<8x32xf32>, vector<32x8xf32>, vector<8x8xf32> -> vector<8x8xf32>
    %c11_108 = arith.constant 11 : index
    %c0_109 = arith.constant 0 : index
    %c0_110 = arith.constant 0 : index
    %170 = vector.load %arg4[%c11_108, %c0_109, %c0_110] : memref<24x1x8xf32, #tpu.memory_space<vmem>>, vector<1x1x8xf32>
    %171 = vector.shape_cast %170 : vector<1x1x8xf32> to vector<1x8xf32>
    %172 = vector.broadcast %171 : vector<1x8xf32> to vector<8x8xf32>
    %173 = arith.addf %169, %172 : vector<8x8xf32>
    %cst_111 = arith.constant dense<0.000000e+00> : vector<8x8xf32>
    %174 = tpu.matmul %159, %166, %cst_111 {dimension_numbers = #tpu.dot_dimension_numbers<[1], [1], [0], [0], [0, 0, 1, 0], [], []>} : vector<8x8xf32>, vector<8x8xf32>, vector<8x8xf32> -> vector<8x8xf32>
    %cst_112 = arith.constant 0.353553385 : f32
    %175 = vector.broadcast %cst_112 : f32 to vector<8x8xf32>
    %176 = arith.mulf %174, %175 : vector<8x8xf32>
    %177 = arith.addf %176, %3 : vector<8x8xf32>
    %cst_113 = arith.constant dense<0xFF800000> : vector<8xf32>
    %178 = vector.multi_reduction <maximumf>, %177, %cst_113 [1] : vector<8x8xf32> to vector<8xf32>
    %179 = vector.shape_cast %178 : vector<8xf32> to vector<8x1xf32>
    %180 = vector.broadcast %179 : vector<8x1xf32> to vector<8x8xf32>
    %181 = arith.subf %177, %180 : vector<8x8xf32>
    %182 = math.exp %181 : vector<8x8xf32>
    %cst_114 = arith.constant dense<0.000000e+00> : vector<8xf32>
    %183 = vector.multi_reduction <add>, %182, %cst_114 [1] : vector<8x8xf32> to vector<8xf32>
    %184 = vector.shape_cast %183 : vector<8xf32> to vector<8x1xf32>
    %185 = tpu.reciprocal %184 {approx = true} : vector<8x1xf32> -> vector<8x1xf32>
    %186 = vector.broadcast %185 : vector<8x1xf32> to vector<8x8xf32>
    %187 = arith.mulf %182, %186 : vector<8x8xf32>
    %cst_115 = arith.constant dense<0.000000e+00> : vector<8x8xf32>
    %188 = tpu.matmul %187, %173, %cst_115 {dimension_numbers = #tpu.dot_dimension_numbers<[1], [0], [0], [1], [0, 0, 1, 1], [], []>} : vector<8x8xf32>, vector<8x8xf32>, vector<8x8xf32> -> vector<8x8xf32>
    %c0_116 = arith.constant 0 : index
    %c24 = arith.constant 24 : index
    %c0_117 = arith.constant 0 : index
    %189 = vector.load %arg5[%c0_116, %c24, %c0_117] : memref<2x32x32xf32, #tpu.memory_space<vmem>>, vector<1x8x32xf32>
    %190 = vector.shape_cast %189 : vector<1x8x32xf32> to vector<8x32xf32>
    %cst_118 = arith.constant dense<0.000000e+00> : vector<8x32xf32>
    %191 = tpu.matmul %188, %190, %cst_118 {dimension_numbers = #tpu.dot_dimension_numbers<[1], [0], [0], [1], [0, 0, 1, 1], [], []>} : vector<8x8xf32>, vector<8x32xf32>, vector<8x32xf32> -> vector<8x32xf32>
    %192 = arith.addf %152, %191 : vector<8x32xf32>
    %193 = arith.addf %1, %192 : vector<8x32xf32>
    %194 = vector.broadcast %10 : vector<1x32xf32> to vector<8x32xf32>
    %195 = arith.addf %193, %194 : vector<8x32xf32>
    %cst_119 = arith.constant dense<0.000000e+00> : vector<8xf32>
    %196 = vector.multi_reduction <add>, %195, %cst_119 [1] : vector<8x32xf32> to vector<8xf32>
    %197 = vector.shape_cast %196 : vector<8xf32> to vector<8x1xf32>
    %cst_120 = arith.constant 3.200000e+01 : f32
    %198 = vector.broadcast %cst_120 : f32 to vector<8x1xf32>
    %199 = arith.divf %197, %198 : vector<8x1xf32>
    %200 = arith.mulf %195, %195 : vector<8x32xf32>
    %cst_121 = arith.constant dense<0.000000e+00> : vector<8xf32>
    %201 = vector.multi_reduction <add>, %200, %cst_121 [1] : vector<8x32xf32> to vector<8xf32>
    %202 = vector.shape_cast %201 : vector<8xf32> to vector<8x1xf32>
    %cst_122 = arith.constant 3.200000e+01 : f32
    %203 = vector.broadcast %cst_122 : f32 to vector<8x1xf32>
    %204 = arith.divf %202, %203 : vector<8x1xf32>
    %205 = arith.mulf %199, %199 : vector<8x1xf32>
    %206 = arith.subf %204, %205 : vector<8x1xf32>
    %207 = vector.broadcast %199 : vector<8x1xf32> to vector<8x32xf32>
    %208 = arith.subf %195, %207 : vector<8x32xf32>
    %cst_123 = arith.constant 9.99999974E-6 : f32
    %209 = vector.broadcast %cst_123 : f32 to vector<8x1xf32>
    %210 = arith.addf %206, %209 : vector<8x1xf32>
    %211 = math.rsqrt %210 : vector<8x1xf32>
    %212 = vector.broadcast %211 : vector<8x1xf32> to vector<8x32xf32>
    %213 = arith.mulf %208, %212 : vector<8x32xf32>
    %214 = vector.broadcast %8 : vector<1x32xf32> to vector<8x32xf32>
    %215 = arith.mulf %213, %214 : vector<8x32xf32>
    %216 = vector.broadcast %9 : vector<1x32xf32> to vector<8x32xf32>
    %217 = arith.addf %215, %216 : vector<8x32xf32>
    %c0_124 = arith.constant 0 : index
    %c0_125 = arith.constant 0 : index
    %c0_126 = arith.constant 0 : index
    %218 = vector.load %arg6[%c0_124, %c0_125, %c0_126] : memref<2x32x128xf32, #tpu.memory_space<vmem>>, vector<1x32x128xf32>
    %219 = vector.shape_cast %218 : vector<1x32x128xf32> to vector<32x128xf32>
    %cst_127 = arith.constant dense<0.000000e+00> : vector<8x128xf32>
    %220 = tpu.matmul %217, %219, %cst_127 {dimension_numbers = #tpu.dot_dimension_numbers<[1], [0], [0], [1], [0, 0, 1, 1], [], []>} : vector<8x32xf32>, vector<32x128xf32>, vector<8x128xf32> -> vector<8x128xf32>
    %c0_128 = arith.constant 0 : index
    %c0_129 = arith.constant 0 : index
    %c0_130 = arith.constant 0 : index
    %221 = vector.load %arg7[%c0_128, %c0_129, %c0_130] : memref<2x1x128xf32, #tpu.memory_space<vmem>>, vector<1x1x128xf32>
    %222 = vector.shape_cast %221 : vector<1x1x128xf32> to vector<1x128xf32>
    %223 = vector.broadcast %222 : vector<1x128xf32> to vector<8x128xf32>
    %224 = arith.addf %220, %223 : vector<8x128xf32>
    %cst_131 = arith.constant 5.000000e-01 : f32
    %225 = vector.broadcast %cst_131 : f32 to vector<8x128xf32>
    %226 = arith.mulf %225, %224 : vector<8x128xf32>
    %cst_132 = arith.constant 4.471500e-02 : f32
    %227 = vector.broadcast %cst_132 : f32 to vector<8x128xf32>
    %228 = arith.mulf %227, %224 : vector<8x128xf32>
    %229 = arith.mulf %228, %224 : vector<8x128xf32>
    %230 = arith.mulf %229, %224 : vector<8x128xf32>
    %231 = arith.addf %224, %230 : vector<8x128xf32>
    %cst_133 = arith.constant 0.797884583 : f32
    %232 = vector.broadcast %cst_133 : f32 to vector<8x128xf32>
    %233 = arith.mulf %232, %231 : vector<8x128xf32>
    %234 = math.tanh %233 : vector<8x128xf32>
    %cst_134 = arith.constant 1.000000e+00 : f32
    %235 = vector.broadcast %cst_134 : f32 to vector<8x128xf32>
    %236 = arith.addf %235, %234 : vector<8x128xf32>
    %237 = arith.mulf %226, %236 : vector<8x128xf32>
    %c0_135 = arith.constant 0 : index
    %c0_136 = arith.constant 0 : index
    %c0_137 = arith.constant 0 : index
    %238 = vector.load %arg8[%c0_135, %c0_136, %c0_137] : memref<2x128x32xf32, #tpu.memory_space<vmem>>, vector<1x128x32xf32>
    %239 = vector.shape_cast %238 : vector<1x128x32xf32> to vector<128x32xf32>
    %cst_138 = arith.constant dense<0.000000e+00> : vector<8x32xf32>
    %240 = tpu.matmul %237, %239, %cst_138 {dimension_numbers = #tpu.dot_dimension_numbers<[1], [0], [0], [1], [0, 0, 1, 1], [], []>} : vector<8x128xf32>, vector<128x32xf32>, vector<8x32xf32> -> vector<8x32xf32>
    %241 = arith.addf %195, %240 : vector<8x32xf32>
    %242 = vector.broadcast %11 : vector<1x32xf32> to vector<8x32xf32>
    %243 = arith.addf %241, %242 : vector<8x32xf32>
    %c1_139 = arith.constant 1 : index
    %c0_140 = arith.constant 0 : index
    %c0_141 = arith.constant 0 : index
    %244 = vector.load %arg9[%c1_139, %c0_140, %c0_141] : memref<2x6x32xf32, #tpu.memory_space<vmem>>, vector<1x6x32xf32>
    %245 = vector.shape_cast %244 : vector<1x6x32xf32> to vector<6x32xf32>
    %246 = vector.extract_strided_slice %245 {offsets = [0, 0], sizes = [1, 32], strides = [1, 1]} : vector<6x32xf32> to vector<1x32xf32>
    %247 = vector.extract_strided_slice %245 {offsets = [1, 0], sizes = [1, 32], strides = [1, 1]} : vector<6x32xf32> to vector<1x32xf32>
    %248 = vector.extract_strided_slice %245 {offsets = [2, 0], sizes = [1, 32], strides = [1, 1]} : vector<6x32xf32> to vector<1x32xf32>
    %249 = vector.extract_strided_slice %245 {offsets = [3, 0], sizes = [1, 32], strides = [1, 1]} : vector<6x32xf32> to vector<1x32xf32>
    %250 = vector.extract_strided_slice %245 {offsets = [4, 0], sizes = [1, 32], strides = [1, 1]} : vector<6x32xf32> to vector<1x32xf32>
    %251 = vector.extract_strided_slice %245 {offsets = [5, 0], sizes = [1, 32], strides = [1, 1]} : vector<6x32xf32> to vector<1x32xf32>
    %cst_142 = arith.constant dense<0.000000e+00> : vector<8xf32>
    %252 = vector.multi_reduction <add>, %243, %cst_142 [1] : vector<8x32xf32> to vector<8xf32>
    %253 = vector.shape_cast %252 : vector<8xf32> to vector<8x1xf32>
    %cst_143 = arith.constant 3.200000e+01 : f32
    %254 = vector.broadcast %cst_143 : f32 to vector<8x1xf32>
    %255 = arith.divf %253, %254 : vector<8x1xf32>
    %256 = arith.mulf %243, %243 : vector<8x32xf32>
    %cst_144 = arith.constant dense<0.000000e+00> : vector<8xf32>
    %257 = vector.multi_reduction <add>, %256, %cst_144 [1] : vector<8x32xf32> to vector<8xf32>
    %258 = vector.shape_cast %257 : vector<8xf32> to vector<8x1xf32>
    %cst_145 = arith.constant 3.200000e+01 : f32
    %259 = vector.broadcast %cst_145 : f32 to vector<8x1xf32>
    %260 = arith.divf %258, %259 : vector<8x1xf32>
    %261 = arith.mulf %255, %255 : vector<8x1xf32>
    %262 = arith.subf %260, %261 : vector<8x1xf32>
    %263 = vector.broadcast %255 : vector<8x1xf32> to vector<8x32xf32>
    %264 = arith.subf %243, %263 : vector<8x32xf32>
    %cst_146 = arith.constant 9.99999974E-6 : f32
    %265 = vector.broadcast %cst_146 : f32 to vector<8x1xf32>
    %266 = arith.addf %262, %265 : vector<8x1xf32>
    %267 = math.rsqrt %266 : vector<8x1xf32>
    %268 = vector.broadcast %267 : vector<8x1xf32> to vector<8x32xf32>
    %269 = arith.mulf %264, %268 : vector<8x32xf32>
    %270 = vector.broadcast %246 : vector<1x32xf32> to vector<8x32xf32>
    %271 = arith.mulf %269, %270 : vector<8x32xf32>
    %272 = vector.broadcast %247 : vector<1x32xf32> to vector<8x32xf32>
    %273 = arith.addf %271, %272 : vector<8x32xf32>
    %c12 = arith.constant 12 : index
    %c0_147 = arith.constant 0 : index
    %c0_148 = arith.constant 0 : index
    %274 = vector.load %arg3[%c12, %c0_147, %c0_148] : memref<24x32x8xf32, #tpu.memory_space<vmem>>, vector<1x32x8xf32>
    %275 = vector.shape_cast %274 : vector<1x32x8xf32> to vector<32x8xf32>
    %cst_149 = arith.constant dense<0.000000e+00> : vector<8x8xf32>
    %276 = tpu.matmul %273, %275, %cst_149 {dimension_numbers = #tpu.dot_dimension_numbers<[1], [0], [0], [1], [0, 0, 1, 1], [], []>} : vector<8x32xf32>, vector<32x8xf32>, vector<8x8xf32> -> vector<8x8xf32>
    %c12_150 = arith.constant 12 : index
    %c0_151 = arith.constant 0 : index
    %c0_152 = arith.constant 0 : index
    %277 = vector.load %arg4[%c12_150, %c0_151, %c0_152] : memref<24x1x8xf32, #tpu.memory_space<vmem>>, vector<1x1x8xf32>
    %278 = vector.shape_cast %277 : vector<1x1x8xf32> to vector<1x8xf32>
    %279 = vector.broadcast %278 : vector<1x8xf32> to vector<8x8xf32>
    %280 = arith.addf %276, %279 : vector<8x8xf32>
    %c13 = arith.constant 13 : index
    %c0_153 = arith.constant 0 : index
    %c0_154 = arith.constant 0 : index
    %281 = vector.load %arg3[%c13, %c0_153, %c0_154] : memref<24x32x8xf32, #tpu.memory_space<vmem>>, vector<1x32x8xf32>
    %282 = vector.shape_cast %281 : vector<1x32x8xf32> to vector<32x8xf32>
    %cst_155 = arith.constant dense<0.000000e+00> : vector<8x8xf32>
    %283 = tpu.matmul %273, %282, %cst_155 {dimension_numbers = #tpu.dot_dimension_numbers<[1], [0], [0], [1], [0, 0, 1, 1], [], []>} : vector<8x32xf32>, vector<32x8xf32>, vector<8x8xf32> -> vector<8x8xf32>
    %c13_156 = arith.constant 13 : index
    %c0_157 = arith.constant 0 : index
    %c0_158 = arith.constant 0 : index
    %284 = vector.load %arg4[%c13_156, %c0_157, %c0_158] : memref<24x1x8xf32, #tpu.memory_space<vmem>>, vector<1x1x8xf32>
    %285 = vector.shape_cast %284 : vector<1x1x8xf32> to vector<1x8xf32>
    %286 = vector.broadcast %285 : vector<1x8xf32> to vector<8x8xf32>
    %287 = arith.addf %283, %286 : vector<8x8xf32>
    %c14 = arith.constant 14 : index
    %c0_159 = arith.constant 0 : index
    %c0_160 = arith.constant 0 : index
    %288 = vector.load %arg3[%c14, %c0_159, %c0_160] : memref<24x32x8xf32, #tpu.memory_space<vmem>>, vector<1x32x8xf32>
    %289 = vector.shape_cast %288 : vector<1x32x8xf32> to vector<32x8xf32>
    %cst_161 = arith.constant dense<0.000000e+00> : vector<8x8xf32>
    %290 = tpu.matmul %273, %289, %cst_161 {dimension_numbers = #tpu.dot_dimension_numbers<[1], [0], [0], [1], [0, 0, 1, 1], [], []>} : vector<8x32xf32>, vector<32x8xf32>, vector<8x8xf32> -> vector<8x8xf32>
    %c14_162 = arith.constant 14 : index
    %c0_163 = arith.constant 0 : index
    %c0_164 = arith.constant 0 : index
    %291 = vector.load %arg4[%c14_162, %c0_163, %c0_164] : memref<24x1x8xf32, #tpu.memory_space<vmem>>, vector<1x1x8xf32>
    %292 = vector.shape_cast %291 : vector<1x1x8xf32> to vector<1x8xf32>
    %293 = vector.broadcast %292 : vector<1x8xf32> to vector<8x8xf32>
    %294 = arith.addf %290, %293 : vector<8x8xf32>
    %cst_165 = arith.constant dense<0.000000e+00> : vector<8x8xf32>
    %295 = tpu.matmul %280, %287, %cst_165 {dimension_numbers = #tpu.dot_dimension_numbers<[1], [1], [0], [0], [0, 0, 1, 0], [], []>} : vector<8x8xf32>, vector<8x8xf32>, vector<8x8xf32> -> vector<8x8xf32>
    %cst_166 = arith.constant 0.353553385 : f32
    %296 = vector.broadcast %cst_166 : f32 to vector<8x8xf32>
    %297 = arith.mulf %295, %296 : vector<8x8xf32>
    %298 = arith.addf %297, %3 : vector<8x8xf32>
    %cst_167 = arith.constant dense<0xFF800000> : vector<8xf32>
    %299 = vector.multi_reduction <maximumf>, %298, %cst_167 [1] : vector<8x8xf32> to vector<8xf32>
    %300 = vector.shape_cast %299 : vector<8xf32> to vector<8x1xf32>
    %301 = vector.broadcast %300 : vector<8x1xf32> to vector<8x8xf32>
    %302 = arith.subf %298, %301 : vector<8x8xf32>
    %303 = math.exp %302 : vector<8x8xf32>
    %cst_168 = arith.constant dense<0.000000e+00> : vector<8xf32>
    %304 = vector.multi_reduction <add>, %303, %cst_168 [1] : vector<8x8xf32> to vector<8xf32>
    %305 = vector.shape_cast %304 : vector<8xf32> to vector<8x1xf32>
    %306 = tpu.reciprocal %305 {approx = true} : vector<8x1xf32> -> vector<8x1xf32>
    %307 = vector.broadcast %306 : vector<8x1xf32> to vector<8x8xf32>
    %308 = arith.mulf %303, %307 : vector<8x8xf32>
    %cst_169 = arith.constant dense<0.000000e+00> : vector<8x8xf32>
    %309 = tpu.matmul %308, %294, %cst_169 {dimension_numbers = #tpu.dot_dimension_numbers<[1], [0], [0], [1], [0, 0, 1, 1], [], []>} : vector<8x8xf32>, vector<8x8xf32>, vector<8x8xf32> -> vector<8x8xf32>
    %c1_170 = arith.constant 1 : index
    %c0_171 = arith.constant 0 : index
    %c0_172 = arith.constant 0 : index
    %310 = vector.load %arg5[%c1_170, %c0_171, %c0_172] : memref<2x32x32xf32, #tpu.memory_space<vmem>>, vector<1x8x32xf32>
    %311 = vector.shape_cast %310 : vector<1x8x32xf32> to vector<8x32xf32>
    %cst_173 = arith.constant dense<0.000000e+00> : vector<8x32xf32>
    %312 = tpu.matmul %309, %311, %cst_173 {dimension_numbers = #tpu.dot_dimension_numbers<[1], [0], [0], [1], [0, 0, 1, 1], [], []>} : vector<8x8xf32>, vector<8x32xf32>, vector<8x32xf32> -> vector<8x32xf32>
    %c15 = arith.constant 15 : index
    %c0_174 = arith.constant 0 : index
    %c0_175 = arith.constant 0 : index
    %313 = vector.load %arg3[%c15, %c0_174, %c0_175] : memref<24x32x8xf32, #tpu.memory_space<vmem>>, vector<1x32x8xf32>
    %314 = vector.shape_cast %313 : vector<1x32x8xf32> to vector<32x8xf32>
    %cst_176 = arith.constant dense<0.000000e+00> : vector<8x8xf32>
    %315 = tpu.matmul %273, %314, %cst_176 {dimension_numbers = #tpu.dot_dimension_numbers<[1], [0], [0], [1], [0, 0, 1, 1], [], []>} : vector<8x32xf32>, vector<32x8xf32>, vector<8x8xf32> -> vector<8x8xf32>
    %c15_177 = arith.constant 15 : index
    %c0_178 = arith.constant 0 : index
    %c0_179 = arith.constant 0 : index
    %316 = vector.load %arg4[%c15_177, %c0_178, %c0_179] : memref<24x1x8xf32, #tpu.memory_space<vmem>>, vector<1x1x8xf32>
    %317 = vector.shape_cast %316 : vector<1x1x8xf32> to vector<1x8xf32>
    %318 = vector.broadcast %317 : vector<1x8xf32> to vector<8x8xf32>
    %319 = arith.addf %315, %318 : vector<8x8xf32>
    %c16_180 = arith.constant 16 : index
    %c0_181 = arith.constant 0 : index
    %c0_182 = arith.constant 0 : index
    %320 = vector.load %arg3[%c16_180, %c0_181, %c0_182] : memref<24x32x8xf32, #tpu.memory_space<vmem>>, vector<1x32x8xf32>
    %321 = vector.shape_cast %320 : vector<1x32x8xf32> to vector<32x8xf32>
    %cst_183 = arith.constant dense<0.000000e+00> : vector<8x8xf32>
    %322 = tpu.matmul %273, %321, %cst_183 {dimension_numbers = #tpu.dot_dimension_numbers<[1], [0], [0], [1], [0, 0, 1, 1], [], []>} : vector<8x32xf32>, vector<32x8xf32>, vector<8x8xf32> -> vector<8x8xf32>
    %c16_184 = arith.constant 16 : index
    %c0_185 = arith.constant 0 : index
    %c0_186 = arith.constant 0 : index
    %323 = vector.load %arg4[%c16_184, %c0_185, %c0_186] : memref<24x1x8xf32, #tpu.memory_space<vmem>>, vector<1x1x8xf32>
    %324 = vector.shape_cast %323 : vector<1x1x8xf32> to vector<1x8xf32>
    %325 = vector.broadcast %324 : vector<1x8xf32> to vector<8x8xf32>
    %326 = arith.addf %322, %325 : vector<8x8xf32>
    %c17 = arith.constant 17 : index
    %c0_187 = arith.constant 0 : index
    %c0_188 = arith.constant 0 : index
    %327 = vector.load %arg3[%c17, %c0_187, %c0_188] : memref<24x32x8xf32, #tpu.memory_space<vmem>>, vector<1x32x8xf32>
    %328 = vector.shape_cast %327 : vector<1x32x8xf32> to vector<32x8xf32>
    %cst_189 = arith.constant dense<0.000000e+00> : vector<8x8xf32>
    %329 = tpu.matmul %273, %328, %cst_189 {dimension_numbers = #tpu.dot_dimension_numbers<[1], [0], [0], [1], [0, 0, 1, 1], [], []>} : vector<8x32xf32>, vector<32x8xf32>, vector<8x8xf32> -> vector<8x8xf32>
    %c17_190 = arith.constant 17 : index
    %c0_191 = arith.constant 0 : index
    %c0_192 = arith.constant 0 : index
    %330 = vector.load %arg4[%c17_190, %c0_191, %c0_192] : memref<24x1x8xf32, #tpu.memory_space<vmem>>, vector<1x1x8xf32>
    %331 = vector.shape_cast %330 : vector<1x1x8xf32> to vector<1x8xf32>
    %332 = vector.broadcast %331 : vector<1x8xf32> to vector<8x8xf32>
    %333 = arith.addf %329, %332 : vector<8x8xf32>
    %cst_193 = arith.constant dense<0.000000e+00> : vector<8x8xf32>
    %334 = tpu.matmul %319, %326, %cst_193 {dimension_numbers = #tpu.dot_dimension_numbers<[1], [1], [0], [0], [0, 0, 1, 0], [], []>} : vector<8x8xf32>, vector<8x8xf32>, vector<8x8xf32> -> vector<8x8xf32>
    %cst_194 = arith.constant 0.353553385 : f32
    %335 = vector.broadcast %cst_194 : f32 to vector<8x8xf32>
    %336 = arith.mulf %334, %335 : vector<8x8xf32>
    %337 = arith.addf %336, %3 : vector<8x8xf32>
    %cst_195 = arith.constant dense<0xFF800000> : vector<8xf32>
    %338 = vector.multi_reduction <maximumf>, %337, %cst_195 [1] : vector<8x8xf32> to vector<8xf32>
    %339 = vector.shape_cast %338 : vector<8xf32> to vector<8x1xf32>
    %340 = vector.broadcast %339 : vector<8x1xf32> to vector<8x8xf32>
    %341 = arith.subf %337, %340 : vector<8x8xf32>
    %342 = math.exp %341 : vector<8x8xf32>
    %cst_196 = arith.constant dense<0.000000e+00> : vector<8xf32>
    %343 = vector.multi_reduction <add>, %342, %cst_196 [1] : vector<8x8xf32> to vector<8xf32>
    %344 = vector.shape_cast %343 : vector<8xf32> to vector<8x1xf32>
    %345 = tpu.reciprocal %344 {approx = true} : vector<8x1xf32> -> vector<8x1xf32>
    %346 = vector.broadcast %345 : vector<8x1xf32> to vector<8x8xf32>
    %347 = arith.mulf %342, %346 : vector<8x8xf32>
    %cst_197 = arith.constant dense<0.000000e+00> : vector<8x8xf32>
    %348 = tpu.matmul %347, %333, %cst_197 {dimension_numbers = #tpu.dot_dimension_numbers<[1], [0], [0], [1], [0, 0, 1, 1], [], []>} : vector<8x8xf32>, vector<8x8xf32>, vector<8x8xf32> -> vector<8x8xf32>
    %c1_198 = arith.constant 1 : index
    %c8_199 = arith.constant 8 : index
    %c0_200 = arith.constant 0 : index
    %349 = vector.load %arg5[%c1_198, %c8_199, %c0_200] : memref<2x32x32xf32, #tpu.memory_space<vmem>>, vector<1x8x32xf32>
    %350 = vector.shape_cast %349 : vector<1x8x32xf32> to vector<8x32xf32>
    %cst_201 = arith.constant dense<0.000000e+00> : vector<8x32xf32>
    %351 = tpu.matmul %348, %350, %cst_201 {dimension_numbers = #tpu.dot_dimension_numbers<[1], [0], [0], [1], [0, 0, 1, 1], [], []>} : vector<8x8xf32>, vector<8x32xf32>, vector<8x32xf32> -> vector<8x32xf32>
    %352 = arith.addf %312, %351 : vector<8x32xf32>
    %c18 = arith.constant 18 : index
    %c0_202 = arith.constant 0 : index
    %c0_203 = arith.constant 0 : index
    %353 = vector.load %arg3[%c18, %c0_202, %c0_203] : memref<24x32x8xf32, #tpu.memory_space<vmem>>, vector<1x32x8xf32>
    %354 = vector.shape_cast %353 : vector<1x32x8xf32> to vector<32x8xf32>
    %cst_204 = arith.constant dense<0.000000e+00> : vector<8x8xf32>
    %355 = tpu.matmul %273, %354, %cst_204 {dimension_numbers = #tpu.dot_dimension_numbers<[1], [0], [0], [1], [0, 0, 1, 1], [], []>} : vector<8x32xf32>, vector<32x8xf32>, vector<8x8xf32> -> vector<8x8xf32>
    %c18_205 = arith.constant 18 : index
    %c0_206 = arith.constant 0 : index
    %c0_207 = arith.constant 0 : index
    %356 = vector.load %arg4[%c18_205, %c0_206, %c0_207] : memref<24x1x8xf32, #tpu.memory_space<vmem>>, vector<1x1x8xf32>
    %357 = vector.shape_cast %356 : vector<1x1x8xf32> to vector<1x8xf32>
    %358 = vector.broadcast %357 : vector<1x8xf32> to vector<8x8xf32>
    %359 = arith.addf %355, %358 : vector<8x8xf32>
    %c19 = arith.constant 19 : index
    %c0_208 = arith.constant 0 : index
    %c0_209 = arith.constant 0 : index
    %360 = vector.load %arg3[%c19, %c0_208, %c0_209] : memref<24x32x8xf32, #tpu.memory_space<vmem>>, vector<1x32x8xf32>
    %361 = vector.shape_cast %360 : vector<1x32x8xf32> to vector<32x8xf32>
    %cst_210 = arith.constant dense<0.000000e+00> : vector<8x8xf32>
    %362 = tpu.matmul %273, %361, %cst_210 {dimension_numbers = #tpu.dot_dimension_numbers<[1], [0], [0], [1], [0, 0, 1, 1], [], []>} : vector<8x32xf32>, vector<32x8xf32>, vector<8x8xf32> -> vector<8x8xf32>
    %c19_211 = arith.constant 19 : index
    %c0_212 = arith.constant 0 : index
    %c0_213 = arith.constant 0 : index
    %363 = vector.load %arg4[%c19_211, %c0_212, %c0_213] : memref<24x1x8xf32, #tpu.memory_space<vmem>>, vector<1x1x8xf32>
    %364 = vector.shape_cast %363 : vector<1x1x8xf32> to vector<1x8xf32>
    %365 = vector.broadcast %364 : vector<1x8xf32> to vector<8x8xf32>
    %366 = arith.addf %362, %365 : vector<8x8xf32>
    %c20 = arith.constant 20 : index
    %c0_214 = arith.constant 0 : index
    %c0_215 = arith.constant 0 : index
    %367 = vector.load %arg3[%c20, %c0_214, %c0_215] : memref<24x32x8xf32, #tpu.memory_space<vmem>>, vector<1x32x8xf32>
    %368 = vector.shape_cast %367 : vector<1x32x8xf32> to vector<32x8xf32>
    %cst_216 = arith.constant dense<0.000000e+00> : vector<8x8xf32>
    %369 = tpu.matmul %273, %368, %cst_216 {dimension_numbers = #tpu.dot_dimension_numbers<[1], [0], [0], [1], [0, 0, 1, 1], [], []>} : vector<8x32xf32>, vector<32x8xf32>, vector<8x8xf32> -> vector<8x8xf32>
    %c20_217 = arith.constant 20 : index
    %c0_218 = arith.constant 0 : index
    %c0_219 = arith.constant 0 : index
    %370 = vector.load %arg4[%c20_217, %c0_218, %c0_219] : memref<24x1x8xf32, #tpu.memory_space<vmem>>, vector<1x1x8xf32>
    %371 = vector.shape_cast %370 : vector<1x1x8xf32> to vector<1x8xf32>
    %372 = vector.broadcast %371 : vector<1x8xf32> to vector<8x8xf32>
    %373 = arith.addf %369, %372 : vector<8x8xf32>
    %cst_220 = arith.constant dense<0.000000e+00> : vector<8x8xf32>
    %374 = tpu.matmul %359, %366, %cst_220 {dimension_numbers = #tpu.dot_dimension_numbers<[1], [1], [0], [0], [0, 0, 1, 0], [], []>} : vector<8x8xf32>, vector<8x8xf32>, vector<8x8xf32> -> vector<8x8xf32>
    %cst_221 = arith.constant 0.353553385 : f32
    %375 = vector.broadcast %cst_221 : f32 to vector<8x8xf32>
    %376 = arith.mulf %374, %375 : vector<8x8xf32>
    %377 = arith.addf %376, %3 : vector<8x8xf32>
    %cst_222 = arith.constant dense<0xFF800000> : vector<8xf32>
    %378 = vector.multi_reduction <maximumf>, %377, %cst_222 [1] : vector<8x8xf32> to vector<8xf32>
    %379 = vector.shape_cast %378 : vector<8xf32> to vector<8x1xf32>
    %380 = vector.broadcast %379 : vector<8x1xf32> to vector<8x8xf32>
    %381 = arith.subf %377, %380 : vector<8x8xf32>
    %382 = math.exp %381 : vector<8x8xf32>
    %cst_223 = arith.constant dense<0.000000e+00> : vector<8xf32>
    %383 = vector.multi_reduction <add>, %382, %cst_223 [1] : vector<8x8xf32> to vector<8xf32>
    %384 = vector.shape_cast %383 : vector<8xf32> to vector<8x1xf32>
    %385 = tpu.reciprocal %384 {approx = true} : vector<8x1xf32> -> vector<8x1xf32>
    %386 = vector.broadcast %385 : vector<8x1xf32> to vector<8x8xf32>
    %387 = arith.mulf %382, %386 : vector<8x8xf32>
    %cst_224 = arith.constant dense<0.000000e+00> : vector<8x8xf32>
    %388 = tpu.matmul %387, %373, %cst_224 {dimension_numbers = #tpu.dot_dimension_numbers<[1], [0], [0], [1], [0, 0, 1, 1], [], []>} : vector<8x8xf32>, vector<8x8xf32>, vector<8x8xf32> -> vector<8x8xf32>
    %c1_225 = arith.constant 1 : index
    %c16_226 = arith.constant 16 : index
    %c0_227 = arith.constant 0 : index
    %389 = vector.load %arg5[%c1_225, %c16_226, %c0_227] : memref<2x32x32xf32, #tpu.memory_space<vmem>>, vector<1x8x32xf32>
    %390 = vector.shape_cast %389 : vector<1x8x32xf32> to vector<8x32xf32>
    %cst_228 = arith.constant dense<0.000000e+00> : vector<8x32xf32>
    %391 = tpu.matmul %388, %390, %cst_228 {dimension_numbers = #tpu.dot_dimension_numbers<[1], [0], [0], [1], [0, 0, 1, 1], [], []>} : vector<8x8xf32>, vector<8x32xf32>, vector<8x32xf32> -> vector<8x32xf32>
    %392 = arith.addf %352, %391 : vector<8x32xf32>
    %c21 = arith.constant 21 : index
    %c0_229 = arith.constant 0 : index
    %c0_230 = arith.constant 0 : index
    %393 = vector.load %arg3[%c21, %c0_229, %c0_230] : memref<24x32x8xf32, #tpu.memory_space<vmem>>, vector<1x32x8xf32>
    %394 = vector.shape_cast %393 : vector<1x32x8xf32> to vector<32x8xf32>
    %cst_231 = arith.constant dense<0.000000e+00> : vector<8x8xf32>
    %395 = tpu.matmul %273, %394, %cst_231 {dimension_numbers = #tpu.dot_dimension_numbers<[1], [0], [0], [1], [0, 0, 1, 1], [], []>} : vector<8x32xf32>, vector<32x8xf32>, vector<8x8xf32> -> vector<8x8xf32>
    %c21_232 = arith.constant 21 : index
    %c0_233 = arith.constant 0 : index
    %c0_234 = arith.constant 0 : index
    %396 = vector.load %arg4[%c21_232, %c0_233, %c0_234] : memref<24x1x8xf32, #tpu.memory_space<vmem>>, vector<1x1x8xf32>
    %397 = vector.shape_cast %396 : vector<1x1x8xf32> to vector<1x8xf32>
    %398 = vector.broadcast %397 : vector<1x8xf32> to vector<8x8xf32>
    %399 = arith.addf %395, %398 : vector<8x8xf32>
    %c22 = arith.constant 22 : index
    %c0_235 = arith.constant 0 : index
    %c0_236 = arith.constant 0 : index
    %400 = vector.load %arg3[%c22, %c0_235, %c0_236] : memref<24x32x8xf32, #tpu.memory_space<vmem>>, vector<1x32x8xf32>
    %401 = vector.shape_cast %400 : vector<1x32x8xf32> to vector<32x8xf32>
    %cst_237 = arith.constant dense<0.000000e+00> : vector<8x8xf32>
    %402 = tpu.matmul %273, %401, %cst_237 {dimension_numbers = #tpu.dot_dimension_numbers<[1], [0], [0], [1], [0, 0, 1, 1], [], []>} : vector<8x32xf32>, vector<32x8xf32>, vector<8x8xf32> -> vector<8x8xf32>
    %c22_238 = arith.constant 22 : index
    %c0_239 = arith.constant 0 : index
    %c0_240 = arith.constant 0 : index
    %403 = vector.load %arg4[%c22_238, %c0_239, %c0_240] : memref<24x1x8xf32, #tpu.memory_space<vmem>>, vector<1x1x8xf32>
    %404 = vector.shape_cast %403 : vector<1x1x8xf32> to vector<1x8xf32>
    %405 = vector.broadcast %404 : vector<1x8xf32> to vector<8x8xf32>
    %406 = arith.addf %402, %405 : vector<8x8xf32>
    %c23 = arith.constant 23 : index
    %c0_241 = arith.constant 0 : index
    %c0_242 = arith.constant 0 : index
    %407 = vector.load %arg3[%c23, %c0_241, %c0_242] : memref<24x32x8xf32, #tpu.memory_space<vmem>>, vector<1x32x8xf32>
    %408 = vector.shape_cast %407 : vector<1x32x8xf32> to vector<32x8xf32>
    %cst_243 = arith.constant dense<0.000000e+00> : vector<8x8xf32>
    %409 = tpu.matmul %273, %408, %cst_243 {dimension_numbers = #tpu.dot_dimension_numbers<[1], [0], [0], [1], [0, 0, 1, 1], [], []>} : vector<8x32xf32>, vector<32x8xf32>, vector<8x8xf32> -> vector<8x8xf32>
    %c23_244 = arith.constant 23 : index
    %c0_245 = arith.constant 0 : index
    %c0_246 = arith.constant 0 : index
    %410 = vector.load %arg4[%c23_244, %c0_245, %c0_246] : memref<24x1x8xf32, #tpu.memory_space<vmem>>, vector<1x1x8xf32>
    %411 = vector.shape_cast %410 : vector<1x1x8xf32> to vector<1x8xf32>
    %412 = vector.broadcast %411 : vector<1x8xf32> to vector<8x8xf32>
    %413 = arith.addf %409, %412 : vector<8x8xf32>
    %cst_247 = arith.constant dense<0.000000e+00> : vector<8x8xf32>
    %414 = tpu.matmul %399, %406, %cst_247 {dimension_numbers = #tpu.dot_dimension_numbers<[1], [1], [0], [0], [0, 0, 1, 0], [], []>} : vector<8x8xf32>, vector<8x8xf32>, vector<8x8xf32> -> vector<8x8xf32>
    %cst_248 = arith.constant 0.353553385 : f32
    %415 = vector.broadcast %cst_248 : f32 to vector<8x8xf32>
    %416 = arith.mulf %414, %415 : vector<8x8xf32>
    %417 = arith.addf %416, %3 : vector<8x8xf32>
    %cst_249 = arith.constant dense<0xFF800000> : vector<8xf32>
    %418 = vector.multi_reduction <maximumf>, %417, %cst_249 [1] : vector<8x8xf32> to vector<8xf32>
    %419 = vector.shape_cast %418 : vector<8xf32> to vector<8x1xf32>
    %420 = vector.broadcast %419 : vector<8x1xf32> to vector<8x8xf32>
    %421 = arith.subf %417, %420 : vector<8x8xf32>
    %422 = math.exp %421 : vector<8x8xf32>
    %cst_250 = arith.constant dense<0.000000e+00> : vector<8xf32>
    %423 = vector.multi_reduction <add>, %422, %cst_250 [1] : vector<8x8xf32> to vector<8xf32>
    %424 = vector.shape_cast %423 : vector<8xf32> to vector<8x1xf32>
    %425 = tpu.reciprocal %424 {approx = true} : vector<8x1xf32> -> vector<8x1xf32>
    %426 = vector.broadcast %425 : vector<8x1xf32> to vector<8x8xf32>
    %427 = arith.mulf %422, %426 : vector<8x8xf32>
    %cst_251 = arith.constant dense<0.000000e+00> : vector<8x8xf32>
    %428 = tpu.matmul %427, %413, %cst_251 {dimension_numbers = #tpu.dot_dimension_numbers<[1], [0], [0], [1], [0, 0, 1, 1], [], []>} : vector<8x8xf32>, vector<8x8xf32>, vector<8x8xf32> -> vector<8x8xf32>
    %c1_252 = arith.constant 1 : index
    %c24_253 = arith.constant 24 : index
    %c0_254 = arith.constant 0 : index
    %429 = vector.load %arg5[%c1_252, %c24_253, %c0_254] : memref<2x32x32xf32, #tpu.memory_space<vmem>>, vector<1x8x32xf32>
    %430 = vector.shape_cast %429 : vector<1x8x32xf32> to vector<8x32xf32>
    %cst_255 = arith.constant dense<0.000000e+00> : vector<8x32xf32>
    %431 = tpu.matmul %428, %430, %cst_255 {dimension_numbers = #tpu.dot_dimension_numbers<[1], [0], [0], [1], [0, 0, 1, 1], [], []>} : vector<8x8xf32>, vector<8x32xf32>, vector<8x32xf32> -> vector<8x32xf32>
    %432 = arith.addf %392, %431 : vector<8x32xf32>
    %433 = arith.addf %243, %432 : vector<8x32xf32>
    %434 = vector.broadcast %250 : vector<1x32xf32> to vector<8x32xf32>
    %435 = arith.addf %433, %434 : vector<8x32xf32>
    %cst_256 = arith.constant dense<0.000000e+00> : vector<8xf32>
    %436 = vector.multi_reduction <add>, %435, %cst_256 [1] : vector<8x32xf32> to vector<8xf32>
    %437 = vector.shape_cast %436 : vector<8xf32> to vector<8x1xf32>
    %cst_257 = arith.constant 3.200000e+01 : f32
    %438 = vector.broadcast %cst_257 : f32 to vector<8x1xf32>
    %439 = arith.divf %437, %438 : vector<8x1xf32>
    %440 = arith.mulf %435, %435 : vector<8x32xf32>
    %cst_258 = arith.constant dense<0.000000e+00> : vector<8xf32>
    %441 = vector.multi_reduction <add>, %440, %cst_258 [1] : vector<8x32xf32> to vector<8xf32>
    %442 = vector.shape_cast %441 : vector<8xf32> to vector<8x1xf32>
    %cst_259 = arith.constant 3.200000e+01 : f32
    %443 = vector.broadcast %cst_259 : f32 to vector<8x1xf32>
    %444 = arith.divf %442, %443 : vector<8x1xf32>
    %445 = arith.mulf %439, %439 : vector<8x1xf32>
    %446 = arith.subf %444, %445 : vector<8x1xf32>
    %447 = vector.broadcast %439 : vector<8x1xf32> to vector<8x32xf32>
    %448 = arith.subf %435, %447 : vector<8x32xf32>
    %cst_260 = arith.constant 9.99999974E-6 : f32
    %449 = vector.broadcast %cst_260 : f32 to vector<8x1xf32>
    %450 = arith.addf %446, %449 : vector<8x1xf32>
    %451 = math.rsqrt %450 : vector<8x1xf32>
    %452 = vector.broadcast %451 : vector<8x1xf32> to vector<8x32xf32>
    %453 = arith.mulf %448, %452 : vector<8x32xf32>
    %454 = vector.broadcast %248 : vector<1x32xf32> to vector<8x32xf32>
    %455 = arith.mulf %453, %454 : vector<8x32xf32>
    %456 = vector.broadcast %249 : vector<1x32xf32> to vector<8x32xf32>
    %457 = arith.addf %455, %456 : vector<8x32xf32>
    %c1_261 = arith.constant 1 : index
    %c0_262 = arith.constant 0 : index
    %c0_263 = arith.constant 0 : index
    %458 = vector.load %arg6[%c1_261, %c0_262, %c0_263] : memref<2x32x128xf32, #tpu.memory_space<vmem>>, vector<1x32x128xf32>
    %459 = vector.shape_cast %458 : vector<1x32x128xf32> to vector<32x128xf32>
    %cst_264 = arith.constant dense<0.000000e+00> : vector<8x128xf32>
    %460 = tpu.matmul %457, %459, %cst_264 {dimension_numbers = #tpu.dot_dimension_numbers<[1], [0], [0], [1], [0, 0, 1, 1], [], []>} : vector<8x32xf32>, vector<32x128xf32>, vector<8x128xf32> -> vector<8x128xf32>
    %c1_265 = arith.constant 1 : index
    %c0_266 = arith.constant 0 : index
    %c0_267 = arith.constant 0 : index
    %461 = vector.load %arg7[%c1_265, %c0_266, %c0_267] : memref<2x1x128xf32, #tpu.memory_space<vmem>>, vector<1x1x128xf32>
    %462 = vector.shape_cast %461 : vector<1x1x128xf32> to vector<1x128xf32>
    %463 = vector.broadcast %462 : vector<1x128xf32> to vector<8x128xf32>
    %464 = arith.addf %460, %463 : vector<8x128xf32>
    %cst_268 = arith.constant 5.000000e-01 : f32
    %465 = vector.broadcast %cst_268 : f32 to vector<8x128xf32>
    %466 = arith.mulf %465, %464 : vector<8x128xf32>
    %cst_269 = arith.constant 4.471500e-02 : f32
    %467 = vector.broadcast %cst_269 : f32 to vector<8x128xf32>
    %468 = arith.mulf %467, %464 : vector<8x128xf32>
    %469 = arith.mulf %468, %464 : vector<8x128xf32>
    %470 = arith.mulf %469, %464 : vector<8x128xf32>
    %471 = arith.addf %464, %470 : vector<8x128xf32>
    %cst_270 = arith.constant 0.797884583 : f32
    %472 = vector.broadcast %cst_270 : f32 to vector<8x128xf32>
    %473 = arith.mulf %472, %471 : vector<8x128xf32>
    %474 = math.tanh %473 : vector<8x128xf32>
    %cst_271 = arith.constant 1.000000e+00 : f32
    %475 = vector.broadcast %cst_271 : f32 to vector<8x128xf32>
    %476 = arith.addf %475, %474 : vector<8x128xf32>
    %477 = arith.mulf %466, %476 : vector<8x128xf32>
    %c1_272 = arith.constant 1 : index
    %c0_273 = arith.constant 0 : index
    %c0_274 = arith.constant 0 : index
    %478 = vector.load %arg8[%c1_272, %c0_273, %c0_274] : memref<2x128x32xf32, #tpu.memory_space<vmem>>, vector<1x128x32xf32>
    %479 = vector.shape_cast %478 : vector<1x128x32xf32> to vector<128x32xf32>
    %cst_275 = arith.constant dense<0.000000e+00> : vector<8x32xf32>
    %480 = tpu.matmul %477, %479, %cst_275 {dimension_numbers = #tpu.dot_dimension_numbers<[1], [0], [0], [1], [0, 0, 1, 1], [], []>} : vector<8x128xf32>, vector<128x32xf32>, vector<8x32xf32> -> vector<8x32xf32>
    %481 = arith.addf %435, %480 : vector<8x32xf32>
    %482 = vector.broadcast %251 : vector<1x32xf32> to vector<8x32xf32>
    %483 = arith.addf %481, %482 : vector<8x32xf32>
    %c0_276 = arith.constant 0 : index
    %c0_277 = arith.constant 0 : index
    %484 = vector.load %arg10[%c0_276, %c0_277] : memref<4x32xf32, #tpu.memory_space<vmem>>, vector<4x32xf32>
    %485 = vector.extract_strided_slice %484 {offsets = [0, 0], sizes = [1, 32], strides = [1, 1]} : vector<4x32xf32> to vector<1x32xf32>
    %486 = vector.extract_strided_slice %484 {offsets = [1, 0], sizes = [1, 32], strides = [1, 1]} : vector<4x32xf32> to vector<1x32xf32>
    %cst_278 = arith.constant dense<0.000000e+00> : vector<8xf32>
    %487 = vector.multi_reduction <add>, %483, %cst_278 [1] : vector<8x32xf32> to vector<8xf32>
    %488 = vector.shape_cast %487 : vector<8xf32> to vector<8x1xf32>
    %cst_279 = arith.constant 3.200000e+01 : f32
    %489 = vector.broadcast %cst_279 : f32 to vector<8x1xf32>
    %490 = arith.divf %488, %489 : vector<8x1xf32>
    %491 = arith.mulf %483, %483 : vector<8x32xf32>
    %cst_280 = arith.constant dense<0.000000e+00> : vector<8xf32>
    %492 = vector.multi_reduction <add>, %491, %cst_280 [1] : vector<8x32xf32> to vector<8xf32>
    %493 = vector.shape_cast %492 : vector<8xf32> to vector<8x1xf32>
    %cst_281 = arith.constant 3.200000e+01 : f32
    %494 = vector.broadcast %cst_281 : f32 to vector<8x1xf32>
    %495 = arith.divf %493, %494 : vector<8x1xf32>
    %496 = arith.mulf %490, %490 : vector<8x1xf32>
    %497 = arith.subf %495, %496 : vector<8x1xf32>
    %498 = vector.broadcast %490 : vector<8x1xf32> to vector<8x32xf32>
    %499 = arith.subf %483, %498 : vector<8x32xf32>
    %cst_282 = arith.constant 9.99999974E-6 : f32
    %500 = vector.broadcast %cst_282 : f32 to vector<8x1xf32>
    %501 = arith.addf %497, %500 : vector<8x1xf32>
    %502 = math.rsqrt %501 : vector<8x1xf32>
    %503 = vector.broadcast %502 : vector<8x1xf32> to vector<8x32xf32>
    %504 = arith.mulf %499, %503 : vector<8x32xf32>
    %505 = vector.broadcast %485 : vector<1x32xf32> to vector<8x32xf32>
    %506 = arith.mulf %504, %505 : vector<8x32xf32>
    %507 = vector.broadcast %486 : vector<1x32xf32> to vector<8x32xf32>
    %508 = arith.addf %506, %507 : vector<8x32xf32>
    %509 = vector.extract_strided_slice %508 {offsets = [7, 0], sizes = [1, 32], strides = [1, 1]} : vector<8x32xf32> to vector<1x32xf32>
    %510 = vector.extract_strided_slice %484 {offsets = [2, 0], sizes = [1, 32], strides = [1, 1]} : vector<4x32xf32> to vector<1x32xf32>
    %511 = arith.mulf %509, %510 : vector<1x32xf32>
    %cst_283 = arith.constant dense<0.000000e+00> : vector<1xf32>
    %512 = vector.multi_reduction <add>, %511, %cst_283 [1] : vector<1x32xf32> to vector<1xf32>
    %513 = vector.shape_cast %512 : vector<1xf32> to vector<1x1xf32>
    %514 = vector.extract_strided_slice %484 {offsets = [3, 0], sizes = [1, 1], strides = [1, 1]} : vector<4x32xf32> to vector<1x1xf32>
    %515 = arith.addf %513, %514 : vector<1x1xf32>
    %c0_284 = arith.constant 0 : index
    %c0_285 = arith.constant 0 : index
    %c0_286 = arith.constant 0 : index
    %516 = vector.load %arg11[%c0_284, %c0_285, %c0_286] : memref<1x1x1xf32, #tpu.memory_space<vmem>>, vector<1x1x1xf32>
    %517 = vector.shape_cast %516 : vector<1x1x1xf32> to vector<1x1xf32>
    %518 = vector.shape_cast %515 : vector<1x1xf32> to vector<1x1x1xf32>
    tpu.vector_store %arg11[%c0_284, %c0_285, %c0_286], %518 {strides = array<i32>} : memref<1x1x1xf32, #tpu.memory_space<vmem>>, vector<1x1x1xf32>,
    return
  }
  func.func @transform_0(%arg0: i32) -> (i32, i32, i32) {
    %c0_i32 = arith.constant 0 : i32
    %c0_i32_0 = arith.constant 0 : i32
    %c0_i32_1 = arith.constant 0 : i32
    return %arg0, %c0_i32, %c0_i32_0 : i32, i32, i32
  }
  func.func @transform_1(%arg0: i32) -> (i32, i32, i32) {
    %c0_i32 = arith.constant 0 : i32
    %c0_i32_0 = arith.constant 0 : i32
    %c0_i32_1 = arith.constant 0 : i32
    return %arg0, %c0_i32, %c0_i32_0 : i32, i32, i32
  }
  func.func @transform_2(%arg0: i32) -> (i32, i32, i32) {
    %c0_i32 = arith.constant 0 : i32
    %c0_i32_0 = arith.constant 0 : i32
    %c0_i32_1 = arith.constant 0 : i32
    %c0_i32_2 = arith.constant 0 : i32
    return %c0_i32, %c0_i32_0, %c0_i32_1 : i32, i32, i32
  }
  func.func @transform_3(%arg0: i32) -> (i32, i32, i32) {
    %c0_i32 = arith.constant 0 : i32
    %c0_i32_0 = arith.constant 0 : i32
    %c0_i32_1 = arith.constant 0 : i32
    %c0_i32_2 = arith.constant 0 : i32
    return %c0_i32, %c0_i32_0, %c0_i32_1 : i32, i32, i32
  }
  func.func @transform_4(%arg0: i32) -> (i32, i32, i32) {
    %c0_i32 = arith.constant 0 : i32
    %c0_i32_0 = arith.constant 0 : i32
    %c0_i32_1 = arith.constant 0 : i32
    %c0_i32_2 = arith.constant 0 : i32
    return %c0_i32, %c0_i32_0, %c0_i32_1 : i32, i32, i32
  }
  func.func @transform_5(%arg0: i32) -> (i32, i32, i32) {
    %c0_i32 = arith.constant 0 : i32
    %c0_i32_0 = arith.constant 0 : i32
    %c0_i32_1 = arith.constant 0 : i32
    %c0_i32_2 = arith.constant 0 : i32
    return %c0_i32, %c0_i32_0, %c0_i32_1 : i32, i32, i32
  }
  func.func @transform_6(%arg0: i32) -> (i32, i32, i32) {
    %c0_i32 = arith.constant 0 : i32
    %c0_i32_0 = arith.constant 0 : i32
    %c0_i32_1 = arith.constant 0 : i32
    %c0_i32_2 = arith.constant 0 : i32
    return %c0_i32, %c0_i32_0, %c0_i32_1 : i32, i32, i32
  }
  func.func @transform_7(%arg0: i32) -> (i32, i32, i32) {
    %c0_i32 = arith.constant 0 : i32
    %c0_i32_0 = arith.constant 0 : i32
    %c0_i32_1 = arith.constant 0 : i32
    %c0_i32_2 = arith.constant 0 : i32
    return %c0_i32, %c0_i32_0, %c0_i32_1 : i32, i32, i32
  }
  func.func @transform_8(%arg0: i32) -> (i32, i32, i32) {
    %c0_i32 = arith.constant 0 : i32
    %c0_i32_0 = arith.constant 0 : i32
    %c0_i32_1 = arith.constant 0 : i32
    %c0_i32_2 = arith.constant 0 : i32
    return %c0_i32, %c0_i32_0, %c0_i32_1 : i32, i32, i32
  }
  func.func @transform_9(%arg0: i32) -> (i32, i32) {
    %c0_i32 = arith.constant 0 : i32
    %c0_i32_0 = arith.constant 0 : i32
    %c0_i32_1 = arith.constant 0 : i32
    return %c0_i32, %c0_i32_0 : i32, i32
  }
  func.func @transform_10(%arg0: i32) -> (i32, i32, i32) {
    %c0_i32 = arith.constant 0 : i32
    %c0_i32_0 = arith.constant 0 : i32
    %c0_i32_1 = arith.constant 0 : i32
    return %arg0, %c0_i32, %c0_i32_0 : i32, i32, i32
  }
}

</mosaic_0001>

<llo_original>
// kernel: gpt2_regressor_forward.1
$region0: #{gpt2_regressor_forward.1}
  #allocation0 [shape = 'u32[]', space=smem, size = 0x4, offset = 0x4, fixed_abs, tag = 'smem constant byte address 0x4 - core index']
  #allocation1 [shape = 'u32[144,128]{1,0:T(1,128)}', space=vmem, size = 0x12000, scoped, tag = 'internal scratch']
  %s0 = inlined_call_operand.vmem [shape: f32[2,8,32], index: 0, kind: input, shape index: {}]
  %s1 = inlined_call_operand.vmem [shape: f32[2,8,8], index: 1, kind: input, shape index: {}]
  %s2 = inlined_call_operand.hbm [shape: f32[24,32,8], index: 2, kind: input, shape index: {}]
  %s3 = inlined_call_operand.vmem [shape: f32[24,1,8], index: 3, kind: input, shape index: {}]
  %s4 = inlined_call_operand.hbm [shape: f32[2,32,32], index: 4, kind: input, shape index: {}]
  %s5 = inlined_call_operand.hbm [shape: f32[2,32,128], index: 5, kind: input, shape index: {}]
  %s6 = inlined_call_operand.vmem [shape: f32[2,1,128], index: 6, kind: input, shape index: {}]
  %s7 = inlined_call_operand.vmem [shape: f32[2,128,32], index: 7, kind: input, shape index: {}]
  %s8 = inlined_call_operand.vmem [shape: f32[2,6,32], index: 8, kind: input, shape index: {}]
  %s9 = inlined_call_operand.vmem [shape: f32[4,32], index: 9, kind: input, shape index: {}]
  %s10 = inlined_call_operand.vmem [shape: f32[2,1,1], index: 10, kind: output, shape index: {}]
  %s11 = sld [smem:[#allocation0]]
  $region85: #{gpt2_regressor_forward.1} parent=0
    _
  %s13 = ssub.s32 1, %s11
  %s14 = scalar_select 0, %s13, %s11
  $region1: #{gpt2_regressor_forward.1} parent=0
    #allocation2 [shape = 'u8[393216]{0}', space=vmem, size = 0x60000, scoped, tag = 'input window, operand 2, single buffered']
    #allocation3 [shape = 's32[2]{0}', space=sflag, size = 0x8, scoped, tag = 'scoped memory for gpt2_regressor_forward.1']
    #allocation4 [shape = 'u8[32768]{0}', space=vmem, size = 0x8000, scoped, tag = 'input window, operand 4, single buffered']
    #allocation5 [shape = 's32[1]{0}', space=sflag, size = 0x4, scoped, tag = 'scoped memory for gpt2_regressor_forward.1']
    #allocation6 [shape = 'u8[32768]{0}', space=vmem, size = 0x8000, scoped, tag = 'input window, operand 5, single buffered']
    %15 = vsyncpa [#allocation3], 0
    %16 = vsyncpa [#allocation5], 0
    loop: start=0, step=1, limit=4
    $region2: #{gpt2_regressor_forward.1} parent=1 // loop_pre_header
      _
    $region3: #{gpt2_regressor_forward.1} parent=1 // loop_header
      %s18 = sphi 0, %s22
      %p19 = scmp.ge.s32.totalorder %s18, 4
      %s28 = sphi 0, %s30
      %s31 = sphi 0, %s28
      %s32 = sphi 0, %s31
      %s48 = sphi 0, %s32
      %s54 = sphi 0, %s56
      %s57 = sphi 0, %s54
      %s58 = sphi 0, %s57
      %s74 = sphi 0, %s58
      %s78 = sphi 0, %s78
      %s80 = sphi 0, %s78
      %s81 = sphi 0, %s80
      %s95 = sphi 0, %s81
      %s99 = sphi 0, %s99
      %s101 = sphi 0, %s99
      %s102 = sphi 0, %s101
      %s116 = sphi 0, %s102
      %s120 = sphi 0, %s120
      %s122 = sphi 0, %s120
      %s123 = sphi 0, %s122
      %s137 = sphi 0, %s123
      %s141 = sphi 0, %s141
      %s143 = sphi 0, %s141
      %s144 = sphi 0, %s143
      %s158 = sphi 0, %s144
      %s162 = sphi 0, %s162
      %s164 = sphi 0, %s162
      %s165 = sphi 0, %s164
      %s179 = sphi 0, %s165
      %s183 = sphi 0, %s183
      %s185 = sphi 0, %s183
      %s186 = sphi 0, %s185
      %s200 = sphi 0, %s186
      %s204 = sphi 0, %s204
      %s206 = sphi 0, %s204
      %s207 = sphi 0, %s206
      %s221 = sphi 0, %s207
      %s225 = sphi 0, %s225
      %s227 = sphi 0, %s225
      %s228 = sphi 0, %s227
      %s242 = sphi 0, %s228
      %s248 = sphi 0, %s250
      %s251 = sphi 0, %s248
      %s252 = sphi 0, %s251
      %s268 = sphi 0, %s252
    $region4: #{gpt2_regressor_forward.1} parent=1 // loop_header_branch
      %21 = sbr.rel (%p19) target = $region8
    $region5: #{gpt2_regressor_forward.1} parent=1 // loop_body
      %s23 = ssub.s32 %s18, 1
      %s24 = ssub.s32 %s18, 2
      %s25 = sadd.s32 %s18, 1
      %s26 = ssub.s32 %s18, %s25
      %p27 = scmp.eq.s32.totalorder %s26, 0
      %s29 = sadd.s32 %s28, 1
      %s30 = scalar_select %p27, %s28, %s29
      %p33 = pneg %p27
      %p34 = scmp.eq.s32.totalorder %s18, 1
      %p35 = por %p33, %p34
      %p36 = scmp.ne.s32.totalorder %s28, %s31
      %p37 = scmp.eq.s32.totalorder %s18, 0
      %p38 = por %p36, %p37
      %p39 = scmp.ne.s32.totalorder %s28, %s31
      %p40 = scmp.eq.s32.totalorder %s23, 1
      %p41 = por %p39, %p40
      %p42 = scmp.ne.s32.totalorder %s31, %s32
      %p43 = scmp.eq.s32.totalorder %s23, 0
      %p44 = por %p42, %p43
      %p45 = scmp.ne.s32.totalorder %s31, %s32
      %p46 = scmp.eq.s32.totalorder %s24, 1
      %p47 = por %p45, %p46
      %p49 = scmp.ne.s32.totalorder %s32, %s48
      %p50 = scmp.eq.s32.totalorder %s24, 0
      %p51 = por %p49, %p50
      %s52 = ssub.s32 %s18, %s25
      %p53 = scmp.eq.s32.totalorder %s52, 0
      %s55 = sadd.s32 %s54, 1
      %s56 = scalar_select %p53, %s54, %s55
      %p59 = pneg %p53
      %p60 = scmp.eq.s32.totalorder %s18, 1
      %p61 = por %p59, %p60
      %p62 = scmp.ne.s32.totalorder %s54, %s57
      %p63 = scmp.eq.s32.totalorder %s18, 0
      %p64 = por %p62, %p63
      %p65 = scmp.ne.s32.totalorder %s54, %s57
      %p66 = scmp.eq.s32.totalorder %s23, 1
      %p67 = por %p65, %p66
      %p68 = scmp.ne.s32.totalorder %s57, %s58
      %p69 = scmp.eq.s32.totalorder %s23, 0
      %p70 = por %p68, %p69
      %p71 = scmp.ne.s32.totalorder %s57, %s58
      %p72 = scmp.eq.s32.totalorder %s24, 1
      %p73 = por %p71, %p72
      %p75 = scmp.ne.s32.totalorder %s58, %s74
      %p76 = scmp.eq.s32.totalorder %s24, 0
      %p77 = por %p75, %p76
      %s79 = sadd.s32 %s78, 1
      %p82 = scmp.eq.s32.totalorder %s18, 1
      %p83 = scmp.ne.s32.totalorder %s78, %s80
      %p84 = scmp.eq.s32.totalorder %s18, 0
      %p85 = por %p83, %p84
      %p86 = scmp.ne.s32.totalorder %s78, %s80
      %p87 = scmp.eq.s32.totalorder %s23, 1
      %p88 = por %p86, %p87
      %p89 = scmp.ne.s32.totalorder %s80, %s81
      %p90 = scmp.eq.s32.totalorder %s23, 0
      %p91 = por %p89, %p90
      %p92 = scmp.ne.s32.totalorder %s80, %s81
      %p93 = scmp.eq.s32.totalorder %s24, 1
      %p94 = por %p92, %p93
      %p96 = scmp.ne.s32.totalorder %s81, %s95
      %p97 = scmp.eq.s32.totalorder %s24, 0
      %p98 = por %p96, %p97
      %s100 = sadd.s32 %s99, 1
      %p103 = scmp.eq.s32.totalorder %s18, 1
      %p104 = scmp.ne.s32.totalorder %s99, %s101
      %p105 = scmp.eq.s32.totalorder %s18, 0
      %p106 = por %p104, %p105
      %p107 = scmp.ne.s32.totalorder %s99, %s101
      %p108 = scmp.eq.s32.totalorder %s23, 1
      %p109 = por %p107, %p108
      %p110 = scmp.ne.s32.totalorder %s101, %s102
      %p111 = scmp.eq.s32.totalorder %s23, 0
      %p112 = por %p110, %p111
      %p113 = scmp.ne.s32.totalorder %s101, %s102
      %p114 = scmp.eq.s32.totalorder %s24, 1
      %p115 = por %p113, %p114
      %p117 = scmp.ne.s32.totalorder %s102, %s116
      %p118 = scmp.eq.s32.totalorder %s24, 0
      %p119 = por %p117, %p118
      %s121 = sadd.s32 %s120, 1
      %p124 = scmp.eq.s32.totalorder %s18, 1
      %p125 = scmp.ne.s32.totalorder %s120, %s122
      %p126 = scmp.eq.s32.totalorder %s18, 0
      %p127 = por %p125, %p126
      %p128 = scmp.ne.s32.totalorder %s120, %s122
      %p129 = scmp.eq.s32.totalorder %s23, 1
      %p130 = por %p128, %p129
      %p131 = scmp.ne.s32.totalorder %s122, %s123
      %p132 = scmp.eq.s32.totalorder %s23, 0
      %p133 = por %p131, %p132
      %p134 = scmp.ne.s32.totalorder %s122, %s123
      %p135 = scmp.eq.s32.totalorder %s24, 1
      %p136 = por %p134, %p135
      %p138 = scmp.ne.s32.totalorder %s123, %s137
      %p139 = scmp.eq.s32.totalorder %s24, 0
      %p140 = por %p138, %p139
      %s142 = sadd.s32 %s141, 1
      %p145 = scmp.eq.s32.totalorder %s18, 1
      %p146 = scmp.ne.s32.totalorder %s141, %s143
      %p147 = scmp.eq.s32.totalorder %s18, 0
      %p148 = por %p146, %p147
      %p149 = scmp.ne.s32.totalorder %s141, %s143
      %p150 = scmp.eq.s32.totalorder %s23, 1
      %p151 = por %p149, %p150
      %p152 = scmp.ne.s32.totalorder %s143, %s144
      %p153 = scmp.eq.s32.totalorder %s23, 0
      %p154 = por %p152, %p153
      %p155 = scmp.ne.s32.totalorder %s143, %s144
      %p156 = scmp.eq.s32.totalorder %s24, 1
      %p157 = por %p155, %p156
      %p159 = scmp.ne.s32.totalorder %s144, %s158
      %p160 = scmp.eq.s32.totalorder %s24, 0
      %p161 = por %p159, %p160
      %s163 = sadd.s32 %s162, 1
      %p166 = scmp.eq.s32.totalorder %s18, 1
      %p167 = scmp.ne.s32.totalorder %s162, %s164
      %p168 = scmp.eq.s32.totalorder %s18, 0
      %p169 = por %p167, %p168
      %p170 = scmp.ne.s32.totalorder %s162, %s164
      %p171 = scmp.eq.s32.totalorder %s23, 1
      %p172 = por %p170, %p171
      %p173 = scmp.ne.s32.totalorder %s164, %s165
      %p174 = scmp.eq.s32.totalorder %s23, 0
      %p175 = por %p173, %p174
      %p176 = scmp.ne.s32.totalorder %s164, %s165
      %p177 = scmp.eq.s32.totalorder %s24, 1
      %p178 = por %p176, %p177
      %p180 = scmp.ne.s32.totalorder %s165, %s179
      %p181 = scmp.eq.s32.totalorder %s24, 0
      %p182 = por %p180, %p181
      %s184 = sadd.s32 %s183, 1
      %p187 = scmp.eq.s32.totalorder %s18, 1
      %p188 = scmp.ne.s32.totalorder %s183, %s185
      %p189 = scmp.eq.s32.totalorder %s18, 0
      %p190 = por %p188, %p189
      %p191 = scmp.ne.s32.totalorder %s183, %s185
      %p192 = scmp.eq.s32.totalorder %s23, 1
      %p193 = por %p191, %p192
      %p194 = scmp.ne.s32.totalorder %s185, %s186
      %p195 = scmp.eq.s32.totalorder %s23, 0
      %p196 = por %p194, %p195
      %p197 = scmp.ne.s32.totalorder %s185, %s186
      %p198 = scmp.eq.s32.totalorder %s24, 1
      %p199 = por %p197, %p198
      %p201 = scmp.ne.s32.totalorder %s186, %s200
      %p202 = scmp.eq.s32.totalorder %s24, 0
      %p203 = por %p201, %p202
      %s205 = sadd.s32 %s204, 1
      %p208 = scmp.eq.s32.totalorder %s18, 1
      %p209 = scmp.ne.s32.totalorder %s204, %s206
      %p210 = scmp.eq.s32.totalorder %s18, 0
      %p211 = por %p209, %p210
      %p212 = scmp.ne.s32.totalorder %s204, %s206
      %p213 = scmp.eq.s32.totalorder %s23, 1
      %p214 = por %p212, %p213
      %p215 = scmp.ne.s32.totalorder %s206, %s207
      %p216 = scmp.eq.s32.totalorder %s23, 0
      %p217 = por %p215, %p216
      %p218 = scmp.ne.s32.totalorder %s206, %s207
      %p219 = scmp.eq.s32.totalorder %s24, 1
      %p220 = por %p218, %p219
      %p222 = scmp.ne.s32.totalorder %s207, %s221
      %p223 = scmp.eq.s32.totalorder %s24, 0
      %p224 = por %p222, %p223
      %s226 = sadd.s32 %s225, 1
      %p229 = scmp.eq.s32.totalorder %s18, 1
      %p230 = scmp.ne.s32.totalorder %s225, %s227
      %p231 = scmp.eq.s32.totalorder %s18, 0
      %p232 = por %p230, %p231
      %p233 = scmp.ne.s32.totalorder %s225, %s227
      %p234 = scmp.eq.s32.totalorder %s23, 1
      %p235 = por %p233, %p234
      %p236 = scmp.ne.s32.totalorder %s227, %s228
      %p237 = scmp.eq.s32.totalorder %s23, 0
      %p238 = por %p236, %p237
      %p239 = scmp.ne.s32.totalorder %s227, %s228
      %p240 = scmp.eq.s32.totalorder %s24, 1
      %p241 = por %p239, %p240
      %p243 = scmp.ne.s32.totalorder %s228, %s242
      %p244 = scmp.eq.s32.totalorder %s24, 0
      %p245 = por %p243, %p244
      %s246 = ssub.s32 %s18, %s25
      %p247 = scmp.eq.s32.totalorder %s246, 0
      %s249 = sadd.s32 %s248, 1
      %s250 = scalar_select %p247, %s248, %s249
      %p253 = pneg %p247
      %p254 = scmp.eq.s32.totalorder %s18, 1
      %p255 = por %p253, %p254
      %p256 = scmp.ne.s32.totalorder %s248, %s251
      %p257 = scmp.eq.s32.totalorder %s18, 0
      %p258 = por %p256, %p257
      %p259 = scmp.ne.s32.totalorder %s248, %s251
      %p260 = scmp.eq.s32.totalorder %s23, 1
      %p261 = por %p259, %p260
      %p262 = scmp.ne.s32.totalorder %s251, %s252
      %p263 = scmp.eq.s32.totalorder %s23, 0
      %p264 = por %p262, %p263
      %p265 = scmp.ne.s32.totalorder %s251, %s252
      %p266 = scmp.eq.s32.totalorder %s24, 1
      %p267 = por %p265, %p266
      %p269 = scmp.ne.s32.totalorder %s252, %s268
      %p270 = scmp.eq.s32.totalorder %s24, 0
      %p271 = por %p269, %p270
      %p272 = scmp.le.s32.totalorder 1, %s18
      %p273 = scmp.lt.s32.totalorder %s18, 3
      %p274 = pnand %p272, %p273
      %p275 = pneg %p274
      // Predicated region
      $region9: #{gpt2_regressor_forward.1} parent=5 // pred_check
        _
      $region10: #{gpt2_regressor_forward.1} parent=5 // pred_check_branch
        %277 = sbr.rel (%p274) target = $region12
      $region11: #{gpt2_regressor_forward.1} parent=5 // pred_region
        %s278 = ssub.s32 %s18, 1
        // Predicated region
        $region13: #{gpt2_regressor_forward.1} parent=11 // pred_check
          %p279 = pneg %p91
        $region14: #{gpt2_regressor_forward.1} parent=11 // pred_check_branch
          %281 = sbr.rel (%p279) target = $region16
        $region15: #{gpt2_regressor_forward.1} parent=11 // pred_region
          %s283 = ssub.s32 12288, 12288
          %284 = vsyncadd [#allocation3], %s283
          %s285 = sshll.u32 [#allocation2], 4
          %s286 = int_to_ptr.vmem [resolvable:$true] %s285
          %291 = dma.hbm_to_vmem [thread:$0]  %s2, 12288, %s286, [#allocation3], 128, 128, 8
        $region16: #{gpt2_regressor_forward.1} parent=11 // pred_fallthru
          _
        // Predicated region
        $region17: #{gpt2_regressor_forward.1} parent=11 // pred_check
          %p292 = pneg %p112
        $region18: #{gpt2_regressor_forward.1} parent=11 // pred_check_branch
          %294 = sbr.rel (%p292) target = $region20
        $region19: #{gpt2_regressor_forward.1} parent=11 // pred_region
          _
        $region20: #{gpt2_regressor_forward.1} parent=11 // pred_fallthru
          _
        // Predicated region
        $region21: #{gpt2_regressor_forward.1} parent=11 // pred_check
          %p295 = pneg %p133
        $region22: #{gpt2_regressor_forward.1} parent=11 // pred_check_branch
          %297 = sbr.rel (%p295) target = $region24
        $region23: #{gpt2_regressor_forward.1} parent=11 // pred_region
          %s299 = ssub.s32 1024, 1024
          %300 = vsyncadd [#allocation5], %s299
          %s301 = sshll.u32 [#allocation4], 4
          %s302 = int_to_ptr.vmem [resolvable:$true] %s301
          %307 = dma.hbm_to_vmem [thread:$0]  %s4, 1024, %s302, [#allocation5], 128, 128, 8
        $region24: #{gpt2_regressor_forward.1} parent=11 // pred_fallthru
          _
        // Predicated region
        $region25: #{gpt2_regressor_forward.1} parent=11 // pred_check
          %p308 = pneg %p154
        $region26: #{gpt2_regressor_forward.1} parent=11 // pred_check_branch
          %310 = sbr.rel (%p308) target = $region28
        $region27: #{gpt2_regressor_forward.1} parent=11 // pred_region
          %s312 = ssub.s32 1024, 1024
          %313 = vsyncadd [#allocation5], %s312
          %s314 = sshll.u32 [#allocation6], 4
          %s315 = int_to_ptr.vmem [resolvable:$true] %s314
          %320 = dma.hbm_to_vmem [thread:$0]  %s5, 1024, %s315, [#allocation5], 128, 128, 8
        $region28: #{gpt2_regressor_forward.1} parent=11 // pred_fallthru
          _
        // Predicated region
        $region29: #{gpt2_regressor_forward.1} parent=11 // pred_check
          %p321 = pneg %p175
        $region30: #{gpt2_regressor_forward.1} parent=11 // pred_check_branch
          %323 = sbr.rel (%p321) target = $region32
        $region31: #{gpt2_regressor_forward.1} parent=11 // pred_region
          _
        $region32: #{gpt2_regressor_forward.1} parent=11 // pred_fallthru
          _
        // Predicated region
        $region33: #{gpt2_regressor_forward.1} parent=11 // pred_check
          %p324 = pneg %p196
        $region34: #{gpt2_regressor_forward.1} parent=11 // pred_check_branch
          %326 = sbr.rel (%p324) target = $region36
        $region35: #{gpt2_regressor_forward.1} parent=11 // pred_region
          _
        $region36: #{gpt2_regressor_forward.1} parent=11 // pred_fallthru
          _
        // Predicated region
        $region37: #{gpt2_regressor_forward.1} parent=11 // pred_check
          %p327 = pneg %p217
        $region38: #{gpt2_regressor_forward.1} parent=11 // pred_check_branch
          %329 = sbr.rel (%p327) target = $region40
        $region39: #{gpt2_regressor_forward.1} parent=11 // pred_region
          _
        $region40: #{gpt2_regressor_forward.1} parent=11 // pred_fallthru
          _
        // Predicated region
        $region41: #{gpt2_regressor_forward.1} parent=11 // pred_check
          %p330 = pneg %p238
        $region42: #{gpt2_regressor_forward.1} parent=11 // pred_check_branch
          %332 = sbr.rel (%p330) target = $region44
        $region43: #{gpt2_regressor_forward.1} parent=11 // pred_region
          _
        $region44: #{gpt2_regressor_forward.1} parent=11 // pred_fallthru
          _
      $region12: #{gpt2_regressor_forward.1} parent=5 // pred_fallthru
        _
      %p333 = scmp.lt.s32.totalorder %s18, 2
      // Predicated region
      $region45: #{gpt2_regressor_forward.1} parent=5 // pred_check
        %p334 = pneg %p333
      $region46: #{gpt2_regressor_forward.1} parent=5 // pred_check_branch
        %336 = sbr.rel (%p334) target = $region48
      $region47: #{gpt2_regressor_forward.1} parent=5 // pred_region
        // Predicated region
        $region49: #{gpt2_regressor_forward.1} parent=47 // pred_check
          %p337 = pneg %p38
        $region50: #{gpt2_regressor_forward.1} parent=47 // pred_check_branch
          %339 = sbr.rel (%p337) target = $region52
        $region51: #{gpt2_regressor_forward.1} parent=47 // pred_region
          %p340 = scmp.lt.s32.totalorder %s18, 1
          %s341 = scalar_select %p340, %s18, 1
          %s342 = smul.addr %s341, 8
          %s343 = scalar_lea.vmem %s0, %s342
        $region52: #{gpt2_regressor_forward.1} parent=47 // pred_fallthru
          _
        // Predicated region
        $region53: #{gpt2_regressor_forward.1} parent=47 // pred_check
          %p344 = pneg %p64
        $region54: #{gpt2_regressor_forward.1} parent=47 // pred_check_branch
          %346 = sbr.rel (%p344) target = $region56
        $region55: #{gpt2_regressor_forward.1} parent=47 // pred_region
          %p347 = scmp.lt.s32.totalorder %s18, 1
          %s348 = scalar_select %p347, %s18, 1
          %s349 = smul.addr %s348, 8
          %s350 = scalar_lea.vmem %s1, %s349
        $region56: #{gpt2_regressor_forward.1} parent=47 // pred_fallthru
          _
      $region48: #{gpt2_regressor_forward.1} parent=5 // pred_fallthru
        _
      %p351 = scmp.le.s32.totalorder 1, %s18
      %p352 = scmp.lt.s32.totalorder %s18, 3
      %p353 = pnand %p351, %p352
      %p354 = pneg %p353
      // Predicated region
      $region57: #{gpt2_regressor_forward.1} parent=5 // pred_check
        _
      $region58: #{gpt2_regressor_forward.1} parent=5 // pred_check_branch
        %356 = sbr.rel (%p353) target = $region60
      $region59: #{gpt2_regressor_forward.1} parent=5 // pred_region
        %s357 = ssub.s32 %s18, 1
        // Predicated region
        $region61: #{gpt2_regressor_forward.1} parent=59 // pred_check
          %p358 = pneg %p91
        $region62: #{gpt2_regressor_forward.1} parent=59 // pred_check_branch
          %360 = sbr.rel (%p358) target = $region64
        $region63: #{gpt2_regressor_forward.1} parent=59 // pred_region
          %361 = dma.done [#allocation3], 12288
        $region64: #{gpt2_regressor_forward.1} parent=59 // pred_fallthru
          _
        // Predicated region
        $region65: #{gpt2_regressor_forward.1} parent=59 // pred_check
          %p362 = pneg %p133
        $region66: #{gpt2_regressor_forward.1} parent=59 // pred_check_branch
          %364 = sbr.rel (%p362) target = $region68
        $region67: #{gpt2_regressor_forward.1} parent=59 // pred_region
          %365 = dma.done [#allocation5], 1024
        $region68: #{gpt2_regressor_forward.1} parent=59 // pred_fallthru
          _
        // Predicated region
        $region69: #{gpt2_regressor_forward.1} parent=59 // pred_check
          %p366 = pneg %p154
        $region70: #{gpt2_regressor_forward.1} parent=59 // pred_check_branch
          %368 = sbr.rel (%p366) target = $region72
        $region71: #{gpt2_regressor_forward.1} parent=59 // pred_region
          %369 = dma.done [#allocation5], 1024
        $region72: #{gpt2_regressor_forward.1} parent=59 // pred_fallthru
          _
        %p370 = scmp.lt.s32.totalorder %s23, 1
        %s371 = scalar_select %p370, %s23, 1
        %s372 = smul.addr %s371, 8
        %s373 = scalar_lea.vmem %s0, %s372
        %p374 = pneg %p44
        %p375 = pneg %p41
        %p376 = scmp.lt.s32.totalorder %s23, 1
        %s377 = scalar_select %p376, %s23, 1
        %s378 = smul.addr %s377, 8
        %s379 = scalar_lea.vmem %s1, %s378
        %p380 = pneg %p70
        %p381 = pneg %p67
        %p382 = pneg %p91
        %p383 = pneg %p88
        %p384 = pneg %p112
        %p385 = pneg %p109
        %p386 = pneg %p133
        %p387 = pneg %p130
        %p388 = pneg %p154
        %p389 = pneg %p151
        %p390 = pneg %p175
        %p391 = pneg %p172
        %p392 = pneg %p196
        %p393 = pneg %p193
        %p394 = pneg %p217
        %p395 = pneg %p214
        %p396 = pneg %p238
        %p397 = pneg %p235
        %p398 = pneg %p264
        %p399 = pneg %p261
        %p400 = scmp.lt.s32.totalorder %s23, 1
        %s401 = scalar_select %p400, %s23, 1
        %s402 = scalar_lea.vmem %s10, %s401
        %p403 = scmp.lt.s32.totalorder %s23, 1
        %s404 = scalar_select %p403, %s23, 1
        %s405 = smul.addr %s404, 8
        %s406 = scalar_lea.vmem %s0, %s405
        %p407 = scmp.lt.s32.totalorder %s23, 1
        %s408 = scalar_select %p407, %s23, 1
        %s409 = smul.addr %s408, 8
        %s410 = scalar_lea.vmem %s1, %s409
        %p411 = scmp.lt.s32.totalorder %s23, 1
        %s412 = scalar_select %p411, %s23, 1
        %s413 = scalar_lea.vmem %s10, %s412
        %v414 = vld [vmem:[%s406] sm:$0xff]
        %v415 = vld [vmem:[%s410] sm:$0xff]
        %v416 = vld [vmem:[%s8] sm:$0x3f]
        %vm417 = vcmask 261120
        %v418 = vsel %vm417, %v414, 0.0
        %419 = vadd.xlane.f32.xlu0 %v418
        %v420 = vpop.xlane.xlu0 %419
        %v421 = vrcp.pop 32.0
        %v422 = vmul.f32 %v420, %v421
        %v423 = vmul.f32 %v414, %v414
        %v424 = vsel %vm417, %v423, 0.0
        %425 = vadd.xlane.f32.xlu0 %v424
        %v426 = vpop.xlane.xlu0 %425
        %v427 = vmul.f32 %v426, %v421
        %v428 = vmul.f32 %v422, %v422
        %v429 = vsub.f32 %v427, %v428
        %v430 = vsub.f32 %v414, %v422
        %v431 = vadd.f32 %v429, 1e-05
        %v432 = vrsqrt.pop %v431
        %v433 = vmul.f32 %v430, %v432
        %v434 = vlaneseq
        %v435 = vshrl.u32 %v434, 7
        %v436 = vsub.s32 0, %v435
        %v437 = vrot.slane %v416, %v436
        %v438 = vmul.f32 %v433, %v437
        %v439 = vlaneseq
        %v440 = vshrl.u32 %v439, 7
        %v441 = vsub.s32 1, %v440
        %v442 = vrot.slane %v416, %v441
        %v443 = vadd.f32 %v438, %v442
        %v444 = vld [vmem:[#allocation2] sm:$0xff]
        %v445 = vld [vmem:[#allocation2 + $0x8] sm:$0xff]
        %v446 = vld [vmem:[#allocation2 + $0x10] sm:$0xff]
        %v447 = vld [vmem:[#allocation2 + $0x18] sm:$0xff]
        %v448 = vld [vmem:[%s3] sm:$0x1]
        %v450 = vlaneseq
        %v451 = vshrl.u32 %v450, 7
        %v452 = vsub.s32 0, %v451
        %v453 = vrot.slane %v448, %v452
        %v456 = vsel %vm417, %v443, 0
        %458 = vmatprep.subr.mxu0 0.0
        %459 = vmatpush1.msra.mxu0 %v444
        %460 = vmatprep.subr.mxu0 0.0
        %461 = vmatpush1.msra.mxu0 %v445
        %462 = vmatprep.subr.mxu0 0.0
        %463 = vmatpush1.msra.mxu0 %v446
        %464 = vmatprep.subr.mxu0 0.0
        %465 = vmatpush1.msra.mxu0 %v447
        %466 = vmatprep.subr.mxu0 0.0
        %467 = vmatpush1.msra.mxu0 0.0
        %468 = vmatprep.subr.mxu0 0.0
        %469 = vmatpush1.msra.mxu0 0.0
        %470 = vmatprep.subr.mxu0 0.0
        %471 = vmatpush1.msra.mxu0 0.0
        %472 = vmatprep.subr.mxu0 0.0
        %473 = vmatpush1.msra.mxu0 0.0
        %474 = vmatprep.subr.mxu0 0.0
        %475 = vmatpush1.msra.mxu0 0.0
        %476 = vmatprep.subr.mxu0 0.0
        %477 = vmatpush1.msra.mxu0 0.0
        %478 = vmatprep.subr.mxu0 0.0
        %479 = vmatpush1.msra.mxu0 0.0
        %480 = vmatprep.subr.mxu0 0.0
        %481 = vmatpush1.msra.mxu0 0.0
        %482 = vmatprep.subr.mxu0 0.0
        %483 = vmatpush1.msra.mxu0 0.0
        %484 = vmatprep.subr.mxu0 0.0
        %485 = vmatpush1.msra.mxu0 0.0
        %486 = vmatprep.subr.mxu0 0.0
        %487 = vmatpush1.msra.mxu0 0.0
        %488 = vmatprep.subr.mxu0 0.0
        %489 = vmatpush1.msra.mxu0 0.0
        %490 = vmatprep.subr.mxu0 0.0
        %491 = vmatpush1.msra.mxu0 0.0
        %492 = vmatprep.subr.mxu0 0.0
        %493 = vmatpush1.msra.mxu0 0.0
        %494 = vmatprep.subr.mxu0 0.0
        %495 = vmatpush1.msra.mxu0 0.0
        %496 = vmatprep.subr.mxu0 0.0
        %497 = vmatpush1.msra.mxu0 0.0
        %498 = vmatprep.subr.mxu0 0.0
        %499 = vmatpush1.msra.mxu0 0.0
        %500 = vmatprep.subr.mxu0 0.0
        %501 = vmatpush1.msra.mxu0 0.0
        %502 = vmatprep.subr.mxu0 0.0
        %503 = vmatpush1.msra.mxu0 0.0
        %504 = vmatprep.subr.mxu0 0.0
        %505 = vmatpush1.msra.mxu0 0.0
        %506 = vmatprep.subr.mxu0 0.0
        %507 = vmatpush1.msra.mxu0 0.0
        %508 = vmatprep.subr.mxu0 0.0
        %509 = vmatpush1.msra.mxu0 0.0
        %510 = vmatprep.subr.mxu0 0.0
        %511 = vmatpush1.msra.mxu0 0.0
        %512 = vmatprep.subr.mxu0 0.0
        %513 = vmatpush1.msra.mxu0 0.0
        %514 = vmatprep.subr.mxu0 0.0
        %515 = vmatpush1.msra.mxu0 0.0
        %516 = vmatprep.subr.mxu0 0.0
        %517 = vmatpush1.msra.mxu0 0.0
        %518 = vmatprep.subr.mxu0 0.0
        %519 = vmatpush1.msra.mxu0 0.0
        %520 = vmatprep.subr.mxu0 0.0
        %521 = vmatpush1.msra.mxu0 0.0
        %522 = vmatprep.mubr.f32.mxu0 0.0
        %523 = vmatmul.mubr.f32.gmra.mrb[0].mxu0 %v456
        %v524 = vpop.f32.mrb[0].mxu0
        %v525 = vadd.f32 %v453, %v524
        %v526 = vpop.f32.mrb[0].mxu0
        %527 = vdwg.mxu0
        %s528 = scalar_lea.vmem [#allocation2], 32
        %v529 = vld [vmem:[%s528] sm:$0xff]
        %v530 = vld [vmem:[%s528 + $0x8] sm:$0xff]
        %v531 = vld [vmem:[%s528 + $0x10] sm:$0xff]
        %v532 = vld [vmem:[%s528 + $0x18] sm:$0xff]
        %s533 = scalar_lea.vmem %s3, 1
        %v534 = vld [vmem:[%s533] sm:$0x1]
        %v536 = vlaneseq
        %v537 = vshrl.u32 %v536, 7
        %v538 = vsub.s32 0, %v537
        %v539 = vrot.slane %v534, %v538
        %541 = vmatprep.subr.mxu0 0.0
        %542 = vmatpush1.msra.mxu0 %v529
        %543 = vmatprep.subr.mxu0 0.0
        %544 = vmatpush1.msra.mxu0 %v530
        %545 = vmatprep.subr.mxu0 0.0
        %546 = vmatpush1.msra.mxu0 %v531
        %547 = vmatprep.subr.mxu0 0.0
        %548 = vmatpush1.msra.mxu0 %v532
        %549 = vmatprep.subr.mxu0 0.0
        %550 = vmatpush1.msra.mxu0 0.0
        %551 = vmatprep.subr.mxu0 0.0
        %552 = vmatpush1.msra.mxu0 0.0
        %553 = vmatprep.subr.mxu0 0.0
        %554 = vmatpush1.msra.mxu0 0.0
        %555 = vmatprep.subr.mxu0 0.0
        %556 = vmatpush1.msra.mxu0 0.0
        %557 = vmatprep.subr.mxu0 0.0
        %558 = vmatpush1.msra.mxu0 0.0
        %559 = vmatprep.subr.mxu0 0.0
        %560 = vmatpush1.msra.mxu0 0.0
        %561 = vmatprep.subr.mxu0 0.0
        %562 = vmatpush1.msra.mxu0 0.0
        %563 = vmatprep.subr.mxu0 0.0
        %564 = vmatpush1.msra.mxu0 0.0
        %565 = vmatprep.subr.mxu0 0.0
        %566 = vmatpush1.msra.mxu0 0.0
        %567 = vmatprep.subr.mxu0 0.0
        %568 = vmatpush1.msra.mxu0 0.0
        %569 = vmatprep.subr.mxu0 0.0
        %570 = vmatpush1.msra.mxu0 0.0
        %571 = vmatprep.subr.mxu0 0.0
        %572 = vmatpush1.msra.mxu0 0.0
        %573 = vmatprep.subr.mxu0 0.0
        %574 = vmatpush1.msra.mxu0 0.0
        %575 = vmatprep.subr.mxu0 0.0
        %576 = vmatpush1.msra.mxu0 0.0
        %577 = vmatprep.subr.mxu0 0.0
        %578 = vmatpush1.msra.mxu0 0.0
        %579 = vmatprep.subr.mxu0 0.0
        %580 = vmatpush1.msra.mxu0 0.0
        %581 = vmatprep.subr.mxu0 0.0
        %582 = vmatpush1.msra.mxu0 0.0
        %583 = vmatprep.subr.mxu0 0.0
        %584 = vmatpush1.msra.mxu0 0.0
        %585 = vmatprep.subr.mxu0 0.0
        %586 = vmatpush1.msra.mxu0 0.0
        %587 = vmatprep.subr.mxu0 0.0
        %588 = vmatpush1.msra.mxu0 0.0
        %589 = vmatprep.subr.mxu0 0.0
        %590 = vmatpush1.msra.mxu0 0.0
        %591 = vmatprep.subr.mxu0 0.0
        %592 = vmatpush1.msra.mxu0 0.0
        %593 = vmatprep.subr.mxu0 0.0
        %594 = vmatpush1.msra.mxu0 0.0
        %595 = vmatprep.subr.mxu0 0.0
        %596 = vmatpush1.msra.mxu0 0.0
        %597 = vmatprep.subr.mxu0 0.0
        %598 = vmatpush1.msra.mxu0 0.0
        %599 = vmatprep.subr.mxu0 0.0
        %600 = vmatpush1.msra.mxu0 0.0
        %601 = vmatprep.subr.mxu0 0.0
        %602 = vmatpush1.msra.mxu0 0.0
        %603 = vmatprep.subr.mxu0 0.0
        %604 = vmatpush1.msra.mxu0 0.0
        %605 = vmatprep.mubr.f32.mxu0 0.0
        %606 = vmatmul.mubr.f32.gmra.mrb[0].mxu0 %v456
        %v607 = vpop.f32.mrb[0].mxu0
        %v608 = vadd.f32 %v539, %v607
        %v609 = vpop.f32.mrb[0].mxu0
        %610 = vdwg.mxu0
        %s611 = scalar_lea.vmem [#allocation2], 64
        %v612 = vld [vmem:[%s611] sm:$0xff]
        %v613 = vld [vmem:[%s611 + $0x8] sm:$0xff]
        %v614 = vld [vmem:[%s611 + $0x10] sm:$0xff]
        %v615 = vld [vmem:[%s611 + $0x18] sm:$0xff]
        %s616 = scalar_lea.vmem %s3, 2
        %v617 = vld [vmem:[%s616] sm:$0x1]
        %v619 = vlaneseq
        %v620 = vshrl.u32 %v619, 7
        %v621 = vsub.s32 0, %v620
        %v622 = vrot.slane %v617, %v621
        %624 = vmatprep.subr.mxu0 0.0
        %625 = vmatpush1.msra.mxu0 %v612
        %626 = vmatprep.subr.mxu0 0.0
        %627 = vmatpush1.msra.mxu0 %v613
        %628 = vmatprep.subr.mxu0 0.0
        %629 = vmatpush1.msra.mxu0 %v614
        %630 = vmatprep.subr.mxu0 0.0
        %631 = vmatpush1.msra.mxu0 %v615
        %632 = vmatprep.subr.mxu0 0.0
        %633 = vmatpush1.msra.mxu0 0.0
        %634 = vmatprep.subr.mxu0 0.0
        %635 = vmatpush1.msra.mxu0 0.0
        %636 = vmatprep.subr.mxu0 0.0
        %637 = vmatpush1.msra.mxu0 0.0
        %638 = vmatprep.subr.mxu0 0.0
        %639 = vmatpush1.msra.mxu0 0.0
        %640 = vmatprep.subr.mxu0 0.0
        %641 = vmatpush1.msra.mxu0 0.0
        %642 = vmatprep.subr.mxu0 0.0
        %643 = vmatpush1.msra.mxu0 0.0
        %644 = vmatprep.subr.mxu0 0.0
        %645 = vmatpush1.msra.mxu0 0.0
        %646 = vmatprep.subr.mxu0 0.0
        %647 = vmatpush1.msra.mxu0 0.0
        %648 = vmatprep.subr.mxu0 0.0
        %649 = vmatpush1.msra.mxu0 0.0
        %650 = vmatprep.subr.mxu0 0.0
        %651 = vmatpush1.msra.mxu0 0.0
        %652 = vmatprep.subr.mxu0 0.0
        %653 = vmatpush1.msra.mxu0 0.0
        %654 = vmatprep.subr.mxu0 0.0
        %655 = vmatpush1.msra.mxu0 0.0
        %656 = vmatprep.subr.mxu0 0.0
        %657 = vmatpush1.msra.mxu0 0.0
        %658 = vmatprep.subr.mxu0 0.0
        %659 = vmatpush1.msra.mxu0 0.0
        %660 = vmatprep.subr.mxu0 0.0
        %661 = vmatpush1.msra.mxu0 0.0
        %662 = vmatprep.subr.mxu0 0.0
        %663 = vmatpush1.msra.mxu0 0.0
        %664 = vmatprep.subr.mxu0 0.0
        %665 = vmatpush1.msra.mxu0 0.0
        %666 = vmatprep.subr.mxu0 0.0
        %667 = vmatpush1.msra.mxu0 0.0
        %668 = vmatprep.subr.mxu0 0.0
        %669 = vmatpush1.msra.mxu0 0.0
        %670 = vmatprep.subr.mxu0 0.0
        %671 = vmatpush1.msra.mxu0 0.0
        %672 = vmatprep.subr.mxu0 0.0
        %673 = vmatpush1.msra.mxu0 0.0
        %674 = vmatprep.subr.mxu0 0.0
        %675 = vmatpush1.msra.mxu0 0.0
        %676 = vmatprep.subr.mxu0 0.0
        %677 = vmatpush1.msra.mxu0 0.0
        %678 = vmatprep.subr.mxu0 0.0
        %679 = vmatpush1.msra.mxu0 0.0
        %680 = vmatprep.subr.mxu0 0.0
        %681 = vmatpush1.msra.mxu0 0.0
        %682 = vmatprep.subr.mxu0 0.0
        %683 = vmatpush1.msra.mxu0 0.0
        %684 = vmatprep.subr.mxu0 0.0
        %685 = vmatpush1.msra.mxu0 0.0
        %686 = vmatprep.subr.mxu0 0.0
        %687 = vmatpush1.msra.mxu0 0.0
        %688 = vmatprep.mubr.f32.mxu0 0.0
        %689 = vmatmul.mubr.f32.gmra.mrb[0].mxu0 %v456
        %v690 = vpop.f32.mrb[0].mxu0
        %v691 = vadd.f32 %v622, %v690
        %v692 = vpop.f32.mrb[0].mxu0
        %693 = vdwg.mxu0
        %vm694 = vcmask 64512
        %v696 = vsel %vm694, %v525, 0
        %v699 = vsel %vm694, %v608, 0
        %701 = vmatprep.subr.mxu0 0.0
        %702 = vmatpush1.xpose.msra.mxu0 %v699
        %703 = vmatprep.subr.mxu0 0.0
        %704 = vmatpush1.xpose.msra.mxu0 0.0
        %705 = vmatprep.subr.mxu0 0.0
        %706 = vmatpush1.xpose.msra.mxu0 0.0
        %707 = vmatprep.subr.mxu0 0.0
        %708 = vmatpush1.xpose.msra.mxu0 0.0
        %709 = vmatprep.subr.mxu0 0.0
        %710 = vmatpush1.xpose.msra.mxu0 0.0
        %711 = vmatprep.subr.mxu0 0.0
        %712 = vmatpush1.xpose.msra.mxu0 0.0
        %713 = vmatprep.subr.mxu0 0.0
        %714 = vmatpush1.xpose.msra.mxu0 0.0
        %715 = vmatprep.subr.mxu0 0.0
        %716 = vmatpush1.xpose.msra.mxu0 0.0
        %717 = vmatprep.subr.mxu0 0.0
        %718 = vmatpush1.xpose.msra.mxu0 0.0
        %719 = vmatprep.subr.mxu0 0.0
        %720 = vmatpush1.xpose.msra.mxu0 0.0
        %721 = vmatprep.subr.mxu0 0.0
        %722 = vmatpush1.xpose.msra.mxu0 0.0
        %723 = vmatprep.subr.mxu0 0.0
        %724 = vmatpush1.xpose.msra.mxu0 0.0
        %725 = vmatprep.subr.mxu0 0.0
        %726 = vmatpush1.xpose.msra.mxu0 0.0
        %727 = vmatprep.subr.mxu0 0.0
        %728 = vmatpush1.xpose.msra.mxu0 0.0
        %729 = vmatprep.subr.mxu0 0.0
        %730 = vmatpush1.xpose.msra.mxu0 0.0
        %731 = vmatprep.subr.mxu0 0.0
        %732 = vmatpush1.xpose.msra.mxu0 0.0
        %733 = vmatprep.subr.mxu0 0.0
        %734 = vmatpush1.xpose.msra.mxu0 0.0
        %735 = vmatprep.subr.mxu0 0.0
        %736 = vmatpush1.xpose.msra.mxu0 0.0
        %737 = vmatprep.subr.mxu0 0.0
        %738 = vmatpush1.xpose.msra.mxu0 0.0
        %739 = vmatprep.subr.mxu0 0.0
        %740 = vmatpush1.xpose.msra.mxu0 0.0
        %741 = vmatprep.subr.mxu0 0.0
        %742 = vmatpush1.xpose.msra.mxu0 0.0
        %743 = vmatprep.subr.mxu0 0.0
        %744 = vmatpush1.xpose.msra.mxu0 0.0
        %745 = vmatprep.subr.mxu0 0.0
        %746 = vmatpush1.xpose.msra.mxu0 0.0
        %747 = vmatprep.subr.mxu0 0.0
        %748 = vmatpush1.xpose.msra.mxu0 0.0
        %749 = vmatprep.subr.mxu0 0.0
        %750 = vmatpush1.xpose.msra.mxu0 0.0
        %751 = vmatprep.subr.mxu0 0.0
        %752 = vmatpush1.xpose.msra.mxu0 0.0
        %753 = vmatprep.subr.mxu0 0.0
        %754 = vmatpush1.xpose.msra.mxu0 0.0
        %755 = vmatprep.subr.mxu0 0.0
        %756 = vmatpush1.xpose.msra.mxu0 0.0
        %757 = vmatprep.subr.mxu0 0.0
        %758 = vmatpush1.xpose.msra.mxu0 0.0
        %759 = vmatprep.subr.mxu0 0.0
        %760 = vmatpush1.xpose.msra.mxu0 0.0
        %761 = vmatprep.subr.mxu0 0.0
        %762 = vmatpush1.xpose.msra.mxu0 0.0
        %763 = vmatprep.subr.mxu0 0.0
        %764 = vmatpush1.xpose.msra.mxu0 0.0
        %765 = vmatprep.mubr.f32.mxu0 0.0
        %766 = vmatmul.mubr.f32.gmra.mrb[0].mxu0 %v696
        %v767 = vpop.f32.mrb[0].mxu0
        %v768 = vadd.f32 0.0, %v767
        %v769 = vpop.f32.mrb[0].mxu0
        %770 = vdwg.mxu0
        %v771 = vmul.f32 %v768, 0.35355338
        %v772 = vadd.f32 %v771, %v415
        %v773 = vsel %vm694, %v772, -inf
        %774 = vmax.xlane.f32.xlu0 %v773
        %v775 = vpop.xlane.xlu0 %774
        %v776 = vsub.f32 %v772, %v775
        %v777 = vmul.f32 %v776, 1.442695
        %v778 = vpow.pop %v777
        %v779 = vsel %vm694, %v778, 0.0
        %780 = vadd.xlane.f32.xlu0 %v779
        %v781 = vpop.xlane.xlu0 %780
        %v782 = vrcp.pop %v781
        %v783 = vmul.f32 %v778, %v782
        %v785 = vsel %vm694, %v783, 0
        %787 = vmatprep.subr.mxu0 0.0
        %788 = vmatpush1.msra.mxu0 %v691
        %789 = vmatprep.subr.mxu0 0.0
        %790 = vmatpush1.msra.mxu0 0.0
        %791 = vmatprep.subr.mxu0 0.0
        %792 = vmatpush1.msra.mxu0 0.0
        %793 = vmatprep.subr.mxu0 0.0
        %794 = vmatpush1.msra.mxu0 0.0
        %795 = vmatprep.subr.mxu0 0.0
        %796 = vmatpush1.msra.mxu0 0.0
        %797 = vmatprep.subr.mxu0 0.0
        %798 = vmatpush1.msra.mxu0 0.0
        %799 = vmatprep.subr.mxu0 0.0
        %800 = vmatpush1.msra.mxu0 0.0
        %801 = vmatprep.subr.mxu0 0.0
        %802 = vmatpush1.msra.mxu0 0.0
        %803 = vmatprep.subr.mxu0 0.0
        %804 = vmatpush1.msra.mxu0 0.0
        %805 = vmatprep.subr.mxu0 0.0
        %806 = vmatpush1.msra.mxu0 0.0
        %807 = vmatprep.subr.mxu0 0.0
        %808 = vmatpush1.msra.mxu0 0.0
        %809 = vmatprep.subr.mxu0 0.0
        %810 = vmatpush1.msra.mxu0 0.0
        %811 = vmatprep.subr.mxu0 0.0
        %812 = vmatpush1.msra.mxu0 0.0
        %813 = vmatprep.subr.mxu0 0.0
        %814 = vmatpush1.msra.mxu0 0.0
        %815 = vmatprep.subr.mxu0 0.0
        %816 = vmatpush1.msra.mxu0 0.0
        %817 = vmatprep.subr.mxu0 0.0
        %818 = vmatpush1.msra.mxu0 0.0
        %819 = vmatprep.subr.mxu0 0.0
        %820 = vmatpush1.msra.mxu0 0.0
        %821 = vmatprep.subr.mxu0 0.0
        %822 = vmatpush1.msra.mxu0 0.0
        %823 = vmatprep.subr.mxu0 0.0
        %824 = vmatpush1.msra.mxu0 0.0
        %825 = vmatprep.subr.mxu0 0.0
        %826 = vmatpush1.msra.mxu0 0.0
        %827 = vmatprep.subr.mxu0 0.0
        %828 = vmatpush1.msra.mxu0 0.0
        %829 = vmatprep.subr.mxu0 0.0
        %830 = vmatpush1.msra.mxu0 0.0
        %831 = vmatprep.subr.mxu0 0.0
        %832 = vmatpush1.msra.mxu0 0.0
        %833 = vmatprep.subr.mxu0 0.0
        %834 = vmatpush1.msra.mxu0 0.0
        %835 = vmatprep.subr.mxu0 0.0
        %836 = vmatpush1.msra.mxu0 0.0
        %837 = vmatprep.subr.mxu0 0.0
        %838 = vmatpush1.msra.mxu0 0.0
        %839 = vmatprep.subr.mxu0 0.0
        %840 = vmatpush1.msra.mxu0 0.0
        %841 = vmatprep.subr.mxu0 0.0
        %842 = vmatpush1.msra.mxu0 0.0
        %843 = vmatprep.subr.mxu0 0.0
        %844 = vmatpush1.msra.mxu0 0.0
        %845 = vmatprep.subr.mxu0 0.0
        %846 = vmatpush1.msra.mxu0 0.0
        %847 = vmatprep.subr.mxu0 0.0
        %848 = vmatpush1.msra.mxu0 0.0
        %849 = vmatprep.subr.mxu0 0.0
        %850 = vmatpush1.msra.mxu0 0.0
        %851 = vmatprep.mubr.f32.mxu0 0.0
        %852 = vmatmul.mubr.f32.gmra.mrb[0].mxu0 %v785
        %v853 = vpop.f32.mrb[0].mxu0
        %v854 = vadd.f32 0.0, %v853
        %v855 = vpop.f32.mrb[0].mxu0
        %856 = vdwg.mxu0
        %v857 = vld [vmem:[#allocation4] sm:$0xff]
        %s858 = scalar_lea.vmem [#allocation2], 96
        %v859 = vld [vmem:[%s858] sm:$0xff]
        %v860 = vld [vmem:[%s858 + $0x8] sm:$0xff]
        %v861 = vld [vmem:[%s858 + $0x10] sm:$0xff]
        %v862 = vld [vmem:[%s858 + $0x18] sm:$0xff]
        %s863 = scalar_lea.vmem %s3, 3
        %v864 = vld [vmem:[%s863] sm:$0x1]
        %v866 = vlaneseq
        %v867 = vshrl.u32 %v866, 7
        %v868 = vsub.s32 0, %v867
        %v869 = vrot.slane %v864, %v868
        %871 = vmatprep.subr.mxu0 0.0
        %872 = vmatpush1.msra.mxu0 %v859
        %873 = vmatprep.subr.mxu0 0.0
        %874 = vmatpush1.msra.mxu0 %v860
        %875 = vmatprep.subr.mxu0 0.0
        %876 = vmatpush1.msra.mxu0 %v861
        %877 = vmatprep.subr.mxu0 0.0
        %878 = vmatpush1.msra.mxu0 %v862
        %879 = vmatprep.subr.mxu0 0.0
        %880 = vmatpush1.msra.mxu0 0.0
        %881 = vmatprep.subr.mxu0 0.0
        %882 = vmatpush1.msra.mxu0 0.0
        %883 = vmatprep.subr.mxu0 0.0
        %884 = vmatpush1.msra.mxu0 0.0
        %885 = vmatprep.subr.mxu0 0.0
        %886 = vmatpush1.msra.mxu0 0.0
        %887 = vmatprep.subr.mxu0 0.0
        %888 = vmatpush1.msra.mxu0 0.0
        %889 = vmatprep.subr.mxu0 0.0
        %890 = vmatpush1.msra.mxu0 0.0
        %891 = vmatprep.subr.mxu0 0.0
        %892 = vmatpush1.msra.mxu0 0.0
        %893 = vmatprep.subr.mxu0 0.0
        %894 = vmatpush1.msra.mxu0 0.0
        %895 = vmatprep.subr.mxu0 0.0
        %896 = vmatpush1.msra.mxu0 0.0
        %897 = vmatprep.subr.mxu0 0.0
        %898 = vmatpush1.msra.mxu0 0.0
        %899 = vmatprep.subr.mxu0 0.0
        %900 = vmatpush1.msra.mxu0 0.0
        %901 = vmatprep.subr.mxu0 0.0
        %902 = vmatpush1.msra.mxu0 0.0
        %903 = vmatprep.subr.mxu0 0.0
        %904 = vmatpush1.msra.mxu0 0.0
        %905 = vmatprep.subr.mxu0 0.0
        %906 = vmatpush1.msra.mxu0 0.0
        %907 = vmatprep.subr.mxu0 0.0
        %908 = vmatpush1.msra.mxu0 0.0
        %909 = vmatprep.subr.mxu0 0.0
        %910 = vmatpush1.msra.mxu0 0.0
        %911 = vmatprep.subr.mxu0 0.0
        %912 = vmatpush1.msra.mxu0 0.0
        %913 = vmatprep.subr.mxu0 0.0
        %914 = vmatpush1.msra.mxu0 0.0
        %915 = vmatprep.subr.mxu0 0.0
        %916 = vmatpush1.msra.mxu0 0.0
        %917 = vmatprep.subr.mxu0 0.0
        %918 = vmatpush1.msra.mxu0 0.0
        %919 = vmatprep.subr.mxu0 0.0
        %920 = vmatpush1.msra.mxu0 0.0
        %921 = vmatprep.subr.mxu0 0.0
        %922 = vmatpush1.msra.mxu0 0.0
        %923 = vmatprep.subr.mxu0 0.0
        %924 = vmatpush1.msra.mxu0 0.0
        %925 = vmatprep.subr.mxu0 0.0
        %926 = vmatpush1.msra.mxu0 0.0
        %927 = vmatprep.subr.mxu0 0.0
        %928 = vmatpush1.msra.mxu0 0.0
        %929 = vmatprep.subr.mxu0 0.0
        %930 = vmatpush1.msra.mxu0 0.0
        %931 = vmatprep.subr.mxu0 0.0
        %932 = vmatpush1.msra.mxu0 0.0
        %933 = vmatprep.subr.mxu0 0.0
        %934 = vmatpush1.msra.mxu0 0.0
        %935 = vmatprep.mubr.f32.mxu0 0.0
        %936 = vmatmul.mubr.f32.gmra.mrb[0].mxu0 %v456
        %v937 = vpop.f32.mrb[0].mxu0
        %v938 = vadd.f32 %v869, %v937
        %v939 = vpop.f32.mrb[0].mxu0
        %940 = vdwg.mxu0
        %s941 = scalar_lea.vmem [#allocation2], 128
        %v942 = vld [vmem:[%s941] sm:$0xff]
        %v943 = vld [vmem:[%s941 + $0x8] sm:$0xff]
        %v944 = vld [vmem:[%s941 + $0x10] sm:$0xff]
        %v945 = vld [vmem:[%s941 + $0x18] sm:$0xff]
        %s946 = scalar_lea.vmem %s3, 4
        %v947 = vld [vmem:[%s946] sm:$0x1]
        %v949 = vlaneseq
        %v950 = vshrl.u32 %v949, 7
        %v951 = vsub.s32 0, %v950
        %v952 = vrot.slane %v947, %v951
        %954 = vmatprep.subr.mxu0 0.0
        %955 = vmatpush1.msra.mxu0 %v942
        %956 = vmatprep.subr.mxu0 0.0
        %957 = vmatpush1.msra.mxu0 %v943
        %958 = vmatprep.subr.mxu0 0.0
        %959 = vmatpush1.msra.mxu0 %v944
        %960 = vmatprep.subr.mxu0 0.0
        %961 = vmatpush1.msra.mxu0 %v945
        %962 = vmatprep.subr.mxu0 0.0
        %963 = vmatpush1.msra.mxu0 0.0
        %964 = vmatprep.subr.mxu0 0.0
        %965 = vmatpush1.msra.mxu0 0.0
        %966 = vmatprep.subr.mxu0 0.0
        %967 = vmatpush1.msra.mxu0 0.0
        %968 = vmatprep.subr.mxu0 0.0
        %969 = vmatpush1.msra.mxu0 0.0
        %970 = vmatprep.subr.mxu0 0.0
        %971 = vmatpush1.msra.mxu0 0.0
        %972 = vmatprep.subr.mxu0 0.0
        %973 = vmatpush1.msra.mxu0 0.0
        %974 = vmatprep.subr.mxu0 0.0
        %975 = vmatpush1.msra.mxu0 0.0
        %976 = vmatprep.subr.mxu0 0.0
        %977 = vmatpush1.msra.mxu0 0.0
        %978 = vmatprep.subr.mxu0 0.0
        %979 = vmatpush1.msra.mxu0 0.0
        %980 = vmatprep.subr.mxu0 0.0
        %981 = vmatpush1.msra.mxu0 0.0
        %982 = vmatprep.subr.mxu0 0.0
        %983 = vmatpush1.msra.mxu0 0.0
        %984 = vmatprep.subr.mxu0 0.0
        %985 = vmatpush1.msra.mxu0 0.0
        %986 = vmatprep.subr.mxu0 0.0
        %987 = vmatpush1.msra.mxu0 0.0
        %988 = vmatprep.subr.mxu0 0.0
        %989 = vmatpush1.msra.mxu0 0.0
        %990 = vmatprep.subr.mxu0 0.0
        %991 = vmatpush1.msra.mxu0 0.0
        %992 = vmatprep.subr.mxu0 0.0
        %993 = vmatpush1.msra.mxu0 0.0
        %994 = vmatprep.subr.mxu0 0.0
        %995 = vmatpush1.msra.mxu0 0.0
        %996 = vmatprep.subr.mxu0 0.0
        %997 = vmatpush1.msra.mxu0 0.0
        %998 = vmatprep.subr.mxu0 0.0
        %999 = vmatpush1.msra.mxu0 0.0
        %1000 = vmatprep.subr.mxu0 0.0
        %1001 = vmatpush1.msra.mxu0 0.0
        %1002 = vmatprep.subr.mxu0 0.0
        %1003 = vmatpush1.msra.mxu0 0.0
        %1004 = vmatprep.subr.mxu0 0.0
        %1005 = vmatpush1.msra.mxu0 0.0
        %1006 = vmatprep.subr.mxu0 0.0
        %1007 = vmatpush1.msra.mxu0 0.0
        %1008 = vmatprep.subr.mxu0 0.0
        %1009 = vmatpush1.msra.mxu0 0.0
        %1010 = vmatprep.subr.mxu0 0.0
        %1011 = vmatpush1.msra.mxu0 0.0
        %1012 = vmatprep.subr.mxu0 0.0
        %1013 = vmatpush1.msra.mxu0 0.0
        %1014 = vmatprep.subr.mxu0 0.0
        %1015 = vmatpush1.msra.mxu0 0.0
        %1016 = vmatprep.subr.mxu0 0.0
        %1017 = vmatpush1.msra.mxu0 0.0
        %1018 = vmatprep.mubr.f32.mxu0 0.0
        %1019 = vmatmul.mubr.f32.gmra.mrb[0].mxu0 %v456
        %v1020 = vpop.f32.mrb[0].mxu0
        %v1021 = vadd.f32 %v952, %v1020
        %v1022 = vpop.f32.mrb[0].mxu0
        %1023 = vdwg.mxu0
        %s1024 = scalar_lea.vmem [#allocation2], 160
        %v1025 = vld [vmem:[%s1024] sm:$0xff]
        %v1026 = vld [vmem:[%s1024 + $0x8] sm:$0xff]
        %v1027 = vld [vmem:[%s1024 + $0x10] sm:$0xff]
        %v1028 = vld [vmem:[%s1024 + $0x18] sm:$0xff]
        %s1029 = scalar_lea.vmem %s3, 5
        %v1030 = vld [vmem:[%s1029] sm:$0x1]
        %v1032 = vlaneseq
        %v1033 = vshrl.u32 %v1032, 7
        %v1034 = vsub.s32 0, %v1033
        %v1035 = vrot.slane %v1030, %v1034
        %1037 = vmatprep.subr.mxu0 0.0
        %1038 = vmatpush1.msra.mxu0 %v1025
        %1039 = vmatprep.subr.mxu0 0.0
        %1040 = vmatpush1.msra.mxu0 %v1026
        %1041 = vmatprep.subr.mxu0 0.0
        %1042 = vmatpush1.msra.mxu0 %v1027
        %1043 = vmatprep.subr.mxu0 0.0
        %1044 = vmatpush1.msra.mxu0 %v1028
        %1045 = vmatprep.subr.mxu0 0.0
        %1046 = vmatpush1.msra.mxu0 0.0
        %1047 = vmatprep.subr.mxu0 0.0
        %1048 = vmatpush1.msra.mxu0 0.0
        %1049 = vmatprep.subr.mxu0 0.0
        %1050 = vmatpush1.msra.mxu0 0.0
        %1051 = vmatprep.subr.mxu0 0.0
        %1052 = vmatpush1.msra.mxu0 0.0
        %1053 = vmatprep.subr.mxu0 0.0
        %1054 = vmatpush1.msra.mxu0 0.0
        %1055 = vmatprep.subr.mxu0 0.0
        %1056 = vmatpush1.msra.mxu0 0.0
        %1057 = vmatprep.subr.mxu0 0.0
        %1058 = vmatpush1.msra.mxu0 0.0
        %1059 = vmatprep.subr.mxu0 0.0
        %1060 = vmatpush1.msra.mxu0 0.0
        %1061 = vmatprep.subr.mxu0 0.0
        %1062 = vmatpush1.msra.mxu0 0.0
        %1063 = vmatprep.subr.mxu0 0.0
        %1064 = vmatpush1.msra.mxu0 0.0
        %1065 = vmatprep.subr.mxu0 0.0
        %1066 = vmatpush1.msra.mxu0 0.0
        %1067 = vmatprep.subr.mxu0 0.0
        %1068 = vmatpush1.msra.mxu0 0.0
        %1069 = vmatprep.subr.mxu0 0.0
        %1070 = vmatpush1.msra.mxu0 0.0
        %1071 = vmatprep.subr.mxu0 0.0
        %1072 = vmatpush1.msra.mxu0 0.0
        %1073 = vmatprep.subr.mxu0 0.0
        %1074 = vmatpush1.msra.mxu0 0.0
        %1075 = vmatprep.subr.mxu0 0.0
        %1076 = vmatpush1.msra.mxu0 0.0
        %1077 = vmatprep.subr.mxu0 0.0
        %1078 = vmatpush1.msra.mxu0 0.0
        %1079 = vmatprep.subr.mxu0 0.0
        %1080 = vmatpush1.msra.mxu0 0.0
        %1081 = vmatprep.subr.mxu0 0.0
        %1082 = vmatpush1.msra.mxu0 0.0
        %1083 = vmatprep.subr.mxu0 0.0
        %1084 = vmatpush1.msra.mxu0 0.0
        %1085 = vmatprep.subr.mxu0 0.0
        %1086 = vmatpush1.msra.mxu0 0.0
        %1087 = vmatprep.subr.mxu0 0.0
        %1088 = vmatpush1.msra.mxu0 0.0
        %1089 = vmatprep.subr.mxu0 0.0
        %1090 = vmatpush1.msra.mxu0 0.0
        %1091 = vmatprep.subr.mxu0 0.0
        %1092 = vmatpush1.msra.mxu0 0.0
        %1093 = vmatprep.subr.mxu0 0.0
        %1094 = vmatpush1.msra.mxu0 0.0
        %1095 = vmatprep.subr.mxu0 0.0
        %1096 = vmatpush1.msra.mxu0 0.0
        %1097 = vmatprep.subr.mxu0 0.0
        %1098 = vmatpush1.msra.mxu0 0.0
        %1099 = vmatprep.subr.mxu0 0.0
        %1100 = vmatpush1.msra.mxu0 0.0
        %1101 = vmatprep.mubr.f32.mxu0 0.0
        %1102 = vmatmul.mubr.f32.gmra.mrb[0].mxu0 %v456
        %v1103 = vpop.f32.mrb[0].mxu0
        %v1104 = vadd.f32 %v1035, %v1103
        %v1105 = vpop.f32.mrb[0].mxu0
        %1106 = vdwg.mxu0
        %v1108 = vsel %vm694, %v938, 0
        %v1111 = vsel %vm694, %v1021, 0
        %1113 = vmatprep.subr.mxu0 0.0
        %1114 = vmatpush1.xpose.msra.mxu0 %v1111
        %1115 = vmatprep.subr.mxu0 0.0
        %1116 = vmatpush1.xpose.msra.mxu0 0.0
        %1117 = vmatprep.subr.mxu0 0.0
        %1118 = vmatpush1.xpose.msra.mxu0 0.0
        %1119 = vmatprep.subr.mxu0 0.0
        %1120 = vmatpush1.xpose.msra.mxu0 0.0
        %1121 = vmatprep.subr.mxu0 0.0
        %1122 = vmatpush1.xpose.msra.mxu0 0.0
        %1123 = vmatprep.subr.mxu0 0.0
        %1124 = vmatpush1.xpose.msra.mxu0 0.0
        %1125 = vmatprep.subr.mxu0 0.0
        %1126 = vmatpush1.xpose.msra.mxu0 0.0
        %1127 = vmatprep.subr.mxu0 0.0
        %1128 = vmatpush1.xpose.msra.mxu0 0.0
        %1129 = vmatprep.subr.mxu0 0.0
        %1130 = vmatpush1.xpose.msra.mxu0 0.0
        %1131 = vmatprep.subr.mxu0 0.0
        %1132 = vmatpush1.xpose.msra.mxu0 0.0
        %1133 = vmatprep.subr.mxu0 0.0
        %1134 = vmatpush1.xpose.msra.mxu0 0.0
        %1135 = vmatprep.subr.mxu0 0.0
        %1136 = vmatpush1.xpose.msra.mxu0 0.0
        %1137 = vmatprep.subr.mxu0 0.0
        %1138 = vmatpush1.xpose.msra.mxu0 0.0
        %1139 = vmatprep.subr.mxu0 0.0
        %1140 = vmatpush1.xpose.msra.mxu0 0.0
        %1141 = vmatprep.subr.mxu0 0.0
        %1142 = vmatpush1.xpose.msra.mxu0 0.0
        %1143 = vmatprep.subr.mxu0 0.0
        %1144 = vmatpush1.xpose.msra.mxu0 0.0
        %1145 = vmatprep.subr.mxu0 0.0
        %1146 = vmatpush1.xpose.msra.mxu0 0.0
        %1147 = vmatprep.subr.mxu0 0.0
        %1148 = vmatpush1.xpose.msra.mxu0 0.0
        %1149 = vmatprep.subr.mxu0 0.0
        %1150 = vmatpush1.xpose.msra.mxu0 0.0
        %1151 = vmatprep.subr.mxu0 0.0
        %1152 = vmatpush1.xpose.msra.mxu0 0.0
        %1153 = vmatprep.subr.mxu0 0.0
        %1154 = vmatpush1.xpose.msra.mxu0 0.0
        %1155 = vmatprep.subr.mxu0 0.0
        %1156 = vmatpush1.xpose.msra.mxu0 0.0
        %1157 = vmatprep.subr.mxu0 0.0
        %1158 = vmatpush1.xpose.msra.mxu0 0.0
        %1159 = vmatprep.subr.mxu0 0.0
        %1160 = vmatpush1.xpose.msra.mxu0 0.0
        %1161 = vmatprep.subr.mxu0 0.0
        %1162 = vmatpush1.xpose.msra.mxu0 0.0
        %1163 = vmatprep.subr.mxu0 0.0
        %1164 = vmatpush1.xpose.msra.mxu0 0.0
        %1165 = vmatprep.subr.mxu0 0.0
        %1166 = vmatpush1.xpose.msra.mxu0 0.0
        %1167 = vmatprep.subr.mxu0 0.0
        %1168 = vmatpush1.xpose.msra.mxu0 0.0
        %1169 = vmatprep.subr.mxu0 0.0
        %1170 = vmatpush1.xpose.msra.mxu0 0.0
        %1171 = vmatprep.subr.mxu0 0.0
        %1172 = vmatpush1.xpose.msra.mxu0 0.0
        %1173 = vmatprep.subr.mxu0 0.0
        %1174 = vmatpush1.xpose.msra.mxu0 0.0
        %1175 = vmatprep.subr.mxu0 0.0
        %1176 = vmatpush1.xpose.msra.mxu0 0.0
        %1177 = vmatprep.mubr.f32.mxu0 0.0
        %1178 = vmatmul.mubr.f32.gmra.mrb[0].mxu0 %v1108
        %v1179 = vpop.f32.mrb[0].mxu0
        %v1180 = vadd.f32 0.0, %v1179
        %v1181 = vpop.f32.mrb[0].mxu0
        %1182 = vdwg.mxu0
        %v1183 = vmul.f32 %v1180, 0.35355338
        %v1184 = vadd.f32 %v1183, %v415
        %v1185 = vsel %vm694, %v1184, -inf
        %1186 = vmax.xlane.f32.xlu0 %v1185
        %v1187 = vpop.xlane.xlu0 %1186
        %v1188 = vsub.f32 %v1184, %v1187
        %v1189 = vmul.f32 %v1188, 1.442695
        %v1190 = vpow.pop %v1189
        %v1191 = vsel %vm694, %v1190, 0.0
        %1192 = vadd.xlane.f32.xlu0 %v1191
        %v1193 = vpop.xlane.xlu0 %1192
        %v1194 = vrcp.pop %v1193
        %v1195 = vmul.f32 %v1190, %v1194
        %v1197 = vsel %vm694, %v1195, 0
        %1199 = vmatprep.subr.mxu0 0.0
        %1200 = vmatpush1.msra.mxu0 %v1104
        %1201 = vmatprep.subr.mxu0 0.0
        %1202 = vmatpush1.msra.mxu0 0.0
        %1203 = vmatprep.subr.mxu0 0.0
        %1204 = vmatpush1.msra.mxu0 0.0
        %1205 = vmatprep.subr.mxu0 0.0
        %1206 = vmatpush1.msra.mxu0 0.0
        %1207 = vmatprep.subr.mxu0 0.0
        %1208 = vmatpush1.msra.mxu0 0.0
        %1209 = vmatprep.subr.mxu0 0.0
        %1210 = vmatpush1.msra.mxu0 0.0
        %1211 = vmatprep.subr.mxu0 0.0
        %1212 = vmatpush1.msra.mxu0 0.0
        %1213 = vmatprep.subr.mxu0 0.0
        %1214 = vmatpush1.msra.mxu0 0.0
        %1215 = vmatprep.subr.mxu0 0.0
        %1216 = vmatpush1.msra.mxu0 0.0
        %1217 = vmatprep.subr.mxu0 0.0
        %1218 = vmatpush1.msra.mxu0 0.0
        %1219 = vmatprep.subr.mxu0 0.0
        %1220 = vmatpush1.msra.mxu0 0.0
        %1221 = vmatprep.subr.mxu0 0.0
        %1222 = vmatpush1.msra.mxu0 0.0
        %1223 = vmatprep.subr.mxu0 0.0
        %1224 = vmatpush1.msra.mxu0 0.0
        %1225 = vmatprep.subr.mxu0 0.0
        %1226 = vmatpush1.msra.mxu0 0.0
        %1227 = vmatprep.subr.mxu0 0.0
        %1228 = vmatpush1.msra.mxu0 0.0
        %1229 = vmatprep.subr.mxu0 0.0
        %1230 = vmatpush1.msra.mxu0 0.0
        %1231 = vmatprep.subr.mxu0 0.0
        %1232 = vmatpush1.msra.mxu0 0.0
        %1233 = vmatprep.subr.mxu0 0.0
        %1234 = vmatpush1.msra.mxu0 0.0
        %1235 = vmatprep.subr.mxu0 0.0
        %1236 = vmatpush1.msra.mxu0 0.0
        %1237 = vmatprep.subr.mxu0 0.0
        %1238 = vmatpush1.msra.mxu0 0.0
        %1239 = vmatprep.subr.mxu0 0.0
        %1240 = vmatpush1.msra.mxu0 0.0
        %1241 = vmatprep.subr.mxu0 0.0
        %1242 = vmatpush1.msra.mxu0 0.0
        %1243 = vmatprep.subr.mxu0 0.0
        %1244 = vmatpush1.msra.mxu0 0.0
        %1245 = vmatprep.subr.mxu0 0.0
        %1246 = vmatpush1.msra.mxu0 0.0
        %1247 = vmatprep.subr.mxu0 0.0
        %1248 = vmatpush1.msra.mxu0 0.0
        %1249 = vmatprep.subr.mxu0 0.0
        %1250 = vmatpush1.msra.mxu0 0.0
        %1251 = vmatprep.subr.mxu0 0.0
        %1252 = vmatpush1.msra.mxu0 0.0
        %1253 = vmatprep.subr.mxu0 0.0
        %1254 = vmatpush1.msra.mxu0 0.0
        %1255 = vmatprep.subr.mxu0 0.0
        %1256 = vmatpush1.msra.mxu0 0.0
        %1257 = vmatprep.subr.mxu0 0.0
        %1258 = vmatpush1.msra.mxu0 0.0
        %1259 = vmatprep.subr.mxu0 0.0
        %1260 = vmatpush1.msra.mxu0 0.0
        %1261 = vmatprep.subr.mxu0 0.0
        %1262 = vmatpush1.msra.mxu0 0.0
        %1263 = vmatprep.mubr.f32.mxu0 0.0
        %1264 = vmatmul.mubr.f32.gmra.mrb[0].mxu0 %v1197
        %v1265 = vpop.f32.mrb[0].mxu0
        %v1266 = vadd.f32 0.0, %v1265
        %v1267 = vpop.f32.mrb[0].mxu0
        %1268 = vdwg.mxu0
        %v1269 = vld [vmem:[#allocation4 + $0x8] sm:$0xff]
        %v1271 = vsel %vm694, %v1266, 0
        %1273 = vmatprep.subr.mxu0 0.0
        %1274 = vmatpush1.msra.mxu0 %v1269
        %1275 = vmatprep.subr.mxu0 0.0
        %1276 = vmatpush1.msra.mxu0 0.0
        %1277 = vmatprep.subr.mxu0 0.0
        %1278 = vmatpush1.msra.mxu0 0.0
        %1279 = vmatprep.subr.mxu0 0.0
        %1280 = vmatpush1.msra.mxu0 0.0
        %1281 = vmatprep.subr.mxu0 0.0
        %1282 = vmatpush1.msra.mxu0 0.0
        %1283 = vmatprep.subr.mxu0 0.0
        %1284 = vmatpush1.msra.mxu0 0.0
        %1285 = vmatprep.subr.mxu0 0.0
        %1286 = vmatpush1.msra.mxu0 0.0
        %1287 = vmatprep.subr.mxu0 0.0
        %1288 = vmatpush1.msra.mxu0 0.0
        %1289 = vmatprep.subr.mxu0 0.0
        %1290 = vmatpush1.msra.mxu0 0.0
        %1291 = vmatprep.subr.mxu0 0.0
        %1292 = vmatpush1.msra.mxu0 0.0
        %1293 = vmatprep.subr.mxu0 0.0
        %1294 = vmatpush1.msra.mxu0 0.0
        %1295 = vmatprep.subr.mxu0 0.0
        %1296 = vmatpush1.msra.mxu0 0.0
        %1297 = vmatprep.subr.mxu0 0.0
        %1298 = vmatpush1.msra.mxu0 0.0
        %1299 = vmatprep.subr.mxu0 0.0
        %1300 = vmatpush1.msra.mxu0 0.0
        %1301 = vmatprep.subr.mxu0 0.0
        %1302 = vmatpush1.msra.mxu0 0.0
        %1303 = vmatprep.subr.mxu0 0.0
        %1304 = vmatpush1.msra.mxu0 0.0
        %1305 = vmatprep.subr.mxu0 0.0
        %1306 = vmatpush1.msra.mxu0 0.0
        %1307 = vmatprep.subr.mxu0 0.0
        %1308 = vmatpush1.msra.mxu0 0.0
        %1309 = vmatprep.subr.mxu0 0.0
        %1310 = vmatpush1.msra.mxu0 0.0
        %1311 = vmatprep.subr.mxu0 0.0
        %1312 = vmatpush1.msra.mxu0 0.0
        %1313 = vmatprep.subr.mxu0 0.0
        %1314 = vmatpush1.msra.mxu0 0.0
        %1315 = vmatprep.subr.mxu0 0.0
        %1316 = vmatpush1.msra.mxu0 0.0
        %1317 = vmatprep.subr.mxu0 0.0
        %1318 = vmatpush1.msra.mxu0 0.0
        %1319 = vmatprep.subr.mxu0 0.0
        %1320 = vmatpush1.msra.mxu0 0.0
        %1321 = vmatprep.subr.mxu0 0.0
        %1322 = vmatpush1.msra.mxu0 0.0
        %1323 = vmatprep.subr.mxu0 0.0
        %1324 = vmatpush1.msra.mxu0 0.0
        %1325 = vmatprep.subr.mxu0 0.0
        %1326 = vmatpush1.msra.mxu0 0.0
        %1327 = vmatprep.subr.mxu0 0.0
        %1328 = vmatpush1.msra.mxu0 0.0
        %1329 = vmatprep.subr.mxu0 0.0
        %1330 = vmatpush1.msra.mxu0 0.0
        %1331 = vmatprep.subr.mxu0 0.0
        %1332 = vmatpush1.msra.mxu0 0.0
        %1333 = vmatprep.subr.mxu0 0.0
        %1334 = vmatpush1.msra.mxu0 0.0
        %1335 = vmatprep.subr.mxu0 0.0
        %1336 = vmatpush1.msra.mxu0 0.0
        %1337 = vmatprep.mubr.f32.mxu0 0.0
        %1338 = vmatmul.mubr.f32.gmra.mrb[0].mxu0 %v1271
        %v1339 = vpop.f32.mrb[0].mxu0
        %v1340 = vadd.f32 0.0, %v1339
        %v1341 = vpop.f32.mrb[0].mxu0
        %1342 = vdwg.mxu0
        %v1344 = vsel %vm694, %v854, 0
        %1346 = vmatprep.subr.mxu0 0.0
        %1347 = vmatpush1.msra.mxu0 %v857
        %1348 = vmatprep.subr.mxu0 0.0
        %1349 = vmatpush1.msra.mxu0 0.0
        %1350 = vmatprep.subr.mxu0 0.0
        %1351 = vmatpush1.msra.mxu0 0.0
        %1352 = vmatprep.subr.mxu0 0.0
        %1353 = vmatpush1.msra.mxu0 0.0
        %1354 = vmatprep.subr.mxu0 0.0
        %1355 = vmatpush1.msra.mxu0 0.0
        %1356 = vmatprep.subr.mxu0 0.0
        %1357 = vmatpush1.msra.mxu0 0.0
        %1358 = vmatprep.subr.mxu0 0.0
        %1359 = vmatpush1.msra.mxu0 0.0
        %1360 = vmatprep.subr.mxu0 0.0
        %1361 = vmatpush1.msra.mxu0 0.0
        %1362 = vmatprep.subr.mxu0 0.0
        %1363 = vmatpush1.msra.mxu0 0.0
        %1364 = vmatprep.subr.mxu0 0.0
        %1365 = vmatpush1.msra.mxu0 0.0
        %1366 = vmatprep.subr.mxu0 0.0
        %1367 = vmatpush1.msra.mxu0 0.0
        %1368 = vmatprep.subr.mxu0 0.0
        %1369 = vmatpush1.msra.mxu0 0.0
        %1370 = vmatprep.subr.mxu0 0.0
        %1371 = vmatpush1.msra.mxu0 0.0
        %1372 = vmatprep.subr.mxu0 0.0
        %1373 = vmatpush1.msra.mxu0 0.0
        %1374 = vmatprep.subr.mxu0 0.0
        %1375 = vmatpush1.msra.mxu0 0.0
        %1376 = vmatprep.subr.mxu0 0.0
        %1377 = vmatpush1.msra.mxu0 0.0
        %1378 = vmatprep.subr.mxu0 0.0
        %1379 = vmatpush1.msra.mxu0 0.0
        %1380 = vmatprep.subr.mxu0 0.0
        %1381 = vmatpush1.msra.mxu0 0.0
        %1382 = vmatprep.subr.mxu0 0.0
        %1383 = vmatpush1.msra.mxu0 0.0
        %1384 = vmatprep.subr.mxu0 0.0
        %1385 = vmatpush1.msra.mxu0 0.0
        %1386 = vmatprep.subr.mxu0 0.0
        %1387 = vmatpush1.msra.mxu0 0.0
        %1388 = vmatprep.subr.mxu0 0.0
        %1389 = vmatpush1.msra.mxu0 0.0
        %1390 = vmatprep.subr.mxu0 0.0
        %1391 = vmatpush1.msra.mxu0 0.0
        %1392 = vmatprep.subr.mxu0 0.0
        %1393 = vmatpush1.msra.mxu0 0.0
        %1394 = vmatprep.subr.mxu0 0.0
        %1395 = vmatpush1.msra.mxu0 0.0
        %1396 = vmatprep.subr.mxu0 0.0
        %1397 = vmatpush1.msra.mxu0 0.0
        %1398 = vmatprep.subr.mxu0 0.0
        %1399 = vmatpush1.msra.mxu0 0.0
        %1400 = vmatprep.subr.mxu0 0.0
        %1401 = vmatpush1.msra.mxu0 0.0
        %1402 = vmatprep.subr.mxu0 0.0
        %1403 = vmatpush1.msra.mxu0 0.0
        %1404 = vmatprep.subr.mxu0 0.0
        %1405 = vmatpush1.msra.mxu0 0.0
        %1406 = vmatprep.subr.mxu0 0.0
        %1407 = vmatpush1.msra.mxu0 0.0
        %1408 = vmatprep.subr.mxu0 0.0
        %1409 = vmatpush1.msra.mxu0 0.0
        %1410 = vmatprep.mubr.f32.mxu0 0.0
        %1411 = vmatmul.mubr.f32.gmra.mrb[0].mxu0 %v1344
        %v1412 = vpop.f32.mrb[0].mxu0
        %v1413 = vadd.f32 %v1340, %v1412
        %v1414 = vpop.f32.mrb[0].mxu0
        %1415 = vdwg.mxu0
        %s1416 = scalar_lea.vmem [#allocation2], 192
        %v1417 = vld [vmem:[%s1416] sm:$0xff]
        %v1418 = vld [vmem:[%s1416 + $0x8] sm:$0xff]
        %v1419 = vld [vmem:[%s1416 + $0x10] sm:$0xff]
        %v1420 = vld [vmem:[%s1416 + $0x18] sm:$0xff]
        %s1421 = scalar_lea.vmem %s3, 6
        %v1422 = vld [vmem:[%s1421] sm:$0x1]
        %v1424 = vlaneseq
        %v1425 = vshrl.u32 %v1424, 7
        %v1426 = vsub.s32 0, %v1425
        %v1427 = vrot.slane %v1422, %v1426
        %1429 = vmatprep.subr.mxu0 0.0
        %1430 = vmatpush1.msra.mxu0 %v1417
        %1431 = vmatprep.subr.mxu0 0.0
        %1432 = vmatpush1.msra.mxu0 %v1418
        %1433 = vmatprep.subr.mxu0 0.0
        %1434 = vmatpush1.msra.mxu0 %v1419
        %1435 = vmatprep.subr.mxu0 0.0
        %1436 = vmatpush1.msra.mxu0 %v1420
        %1437 = vmatprep.subr.mxu0 0.0
        %1438 = vmatpush1.msra.mxu0 0.0
        %1439 = vmatprep.subr.mxu0 0.0
        %1440 = vmatpush1.msra.mxu0 0.0
        %1441 = vmatprep.subr.mxu0 0.0
        %1442 = vmatpush1.msra.mxu0 0.0
        %1443 = vmatprep.subr.mxu0 0.0
        %1444 = vmatpush1.msra.mxu0 0.0
        %1445 = vmatprep.subr.mxu0 0.0
        %1446 = vmatpush1.msra.mxu0 0.0
        %1447 = vmatprep.subr.mxu0 0.0
        %1448 = vmatpush1.msra.mxu0 0.0
        %1449 = vmatprep.subr.mxu0 0.0
        %1450 = vmatpush1.msra.mxu0 0.0
        %1451 = vmatprep.subr.mxu0 0.0
        %1452 = vmatpush1.msra.mxu0 0.0
        %1453 = vmatprep.subr.mxu0 0.0
        %1454 = vmatpush1.msra.mxu0 0.0
        %1455 = vmatprep.subr.mxu0 0.0
        %1456 = vmatpush1.msra.mxu0 0.0
        %1457 = vmatprep.subr.mxu0 0.0
        %1458 = vmatpush1.msra.mxu0 0.0
        %1459 = vmatprep.subr.mxu0 0.0
        %1460 = vmatpush1.msra.mxu0 0.0
        %1461 = vmatprep.subr.mxu0 0.0
        %1462 = vmatpush1.msra.mxu0 0.0
        %1463 = vmatprep.subr.mxu0 0.0
        %1464 = vmatpush1.msra.mxu0 0.0
        %1465 = vmatprep.subr.mxu0 0.0
        %1466 = vmatpush1.msra.mxu0 0.0
        %1467 = vmatprep.subr.mxu0 0.0
        %1468 = vmatpush1.msra.mxu0 0.0
        %1469 = vmatprep.subr.mxu0 0.0
        %1470 = vmatpush1.msra.mxu0 0.0
        %1471 = vmatprep.subr.mxu0 0.0
        %1472 = vmatpush1.msra.mxu0 0.0
        %1473 = vmatprep.subr.mxu0 0.0
        %1474 = vmatpush1.msra.mxu0 0.0
        %1475 = vmatprep.subr.mxu0 0.0
        %1476 = vmatpush1.msra.mxu0 0.0
        %1477 = vmatprep.subr.mxu0 0.0
        %1478 = vmatpush1.msra.mxu0 0.0
        %1479 = vmatprep.subr.mxu0 0.0
        %1480 = vmatpush1.msra.mxu0 0.0
        %1481 = vmatprep.subr.mxu0 0.0
        %1482 = vmatpush1.msra.mxu0 0.0
        %1483 = vmatprep.subr.mxu0 0.0
        %1484 = vmatpush1.msra.mxu0 0.0
        %1485 = vmatprep.subr.mxu0 0.0
        %1486 = vmatpush1.msra.mxu0 0.0
        %1487 = vmatprep.subr.mxu0 0.0
        %1488 = vmatpush1.msra.mxu0 0.0
        %1489 = vmatprep.subr.mxu0 0.0
        %1490 = vmatpush1.msra.mxu0 0.0
        %1491 = vmatprep.subr.mxu0 0.0
        %1492 = vmatpush1.msra.mxu0 0.0
        %1493 = vmatprep.mubr.f32.mxu0 0.0
        %1494 = vmatmul.mubr.f32.gmra.mrb[0].mxu0 %v456
        %v1495 = vpop.f32.mrb[0].mxu0
        %v1496 = vadd.f32 %v1427, %v1495
        %v1497 = vpop.f32.mrb[0].mxu0
        %1498 = vdwg.mxu0
        %s1499 = scalar_lea.vmem [#allocation2], 224
        %v1500 = vld [vmem:[%s1499] sm:$0xff]
        %v1501 = vld [vmem:[%s1499 + $0x8] sm:$0xff]
        %v1502 = vld [vmem:[%s1499 + $0x10] sm:$0xff]
        %v1503 = vld [vmem:[%s1499 + $0x18] sm:$0xff]
        %s1504 = scalar_lea.vmem %s3, 7
        %v1505 = vld [vmem:[%s1504] sm:$0x1]
        %v1507 = vlaneseq
        %v1508 = vshrl.u32 %v1507, 7
        %v1509 = vsub.s32 0, %v1508
        %v1510 = vrot.slane %v1505, %v1509
        %1512 = vmatprep.subr.mxu0 0.0
        %1513 = vmatpush1.msra.mxu0 %v1500
        %1514 = vmatprep.subr.mxu0 0.0
        %1515 = vmatpush1.msra.mxu0 %v1501
        %1516 = vmatprep.subr.mxu0 0.0
        %1517 = vmatpush1.msra.mxu0 %v1502
        %1518 = vmatprep.subr.mxu0 0.0
        %1519 = vmatpush1.msra.mxu0 %v1503
        %1520 = vmatprep.subr.mxu0 0.0
        %1521 = vmatpush1.msra.mxu0 0.0
        %1522 = vmatprep.subr.mxu0 0.0
        %1523 = vmatpush1.msra.mxu0 0.0
        %1524 = vmatprep.subr.mxu0 0.0
        %1525 = vmatpush1.msra.mxu0 0.0
        %1526 = vmatprep.subr.mxu0 0.0
        %1527 = vmatpush1.msra.mxu0 0.0
        %1528 = vmatprep.subr.mxu0 0.0
        %1529 = vmatpush1.msra.mxu0 0.0
        %1530 = vmatprep.subr.mxu0 0.0
        %1531 = vmatpush1.msra.mxu0 0.0
        %1532 = vmatprep.subr.mxu0 0.0
        %1533 = vmatpush1.msra.mxu0 0.0
        %1534 = vmatprep.subr.mxu0 0.0
        %1535 = vmatpush1.msra.mxu0 0.0
        %1536 = vmatprep.subr.mxu0 0.0
        %1537 = vmatpush1.msra.mxu0 0.0
        %1538 = vmatprep.subr.mxu0 0.0
        %1539 = vmatpush1.msra.mxu0 0.0
        %1540 = vmatprep.subr.mxu0 0.0
        %1541 = vmatpush1.msra.mxu0 0.0
        %1542 = vmatprep.subr.mxu0 0.0
        %1543 = vmatpush1.msra.mxu0 0.0
        %1544 = vmatprep.subr.mxu0 0.0
        %1545 = vmatpush1.msra.mxu0 0.0
        %1546 = vmatprep.subr.mxu0 0.0
        %1547 = vmatpush1.msra.mxu0 0.0
        %1548 = vmatprep.subr.mxu0 0.0
        %1549 = vmatpush1.msra.mxu0 0.0
        %1550 = vmatprep.subr.mxu0 0.0
        %1551 = vmatpush1.msra.mxu0 0.0
        %1552 = vmatprep.subr.mxu0 0.0
        %1553 = vmatpush1.msra.mxu0 0.0
        %1554 = vmatprep.subr.mxu0 0.0
        %1555 = vmatpush1.msra.mxu0 0.0
        %1556 = vmatprep.subr.mxu0 0.0
        %1557 = vmatpush1.msra.mxu0 0.0
        %1558 = vmatprep.subr.mxu0 0.0
        %1559 = vmatpush1.msra.mxu0 0.0
        %1560 = vmatprep.subr.mxu0 0.0
        %1561 = vmatpush1.msra.mxu0 0.0
        %1562 = vmatprep.subr.mxu0 0.0
        %1563 = vmatpush1.msra.mxu0 0.0
        %1564 = vmatprep.subr.mxu0 0.0
        %1565 = vmatpush1.msra.mxu0 0.0
        %1566 = vmatprep.subr.mxu0 0.0
        %1567 = vmatpush1.msra.mxu0 0.0
        %1568 = vmatprep.subr.mxu0 0.0
        %1569 = vmatpush1.msra.mxu0 0.0
        %1570 = vmatprep.subr.mxu0 0.0
        %1571 = vmatpush1.msra.mxu0 0.0
        %1572 = vmatprep.subr.mxu0 0.0
        %1573 = vmatpush1.msra.mxu0 0.0
        %1574 = vmatprep.subr.mxu0 0.0
        %1575 = vmatpush1.msra.mxu0 0.0
        %1576 = vmatprep.mubr.f32.mxu0 0.0
        %1577 = vmatmul.mubr.f32.gmra.mrb[0].mxu0 %v456
        %v1578 = vpop.f32.mrb[0].mxu0
        %v1579 = vadd.f32 %v1510, %v1578
        %v1580 = vpop.f32.mrb[0].mxu0
        %1581 = vdwg.mxu0
        %s1582 = scalar_lea.vmem [#allocation2], 256
        %v1583 = vld [vmem:[%s1582] sm:$0xff]
        %v1584 = vld [vmem:[%s1582 + $0x8] sm:$0xff]
        %v1585 = vld [vmem:[%s1582 + $0x10] sm:$0xff]
        %v1586 = vld [vmem:[%s1582 + $0x18] sm:$0xff]
        %s1587 = scalar_lea.vmem %s3, 8
        %v1588 = vld [vmem:[%s1587] sm:$0x1]
        %v1590 = vlaneseq
        %v1591 = vshrl.u32 %v1590, 7
        %v1592 = vsub.s32 0, %v1591
        %v1593 = vrot.slane %v1588, %v1592
        %1595 = vmatprep.subr.mxu0 0.0
        %1596 = vmatpush1.msra.mxu0 %v1583
        %1597 = vmatprep.subr.mxu0 0.0
        %1598 = vmatpush1.msra.mxu0 %v1584
        %1599 = vmatprep.subr.mxu0 0.0
        %1600 = vmatpush1.msra.mxu0 %v1585
        %1601 = vmatprep.subr.mxu0 0.0
        %1602 = vmatpush1.msra.mxu0 %v1586
        %1603 = vmatprep.subr.mxu0 0.0
        %1604 = vmatpush1.msra.mxu0 0.0
        %1605 = vmatprep.subr.mxu0 0.0
        %1606 = vmatpush1.msra.mxu0 0.0
        %1607 = vmatprep.subr.mxu0 0.0
        %1608 = vmatpush1.msra.mxu0 0.0
        %1609 = vmatprep.subr.mxu0 0.0
        %1610 = vmatpush1.msra.mxu0 0.0
        %1611 = vmatprep.subr.mxu0 0.0
        %1612 = vmatpush1.msra.mxu0 0.0
        %1613 = vmatprep.subr.mxu0 0.0
        %1614 = vmatpush1.msra.mxu0 0.0
        %1615 = vmatprep.subr.mxu0 0.0
        %1616 = vmatpush1.msra.mxu0 0.0
        %1617 = vmatprep.subr.mxu0 0.0
        %1618 = vmatpush1.msra.mxu0 0.0
        %1619 = vmatprep.subr.mxu0 0.0
        %1620 = vmatpush1.msra.mxu0 0.0
        %1621 = vmatprep.subr.mxu0 0.0
        %1622 = vmatpush1.msra.mxu0 0.0
        %1623 = vmatprep.subr.mxu0 0.0
        %1624 = vmatpush1.msra.mxu0 0.0
        %1625 = vmatprep.subr.mxu0 0.0
        %1626 = vmatpush1.msra.mxu0 0.0
        %1627 = vmatprep.subr.mxu0 0.0
        %1628 = vmatpush1.msra.mxu0 0.0
        %1629 = vmatprep.subr.mxu0 0.0
        %1630 = vmatpush1.msra.mxu0 0.0
        %1631 = vmatprep.subr.mxu0 0.0
        %1632 = vmatpush1.msra.mxu0 0.0
        %1633 = vmatprep.subr.mxu0 0.0
        %1634 = vmatpush1.msra.mxu0 0.0
        %1635 = vmatprep.subr.mxu0 0.0
        %1636 = vmatpush1.msra.mxu0 0.0
        %1637 = vmatprep.subr.mxu0 0.0
        %1638 = vmatpush1.msra.mxu0 0.0
        %1639 = vmatprep.subr.mxu0 0.0
        %1640 = vmatpush1.msra.mxu0 0.0
        %1641 = vmatprep.subr.mxu0 0.0
        %1642 = vmatpush1.msra.mxu0 0.0
        %1643 = vmatprep.subr.mxu0 0.0
        %1644 = vmatpush1.msra.mxu0 0.0
        %1645 = vmatprep.subr.mxu0 0.0
        %1646 = vmatpush1.msra.mxu0 0.0
        %1647 = vmatprep.subr.mxu0 0.0
        %1648 = vmatpush1.msra.mxu0 0.0
        %1649 = vmatprep.subr.mxu0 0.0
        %1650 = vmatpush1.msra.mxu0 0.0
        %1651 = vmatprep.subr.mxu0 0.0
        %1652 = vmatpush1.msra.mxu0 0.0
        %1653 = vmatprep.subr.mxu0 0.0
        %1654 = vmatpush1.msra.mxu0 0.0
        %1655 = vmatprep.subr.mxu0 0.0
        %1656 = vmatpush1.msra.mxu0 0.0
        %1657 = vmatprep.subr.mxu0 0.0
        %1658 = vmatpush1.msra.mxu0 0.0
        %1659 = vmatprep.mubr.f32.mxu0 0.0
        %1660 = vmatmul.mubr.f32.gmra.mrb[0].mxu0 %v456
        %v1661 = vpop.f32.mrb[0].mxu0
        %v1662 = vadd.f32 %v1593, %v1661
        %v1663 = vpop.f32.mrb[0].mxu0
        %1664 = vdwg.mxu0
        %v1666 = vsel %vm694, %v1496, 0
        %v1669 = vsel %vm694, %v1579, 0
        %1671 = vmatprep.subr.mxu0 0.0
        %1672 = vmatpush1.xpose.msra.mxu0 %v1669
        %1673 = vmatprep.subr.mxu0 0.0
        %1674 = vmatpush1.xpose.msra.mxu0 0.0
        %1675 = vmatprep.subr.mxu0 0.0
        %1676 = vmatpush1.xpose.msra.mxu0 0.0
        %1677 = vmatprep.subr.mxu0 0.0
        %1678 = vmatpush1.xpose.msra.mxu0 0.0
        %1679 = vmatprep.subr.mxu0 0.0
        %1680 = vmatpush1.xpose.msra.mxu0 0.0
        %1681 = vmatprep.subr.mxu0 0.0
        %1682 = vmatpush1.xpose.msra.mxu0 0.0
        %1683 = vmatprep.subr.mxu0 0.0
        %1684 = vmatpush1.xpose.msra.mxu0 0.0
        %1685 = vmatprep.subr.mxu0 0.0
        %1686 = vmatpush1.xpose.msra.mxu0 0.0
        %1687 = vmatprep.subr.mxu0 0.0
        %1688 = vmatpush1.xpose.msra.mxu0 0.0
        %1689 = vmatprep.subr.mxu0 0.0
        %1690 = vmatpush1.xpose.msra.mxu0 0.0
        %1691 = vmatprep.subr.mxu0 0.0
        %1692 = vmatpush1.xpose.msra.mxu0 0.0
        %1693 = vmatprep.subr.mxu0 0.0
        %1694 = vmatpush1.xpose.msra.mxu0 0.0
        %1695 = vmatprep.subr.mxu0 0.0
        %1696 = vmatpush1.xpose.msra.mxu0 0.0
        %1697 = vmatprep.subr.mxu0 0.0
        %1698 = vmatpush1.xpose.msra.mxu0 0.0
        %1699 = vmatprep.subr.mxu0 0.0
        %1700 = vmatpush1.xpose.msra.mxu0 0.0
        %1701 = vmatprep.subr.mxu0 0.0
        %1702 = vmatpush1.xpose.msra.mxu0 0.0
        %1703 = vmatprep.subr.mxu0 0.0
        %1704 = vmatpush1.xpose.msra.mxu0 0.0
        %1705 = vmatprep.subr.mxu0 0.0
        %1706 = vmatpush1.xpose.msra.mxu0 0.0
        %1707 = vmatprep.subr.mxu0 0.0
        %1708 = vmatpush1.xpose.msra.mxu0 0.0
        %1709 = vmatprep.subr.mxu0 0.0
        %1710 = vmatpush1.xpose.msra.mxu0 0.0
        %1711 = vmatprep.subr.mxu0 0.0
        %1712 = vmatpush1.xpose.msra.mxu0 0.0
        %1713 = vmatprep.subr.mxu0 0.0
        %1714 = vmatpush1.xpose.msra.mxu0 0.0
        %1715 = vmatprep.subr.mxu0 0.0
        %1716 = vmatpush1.xpose.msra.mxu0 0.0
        %1717 = vmatprep.subr.mxu0 0.0
        %1718 = vmatpush1.xpose.msra.mxu0 0.0
        %1719 = vmatprep.subr.mxu0 0.0
        %1720 = vmatpush1.xpose.msra.mxu0 0.0
        %1721 = vmatprep.subr.mxu0 0.0
        %1722 = vmatpush1.xpose.msra.mxu0 0.0
        %1723 = vmatprep.subr.mxu0 0.0
        %1724 = vmatpush1.xpose.msra.mxu0 0.0
        %1725 = vmatprep.subr.mxu0 0.0
        %1726 = vmatpush1.xpose.msra.mxu0 0.0
        %1727 = vmatprep.subr.mxu0 0.0
        %1728 = vmatpush1.xpose.msra.mxu0 0.0
        %1729 = vmatprep.subr.mxu0 0.0
        %1730 = vmatpush1.xpose.msra.mxu0 0.0
        %1731 = vmatprep.subr.mxu0 0.0
        %1732 = vmatpush1.xpose.msra.mxu0 0.0
        %1733 = vmatprep.subr.mxu0 0.0
        %1734 = vmatpush1.xpose.msra.mxu0 0.0
        %1735 = vmatprep.mubr.f32.mxu0 0.0
        %1736 = vmatmul.mubr.f32.gmra.mrb[0].mxu0 %v1666
        %v1737 = vpop.f32.mrb[0].mxu0
        %v1738 = vadd.f32 0.0, %v1737
        %v1739 = vpop.f32.mrb[0].mxu0
        %1740 = vdwg.mxu0
        %v1741 = vmul.f32 %v1738, 0.35355338
        %v1742 = vadd.f32 %v1741, %v415
        %v1743 = vsel %vm694, %v1742, -inf
        %1744 = vmax.xlane.f32.xlu0 %v1743
        %v1745 = vpop.xlane.xlu0 %1744
        %v1746 = vsub.f32 %v1742, %v1745
        %v1747 = vmul.f32 %v1746, 1.442695
        %v1748 = vpow.pop %v1747
        %v1749 = vsel %vm694, %v1748, 0.0
        %1750 = vadd.xlane.f32.xlu0 %v1749
        %v1751 = vpop.xlane.xlu0 %1750
        %v1752 = vrcp.pop %v1751
        %v1753 = vmul.f32 %v1748, %v1752
        %v1755 = vsel %vm694, %v1753, 0
        %1757 = vmatprep.subr.mxu0 0.0
        %1758 = vmatpush1.msra.mxu0 %v1662
        %1759 = vmatprep.subr.mxu0 0.0
        %1760 = vmatpush1.msra.mxu0 0.0
        %1761 = vmatprep.subr.mxu0 0.0
        %1762 = vmatpush1.msra.mxu0 0.0
        %1763 = vmatprep.subr.mxu0 0.0
        %1764 = vmatpush1.msra.mxu0 0.0
        %1765 = vmatprep.subr.mxu0 0.0
        %1766 = vmatpush1.msra.mxu0 0.0
        %1767 = vmatprep.subr.mxu0 0.0
        %1768 = vmatpush1.msra.mxu0 0.0
        %1769 = vmatprep.subr.mxu0 0.0
        %1770 = vmatpush1.msra.mxu0 0.0
        %1771 = vmatprep.subr.mxu0 0.0
        %1772 = vmatpush1.msra.mxu0 0.0
        %1773 = vmatprep.subr.mxu0 0.0
        %1774 = vmatpush1.msra.mxu0 0.0
        %1775 = vmatprep.subr.mxu0 0.0
        %1776 = vmatpush1.msra.mxu0 0.0
        %1777 = vmatprep.subr.mxu0 0.0
        %1778 = vmatpush1.msra.mxu0 0.0
        %1779 = vmatprep.subr.mxu0 0.0
        %1780 = vmatpush1.msra.mxu0 0.0
        %1781 = vmatprep.subr.mxu0 0.0
        %1782 = vmatpush1.msra.mxu0 0.0
        %1783 = vmatprep.subr.mxu0 0.0
        %1784 = vmatpush1.msra.mxu0 0.0
        %1785 = vmatprep.subr.mxu0 0.0
        %1786 = vmatpush1.msra.mxu0 0.0
        %1787 = vmatprep.subr.mxu0 0.0
        %1788 = vmatpush1.msra.mxu0 0.0
        %1789 = vmatprep.subr.mxu0 0.0
        %1790 = vmatpush1.msra.mxu0 0.0
        %1791 = vmatprep.subr.mxu0 0.0
        %1792 = vmatpush1.msra.mxu0 0.0
        %1793 = vmatprep.subr.mxu0 0.0
        %1794 = vmatpush1.msra.mxu0 0.0
        %1795 = vmatprep.subr.mxu0 0.0
        %1796 = vmatpush1.msra.mxu0 0.0
        %1797 = vmatprep.subr.mxu0 0.0
        %1798 = vmatpush1.msra.mxu0 0.0
        %1799 = vmatprep.subr.mxu0 0.0
        %1800 = vmatpush1.msra.mxu0 0.0
        %1801 = vmatprep.subr.mxu0 0.0
        %1802 = vmatpush1.msra.mxu0 0.0
        %1803 = vmatprep.subr.mxu0 0.0
        %1804 = vmatpush1.msra.mxu0 0.0
        %1805 = vmatprep.subr.mxu0 0.0
        %1806 = vmatpush1.msra.mxu0 0.0
        %1807 = vmatprep.subr.mxu0 0.0
        %1808 = vmatpush1.msra.mxu0 0.0
        %1809 = vmatprep.subr.mxu0 0.0
        %1810 = vmatpush1.msra.mxu0 0.0
        %1811 = vmatprep.subr.mxu0 0.0
        %1812 = vmatpush1.msra.mxu0 0.0
        %1813 = vmatprep.subr.mxu0 0.0
        %1814 = vmatpush1.msra.mxu0 0.0
        %1815 = vmatprep.subr.mxu0 0.0
        %1816 = vmatpush1.msra.mxu0 0.0
        %1817 = vmatprep.subr.mxu0 0.0
        %1818 = vmatpush1.msra.mxu0 0.0
        %1819 = vmatprep.subr.mxu0 0.0
        %1820 = vmatpush1.msra.mxu0 0.0
        %1821 = vmatprep.mubr.f32.mxu0 0.0
        %1822 = vmatmul.mubr.f32.gmra.mrb[0].mxu0 %v1755
        %v1823 = vpop.f32.mrb[0].mxu0
        %v1824 = vadd.f32 0.0, %v1823
        %v1825 = vpop.f32.mrb[0].mxu0
        %1826 = vdwg.mxu0
        %v1827 = vld [vmem:[#allocation4 + $0x10] sm:$0xff]
        %v1829 = vsel %vm694, %v1824, 0
        %1831 = vmatprep.subr.mxu0 0.0
        %1832 = vmatpush1.msra.mxu0 %v1827
        %1833 = vmatprep.subr.mxu0 0.0
        %1834 = vmatpush1.msra.mxu0 0.0
        %1835 = vmatprep.subr.mxu0 0.0
        %1836 = vmatpush1.msra.mxu0 0.0
        %1837 = vmatprep.subr.mxu0 0.0
        %1838 = vmatpush1.msra.mxu0 0.0
        %1839 = vmatprep.subr.mxu0 0.0
        %1840 = vmatpush1.msra.mxu0 0.0
        %1841 = vmatprep.subr.mxu0 0.0
        %1842 = vmatpush1.msra.mxu0 0.0
        %1843 = vmatprep.subr.mxu0 0.0
        %1844 = vmatpush1.msra.mxu0 0.0
        %1845 = vmatprep.subr.mxu0 0.0
        %1846 = vmatpush1.msra.mxu0 0.0
        %1847 = vmatprep.subr.mxu0 0.0
        %1848 = vmatpush1.msra.mxu0 0.0
        %1849 = vmatprep.subr.mxu0 0.0
        %1850 = vmatpush1.msra.mxu0 0.0
        %1851 = vmatprep.subr.mxu0 0.0
        %1852 = vmatpush1.msra.mxu0 0.0
        %1853 = vmatprep.subr.mxu0 0.0
        %1854 = vmatpush1.msra.mxu0 0.0
        %1855 = vmatprep.subr.mxu0 0.0
        %1856 = vmatpush1.msra.mxu0 0.0
        %1857 = vmatprep.subr.mxu0 0.0
        %1858 = vmatpush1.msra.mxu0 0.0
        %1859 = vmatprep.subr.mxu0 0.0
        %1860 = vmatpush1.msra.mxu0 0.0
        %1861 = vmatprep.subr.mxu0 0.0
        %1862 = vmatpush1.msra.mxu0 0.0
        %1863 = vmatprep.subr.mxu0 0.0
        %1864 = vmatpush1.msra.mxu0 0.0
        %1865 = vmatprep.subr.mxu0 0.0
        %1866 = vmatpush1.msra.mxu0 0.0
        %1867 = vmatprep.subr.mxu0 0.0
        %1868 = vmatpush1.msra.mxu0 0.0
        %1869 = vmatprep.subr.mxu0 0.0
        %1870 = vmatpush1.msra.mxu0 0.0
        %1871 = vmatprep.subr.mxu0 0.0
        %1872 = vmatpush1.msra.mxu0 0.0
        %1873 = vmatprep.subr.mxu0 0.0
        %1874 = vmatpush1.msra.mxu0 0.0
        %1875 = vmatprep.subr.mxu0 0.0
        %1876 = vmatpush1.msra.mxu0 0.0
        %1877 = vmatprep.subr.mxu0 0.0
        %1878 = vmatpush1.msra.mxu0 0.0
        %1879 = vmatprep.subr.mxu0 0.0
        %1880 = vmatpush1.msra.mxu0 0.0
        %1881 = vmatprep.subr.mxu0 0.0
        %1882 = vmatpush1.msra.mxu0 0.0
        %1883 = vmatprep.subr.mxu0 0.0
        %1884 = vmatpush1.msra.mxu0 0.0
        %1885 = vmatprep.subr.mxu0 0.0
        %1886 = vmatpush1.msra.mxu0 0.0
        %1887 = vmatprep.subr.mxu0 0.0
        %1888 = vmatpush1.msra.mxu0 0.0
        %1889 = vmatprep.subr.mxu0 0.0
        %1890 = vmatpush1.msra.mxu0 0.0
        %1891 = vmatprep.subr.mxu0 0.0
        %1892 = vmatpush1.msra.mxu0 0.0
        %1893 = vmatprep.subr.mxu0 0.0
        %1894 = vmatpush1.msra.mxu0 0.0
        %1895 = vmatprep.mubr.f32.mxu0 0.0
        %1896 = vmatmul.mubr.f32.gmra.mrb[0].mxu0 %v1829
        %v1897 = vpop.f32.mrb[0].mxu0
        %v1898 = vadd.f32 0.0, %v1897
        %v1899 = vpop.f32.mrb[0].mxu0
        %1900 = vdwg.mxu0
        %v1901 = vadd.f32 %v1413, %v1898
        %s1902 = scalar_lea.vmem [#allocation2], 288
        %v1903 = vld [vmem:[%s1902] sm:$0xff]
        %v1904 = vld [vmem:[%s1902 + $0x8] sm:$0xff]
        %v1905 = vld [vmem:[%s1902 + $0x10] sm:$0xff]
        %v1906 = vld [vmem:[%s1902 + $0x18] sm:$0xff]
        %s1907 = scalar_lea.vmem %s3, 9
        %v1908 = vld [vmem:[%s1907] sm:$0x1]
        %v1910 = vlaneseq
        %v1911 = vshrl.u32 %v1910, 7
        %v1912 = vsub.s32 0, %v1911
        %v1913 = vrot.slane %v1908, %v1912
        %1915 = vmatprep.subr.mxu0 0.0
        %1916 = vmatpush1.msra.mxu0 %v1903
        %1917 = vmatprep.subr.mxu0 0.0
        %1918 = vmatpush1.msra.mxu0 %v1904
        %1919 = vmatprep.subr.mxu0 0.0
        %1920 = vmatpush1.msra.mxu0 %v1905
        %1921 = vmatprep.subr.mxu0 0.0
        %1922 = vmatpush1.msra.mxu0 %v1906
        %1923 = vmatprep.subr.mxu0 0.0
        %1924 = vmatpush1.msra.mxu0 0.0
        %1925 = vmatprep.subr.mxu0 0.0
        %1926 = vmatpush1.msra.mxu0 0.0
        %1927 = vmatprep.subr.mxu0 0.0
        %1928 = vmatpush1.msra.mxu0 0.0
        %1929 = vmatprep.subr.mxu0 0.0
        %1930 = vmatpush1.msra.mxu0 0.0
        %1931 = vmatprep.subr.mxu0 0.0
        %1932 = vmatpush1.msra.mxu0 0.0
        %1933 = vmatprep.subr.mxu0 0.0
        %1934 = vmatpush1.msra.mxu0 0.0
        %1935 = vmatprep.subr.mxu0 0.0
        %1936 = vmatpush1.msra.mxu0 0.0
        %1937 = vmatprep.subr.mxu0 0.0
        %1938 = vmatpush1.msra.mxu0 0.0
        %1939 = vmatprep.subr.mxu0 0.0
        %1940 = vmatpush1.msra.mxu0 0.0
        %1941 = vmatprep.subr.mxu0 0.0
        %1942 = vmatpush1.msra.mxu0 0.0
        %1943 = vmatprep.subr.mxu0 0.0
        %1944 = vmatpush1.msra.mxu0 0.0
        %1945 = vmatprep.subr.mxu0 0.0
        %1946 = vmatpush1.msra.mxu0 0.0
        %1947 = vmatprep.subr.mxu0 0.0
        %1948 = vmatpush1.msra.mxu0 0.0
        %1949 = vmatprep.subr.mxu0 0.0
        %1950 = vmatpush1.msra.mxu0 0.0
        %1951 = vmatprep.subr.mxu0 0.0
        %1952 = vmatpush1.msra.mxu0 0.0
        %1953 = vmatprep.subr.mxu0 0.0
        %1954 = vmatpush1.msra.mxu0 0.0
        %1955 = vmatprep.subr.mxu0 0.0
        %1956 = vmatpush1.msra.mxu0 0.0
        %1957 = vmatprep.subr.mxu0 0.0
        %1958 = vmatpush1.msra.mxu0 0.0
        %1959 = vmatprep.subr.mxu0 0.0
        %1960 = vmatpush1.msra.mxu0 0.0
        %1961 = vmatprep.subr.mxu0 0.0
        %1962 = vmatpush1.msra.mxu0 0.0
        %1963 = vmatprep.subr.mxu0 0.0
        %1964 = vmatpush1.msra.mxu0 0.0
        %1965 = vmatprep.subr.mxu0 0.0
        %1966 = vmatpush1.msra.mxu0 0.0
        %1967 = vmatprep.subr.mxu0 0.0
        %1968 = vmatpush1.msra.mxu0 0.0
        %1969 = vmatprep.subr.mxu0 0.0
        %1970 = vmatpush1.msra.mxu0 0.0
        %1971 = vmatprep.subr.mxu0 0.0
        %1972 = vmatpush1.msra.mxu0 0.0
        %1973 = vmatprep.subr.mxu0 0.0
        %1974 = vmatpush1.msra.mxu0 0.0
        %1975 = vmatprep.subr.mxu0 0.0
        %1976 = vmatpush1.msra.mxu0 0.0
        %1977 = vmatprep.subr.mxu0 0.0
        %1978 = vmatpush1.msra.mxu0 0.0
        %1979 = vmatprep.mubr.f32.mxu0 0.0
        %1980 = vmatmul.mubr.f32.gmra.mrb[0].mxu0 %v456
        %v1981 = vpop.f32.mrb[0].mxu0
        %v1982 = vadd.f32 %v1913, %v1981
        %v1983 = vpop.f32.mrb[0].mxu0
        %1984 = vdwg.mxu0
        %s1985 = scalar_lea.vmem [#allocation2], 320
        %v1986 = vld [vmem:[%s1985] sm:$0xff]
        %v1987 = vld [vmem:[%s1985 + $0x8] sm:$0xff]
        %v1988 = vld [vmem:[%s1985 + $0x10] sm:$0xff]
        %v1989 = vld [vmem:[%s1985 + $0x18] sm:$0xff]
        %s1990 = scalar_lea.vmem %s3, 10
        %v1991 = vld [vmem:[%s1990] sm:$0x1]
        %v1993 = vlaneseq
        %v1994 = vshrl.u32 %v1993, 7
        %v1995 = vsub.s32 0, %v1994
        %v1996 = vrot.slane %v1991, %v1995
        %1998 = vmatprep.subr.mxu0 0.0
        %1999 = vmatpush1.msra.mxu0 %v1986
        %2000 = vmatprep.subr.mxu0 0.0
        %2001 = vmatpush1.msra.mxu0 %v1987
        %2002 = vmatprep.subr.mxu0 0.0
        %2003 = vmatpush1.msra.mxu0 %v1988
        %2004 = vmatprep.subr.mxu0 0.0
        %2005 = vmatpush1.msra.mxu0 %v1989
        %2006 = vmatprep.subr.mxu0 0.0
        %2007 = vmatpush1.msra.mxu0 0.0
        %2008 = vmatprep.subr.mxu0 0.0
        %2009 = vmatpush1.msra.mxu0 0.0
        %2010 = vmatprep.subr.mxu0 0.0
        %2011 = vmatpush1.msra.mxu0 0.0
        %2012 = vmatprep.subr.mxu0 0.0
        %2013 = vmatpush1.msra.mxu0 0.0
        %2014 = vmatprep.subr.mxu0 0.0
        %2015 = vmatpush1.msra.mxu0 0.0
        %2016 = vmatprep.subr.mxu0 0.0
        %2017 = vmatpush1.msra.mxu0 0.0
        %2018 = vmatprep.subr.mxu0 0.0
        %2019 = vmatpush1.msra.mxu0 0.0
        %2020 = vmatprep.subr.mxu0 0.0
        %2021 = vmatpush1.msra.mxu0 0.0
        %2022 = vmatprep.subr.mxu0 0.0
        %2023 = vmatpush1.msra.mxu0 0.0
        %2024 = vmatprep.subr.mxu0 0.0
        %2025 = vmatpush1.msra.mxu0 0.0
        %2026 = vmatprep.subr.mxu0 0.0
        %2027 = vmatpush1.msra.mxu0 0.0
        %2028 = vmatprep.subr.mxu0 0.0
        %2029 = vmatpush1.msra.mxu0 0.0
        %2030 = vmatprep.subr.mxu0 0.0
        %2031 = vmatpush1.msra.mxu0 0.0
        %2032 = vmatprep.subr.mxu0 0.0
        %2033 = vmatpush1.msra.mxu0 0.0
        %2034 = vmatprep.subr.mxu0 0.0
        %2035 = vmatpush1.msra.mxu0 0.0
        %2036 = vmatprep.subr.mxu0 0.0
        %2037 = vmatpush1.msra.mxu0 0.0
        %2038 = vmatprep.subr.mxu0 0.0
        %2039 = vmatpush1.msra.mxu0 0.0
        %2040 = vmatprep.subr.mxu0 0.0
        %2041 = vmatpush1.msra.mxu0 0.0
        %2042 = vmatprep.subr.mxu0 0.0
        %2043 = vmatpush1.msra.mxu0 0.0
        %2044 = vmatprep.subr.mxu0 0.0
        %2045 = vmatpush1.msra.mxu0 0.0
        %2046 = vmatprep.subr.mxu0 0.0
        %2047 = vmatpush1.msra.mxu0 0.0
        %2048 = vmatprep.subr.mxu0 0.0
        %2049 = vmatpush1.msra.mxu0 0.0
        %2050 = vmatprep.subr.mxu0 0.0
        %2051 = vmatpush1.msra.mxu0 0.0
        %2052 = vmatprep.subr.mxu0 0.0
        %2053 = vmatpush1.msra.mxu0 0.0
        %2054 = vmatprep.subr.mxu0 0.0
        %2055 = vmatpush1.msra.mxu0 0.0
        %2056 = vmatprep.subr.mxu0 0.0
        %2057 = vmatpush1.msra.mxu0 0.0
        %2058 = vmatprep.subr.mxu0 0.0
        %2059 = vmatpush1.msra.mxu0 0.0
        %2060 = vmatprep.subr.mxu0 0.0
        %2061 = vmatpush1.msra.mxu0 0.0
        %2062 = vmatprep.mubr.f32.mxu0 0.0
        %2063 = vmatmul.mubr.f32.gmra.mrb[0].mxu0 %v456
        %v2064 = vpop.f32.mrb[0].mxu0
        %v2065 = vadd.f32 %v1996, %v2064
        %v2066 = vpop.f32.mrb[0].mxu0
        %2067 = vdwg.mxu0
        %s2068 = scalar_lea.vmem [#allocation2], 352
        %v2069 = vld [vmem:[%s2068] sm:$0xff]
        %v2070 = vld [vmem:[%s2068 + $0x8] sm:$0xff]
        %v2071 = vld [vmem:[%s2068 + $0x10] sm:$0xff]
        %v2072 = vld [vmem:[%s2068 + $0x18] sm:$0xff]
        %s2073 = scalar_lea.vmem %s3, 11
        %v2074 = vld [vmem:[%s2073] sm:$0x1]
        %v2076 = vlaneseq
        %v2077 = vshrl.u32 %v2076, 7
        %v2078 = vsub.s32 0, %v2077
        %v2079 = vrot.slane %v2074, %v2078
        %2081 = vmatprep.subr.mxu0 0.0
        %2082 = vmatpush1.msra.mxu0 %v2069
        %2083 = vmatprep.subr.mxu0 0.0
        %2084 = vmatpush1.msra.mxu0 %v2070
        %2085 = vmatprep.subr.mxu0 0.0
        %2086 = vmatpush1.msra.mxu0 %v2071
        %2087 = vmatprep.subr.mxu0 0.0
        %2088 = vmatpush1.msra.mxu0 %v2072
        %2089 = vmatprep.subr.mxu0 0.0
        %2090 = vmatpush1.msra.mxu0 0.0
        %2091 = vmatprep.subr.mxu0 0.0
        %2092 = vmatpush1.msra.mxu0 0.0
        %2093 = vmatprep.subr.mxu0 0.0
        %2094 = vmatpush1.msra.mxu0 0.0
        %2095 = vmatprep.subr.mxu0 0.0
        %2096 = vmatpush1.msra.mxu0 0.0
        %2097 = vmatprep.subr.mxu0 0.0
        %2098 = vmatpush1.msra.mxu0 0.0
        %2099 = vmatprep.subr.mxu0 0.0
        %2100 = vmatpush1.msra.mxu0 0.0
        %2101 = vmatprep.subr.mxu0 0.0
        %2102 = vmatpush1.msra.mxu0 0.0
        %2103 = vmatprep.subr.mxu0 0.0
        %2104 = vmatpush1.msra.mxu0 0.0
        %2105 = vmatprep.subr.mxu0 0.0
        %2106 = vmatpush1.msra.mxu0 0.0
        %2107 = vmatprep.subr.mxu0 0.0
        %2108 = vmatpush1.msra.mxu0 0.0
        %2109 = vmatprep.subr.mxu0 0.0
        %2110 = vmatpush1.msra.mxu0 0.0
        %2111 = vmatprep.subr.mxu0 0.0
        %2112 = vmatpush1.msra.mxu0 0.0
        %2113 = vmatprep.subr.mxu0 0.0
        %2114 = vmatpush1.msra.mxu0 0.0
        %2115 = vmatprep.subr.mxu0 0.0
        %2116 = vmatpush1.msra.mxu0 0.0
        %2117 = vmatprep.subr.mxu0 0.0
        %2118 = vmatpush1.msra.mxu0 0.0
        %2119 = vmatprep.subr.mxu0 0.0
        %2120 = vmatpush1.msra.mxu0 0.0
        %2121 = vmatprep.subr.mxu0 0.0
        %2122 = vmatpush1.msra.mxu0 0.0
        %2123 = vmatprep.subr.mxu0 0.0
        %2124 = vmatpush1.msra.mxu0 0.0
        %2125 = vmatprep.subr.mxu0 0.0
        %2126 = vmatpush1.msra.mxu0 0.0
        %2127 = vmatprep.subr.mxu0 0.0
        %2128 = vmatpush1.msra.mxu0 0.0
        %2129 = vmatprep.subr.mxu0 0.0
        %2130 = vmatpush1.msra.mxu0 0.0
        %2131 = vmatprep.subr.mxu0 0.0
        %2132 = vmatpush1.msra.mxu0 0.0
        %2133 = vmatprep.subr.mxu0 0.0
        %2134 = vmatpush1.msra.mxu0 0.0
        %2135 = vmatprep.subr.mxu0 0.0
        %2136 = vmatpush1.msra.mxu0 0.0
        %2137 = vmatprep.subr.mxu0 0.0
        %2138 = vmatpush1.msra.mxu0 0.0
        %2139 = vmatprep.subr.mxu0 0.0
        %2140 = vmatpush1.msra.mxu0 0.0
        %2141 = vmatprep.subr.mxu0 0.0
        %2142 = vmatpush1.msra.mxu0 0.0
        %2143 = vmatprep.subr.mxu0 0.0
        %2144 = vmatpush1.msra.mxu0 0.0
        %2145 = vmatprep.mubr.f32.mxu0 0.0
        %2146 = vmatmul.mubr.f32.gmra.mrb[0].mxu0 %v456
        %v2147 = vpop.f32.mrb[0].mxu0
        %v2148 = vadd.f32 %v2079, %v2147
        %v2149 = vpop.f32.mrb[0].mxu0
        %2150 = vdwg.mxu0
        %v2152 = vsel %vm694, %v1982, 0
        %v2155 = vsel %vm694, %v2065, 0
        %2157 = vmatprep.subr.mxu0 0.0
        %2158 = vmatpush1.xpose.msra.mxu0 %v2155
        %2159 = vmatprep.subr.mxu0 0.0
        %2160 = vmatpush1.xpose.msra.mxu0 0.0
        %2161 = vmatprep.subr.mxu0 0.0
        %2162 = vmatpush1.xpose.msra.mxu0 0.0
        %2163 = vmatprep.subr.mxu0 0.0
        %2164 = vmatpush1.xpose.msra.mxu0 0.0
        %2165 = vmatprep.subr.mxu0 0.0
        %2166 = vmatpush1.xpose.msra.mxu0 0.0
        %2167 = vmatprep.subr.mxu0 0.0
        %2168 = vmatpush1.xpose.msra.mxu0 0.0
        %2169 = vmatprep.subr.mxu0 0.0
        %2170 = vmatpush1.xpose.msra.mxu0 0.0
        %2171 = vmatprep.subr.mxu0 0.0
        %2172 = vmatpush1.xpose.msra.mxu0 0.0
        %2173 = vmatprep.subr.mxu0 0.0
        %2174 = vmatpush1.xpose.msra.mxu0 0.0
        %2175 = vmatprep.subr.mxu0 0.0
        %2176 = vmatpush1.xpose.msra.mxu0 0.0
        %2177 = vmatprep.subr.mxu0 0.0
        %2178 = vmatpush1.xpose.msra.mxu0 0.0
        %2179 = vmatprep.subr.mxu0 0.0
        %2180 = vmatpush1.xpose.msra.mxu0 0.0
        %2181 = vmatprep.subr.mxu0 0.0
        %2182 = vmatpush1.xpose.msra.mxu0 0.0
        %2183 = vmatprep.subr.mxu0 0.0
        %2184 = vmatpush1.xpose.msra.mxu0 0.0
        %2185 = vmatprep.subr.mxu0 0.0
        %2186 = vmatpush1.xpose.msra.mxu0 0.0
        %2187 = vmatprep.subr.mxu0 0.0
        %2188 = vmatpush1.xpose.msra.mxu0 0.0
        %2189 = vmatprep.subr.mxu0 0.0
        %2190 = vmatpush1.xpose.msra.mxu0 0.0
        %2191 = vmatprep.subr.mxu0 0.0
        %2192 = vmatpush1.xpose.msra.mxu0 0.0
        %2193 = vmatprep.subr.mxu0 0.0
        %2194 = vmatpush1.xpose.msra.mxu0 0.0
        %2195 = vmatprep.subr.mxu0 0.0
        %2196 = vmatpush1.xpose.msra.mxu0 0.0
        %2197 = vmatprep.subr.mxu0 0.0
        %2198 = vmatpush1.xpose.msra.mxu0 0.0
        %2199 = vmatprep.subr.mxu0 0.0
        %2200 = vmatpush1.xpose.msra.mxu0 0.0
        %2201 = vmatprep.subr.mxu0 0.0
        %2202 = vmatpush1.xpose.msra.mxu0 0.0
        %2203 = vmatprep.subr.mxu0 0.0
        %2204 = vmatpush1.xpose.msra.mxu0 0.0
        %2205 = vmatprep.subr.mxu0 0.0
        %2206 = vmatpush1.xpose.msra.mxu0 0.0
        %2207 = vmatprep.subr.mxu0 0.0
        %2208 = vmatpush1.xpose.msra.mxu0 0.0
        %2209 = vmatprep.subr.mxu0 0.0
        %2210 = vmatpush1.xpose.msra.mxu0 0.0
        %2211 = vmatprep.subr.mxu0 0.0
        %2212 = vmatpush1.xpose.msra.mxu0 0.0
        %2213 = vmatprep.subr.mxu0 0.0
        %2214 = vmatpush1.xpose.msra.mxu0 0.0
        %2215 = vmatprep.subr.mxu0 0.0
        %2216 = vmatpush1.xpose.msra.mxu0 0.0
        %2217 = vmatprep.subr.mxu0 0.0
        %2218 = vmatpush1.xpose.msra.mxu0 0.0
        %2219 = vmatprep.subr.mxu0 0.0
        %2220 = vmatpush1.xpose.msra.mxu0 0.0
        %2221 = vmatprep.mubr.f32.mxu0 0.0
        %2222 = vmatmul.mubr.f32.gmra.mrb[0].mxu0 %v2152
        %v2223 = vpop.f32.mrb[0].mxu0
        %v2224 = vadd.f32 0.0, %v2223
        %v2225 = vpop.f32.mrb[0].mxu0
        %2226 = vdwg.mxu0
        %v2227 = vmul.f32 %v2224, 0.35355338
        %v2228 = vadd.f32 %v2227, %v415
        %v2229 = vsel %vm694, %v2228, -inf
        %2230 = vmax.xlane.f32.xlu0 %v2229
        %v2231 = vpop.xlane.xlu0 %2230
        %v2232 = vsub.f32 %v2228, %v2231
        %v2233 = vmul.f32 %v2232, 1.442695
        %v2234 = vpow.pop %v2233
        %v2235 = vsel %vm694, %v2234, 0.0
        %2236 = vadd.xlane.f32.xlu0 %v2235
        %v2237 = vpop.xlane.xlu0 %2236
        %v2238 = vrcp.pop %v2237
        %v2239 = vmul.f32 %v2234, %v2238
        %v2241 = vsel %vm694, %v2239, 0
        %2243 = vmatprep.subr.mxu0 0.0
        %2244 = vmatpush1.msra.mxu0 %v2148
        %2245 = vmatprep.subr.mxu0 0.0
        %2246 = vmatpush1.msra.mxu0 0.0
        %2247 = vmatprep.subr.mxu0 0.0
        %2248 = vmatpush1.msra.mxu0 0.0
        %2249 = vmatprep.subr.mxu0 0.0
        %2250 = vmatpush1.msra.mxu0 0.0
        %2251 = vmatprep.subr.mxu0 0.0
        %2252 = vmatpush1.msra.mxu0 0.0
        %2253 = vmatprep.subr.mxu0 0.0
        %2254 = vmatpush1.msra.mxu0 0.0
        %2255 = vmatprep.subr.mxu0 0.0
        %2256 = vmatpush1.msra.mxu0 0.0
        %2257 = vmatprep.subr.mxu0 0.0
        %2258 = vmatpush1.msra.mxu0 0.0
        %2259 = vmatprep.subr.mxu0 0.0
        %2260 = vmatpush1.msra.mxu0 0.0
        %2261 = vmatprep.subr.mxu0 0.0
        %2262 = vmatpush1.msra.mxu0 0.0
        %2263 = vmatprep.subr.mxu0 0.0
        %2264 = vmatpush1.msra.mxu0 0.0
        %2265 = vmatprep.subr.mxu0 0.0
        %2266 = vmatpush1.msra.mxu0 0.0
        %2267 = vmatprep.subr.mxu0 0.0
        %2268 = vmatpush1.msra.mxu0 0.0
        %2269 = vmatprep.subr.mxu0 0.0
        %2270 = vmatpush1.msra.mxu0 0.0
        %2271 = vmatprep.subr.mxu0 0.0
        %2272 = vmatpush1.msra.mxu0 0.0
        %2273 = vmatprep.subr.mxu0 0.0
        %2274 = vmatpush1.msra.mxu0 0.0
        %2275 = vmatprep.subr.mxu0 0.0
        %2276 = vmatpush1.msra.mxu0 0.0
        %2277 = vmatprep.subr.mxu0 0.0
        %2278 = vmatpush1.msra.mxu0 0.0
        %2279 = vmatprep.subr.mxu0 0.0
        %2280 = vmatpush1.msra.mxu0 0.0
        %2281 = vmatprep.subr.mxu0 0.0
        %2282 = vmatpush1.msra.mxu0 0.0
        %2283 = vmatprep.subr.mxu0 0.0
        %2284 = vmatpush1.msra.mxu0 0.0
        %2285 = vmatprep.subr.mxu0 0.0
        %2286 = vmatpush1.msra.mxu0 0.0
        %2287 = vmatprep.subr.mxu0 0.0
        %2288 = vmatpush1.msra.mxu0 0.0
        %2289 = vmatprep.subr.mxu0 0.0
        %2290 = vmatpush1.msra.mxu0 0.0
        %2291 = vmatprep.subr.mxu0 0.0
        %2292 = vmatpush1.msra.mxu0 0.0
        %2293 = vmatprep.subr.mxu0 0.0
        %2294 = vmatpush1.msra.mxu0 0.0
        %2295 = vmatprep.subr.mxu0 0.0
        %2296 = vmatpush1.msra.mxu0 0.0
        %2297 = vmatprep.subr.mxu0 0.0
        %2298 = vmatpush1.msra.mxu0 0.0
        %2299 = vmatprep.subr.mxu0 0.0
        %2300 = vmatpush1.msra.mxu0 0.0
        %2301 = vmatprep.subr.mxu0 0.0
        %2302 = vmatpush1.msra.mxu0 0.0
        %2303 = vmatprep.subr.mxu0 0.0
        %2304 = vmatpush1.msra.mxu0 0.0
        %2305 = vmatprep.subr.mxu0 0.0
        %2306 = vmatpush1.msra.mxu0 0.0
        %2307 = vmatprep.mubr.f32.mxu0 0.0
        %2308 = vmatmul.mubr.f32.gmra.mrb[0].mxu0 %v2241
        %v2309 = vpop.f32.mrb[0].mxu0
        %v2310 = vadd.f32 0.0, %v2309
        %v2311 = vpop.f32.mrb[0].mxu0
        %2312 = vdwg.mxu0
        %v2313 = vld [vmem:[#allocation4 + $0x18] sm:$0xff]
        %v2315 = vsel %vm694, %v2310, 0
        %2317 = vmatprep.subr.mxu0 0.0
        %2318 = vmatpush1.msra.mxu0 %v2313
        %2319 = vmatprep.subr.mxu0 0.0
        %2320 = vmatpush1.msra.mxu0 0.0
        %2321 = vmatprep.subr.mxu0 0.0
        %2322 = vmatpush1.msra.mxu0 0.0
        %2323 = vmatprep.subr.mxu0 0.0
        %2324 = vmatpush1.msra.mxu0 0.0
        %2325 = vmatprep.subr.mxu0 0.0
        %2326 = vmatpush1.msra.mxu0 0.0
        %2327 = vmatprep.subr.mxu0 0.0
        %2328 = vmatpush1.msra.mxu0 0.0
        %2329 = vmatprep.subr.mxu0 0.0
        %2330 = vmatpush1.msra.mxu0 0.0
        %2331 = vmatprep.subr.mxu0 0.0
        %2332 = vmatpush1.msra.mxu0 0.0
        %2333 = vmatprep.subr.mxu0 0.0
        %2334 = vmatpush1.msra.mxu0 0.0
        %2335 = vmatprep.subr.mxu0 0.0
        %2336 = vmatpush1.msra.mxu0 0.0
        %2337 = vmatprep.subr.mxu0 0.0
        %2338 = vmatpush1.msra.mxu0 0.0
        %2339 = vmatprep.subr.mxu0 0.0
        %2340 = vmatpush1.msra.mxu0 0.0
        %2341 = vmatprep.subr.mxu0 0.0
        %2342 = vmatpush1.msra.mxu0 0.0
        %2343 = vmatprep.subr.mxu0 0.0
        %2344 = vmatpush1.msra.mxu0 0.0
        %2345 = vmatprep.subr.mxu0 0.0
        %2346 = vmatpush1.msra.mxu0 0.0
        %2347 = vmatprep.subr.mxu0 0.0
        %2348 = vmatpush1.msra.mxu0 0.0
        %2349 = vmatprep.subr.mxu0 0.0
        %2350 = vmatpush1.msra.mxu0 0.0
        %2351 = vmatprep.subr.mxu0 0.0
        %2352 = vmatpush1.msra.mxu0 0.0
        %2353 = vmatprep.subr.mxu0 0.0
        %2354 = vmatpush1.msra.mxu0 0.0
        %2355 = vmatprep.subr.mxu0 0.0
        %2356 = vmatpush1.msra.mxu0 0.0
        %2357 = vmatprep.subr.mxu0 0.0
        %2358 = vmatpush1.msra.mxu0 0.0
        %2359 = vmatprep.subr.mxu0 0.0
        %2360 = vmatpush1.msra.mxu0 0.0
        %2361 = vmatprep.subr.mxu0 0.0
        %2362 = vmatpush1.msra.mxu0 0.0
        %2363 = vmatprep.subr.mxu0 0.0
        %2364 = vmatpush1.msra.mxu0 0.0
        %2365 = vmatprep.subr.mxu0 0.0
        %2366 = vmatpush1.msra.mxu0 0.0
        %2367 = vmatprep.subr.mxu0 0.0
        %2368 = vmatpush1.msra.mxu0 0.0
        %2369 = vmatprep.subr.mxu0 0.0
        %2370 = vmatpush1.msra.mxu0 0.0
        %2371 = vmatprep.subr.mxu0 0.0
        %2372 = vmatpush1.msra.mxu0 0.0
        %2373 = vmatprep.subr.mxu0 0.0
        %2374 = vmatpush1.msra.mxu0 0.0
        %2375 = vmatprep.subr.mxu0 0.0
        %2376 = vmatpush1.msra.mxu0 0.0
        %2377 = vmatprep.subr.mxu0 0.0
        %2378 = vmatpush1.msra.mxu0 0.0
        %2379 = vmatprep.subr.mxu0 0.0
        %2380 = vmatpush1.msra.mxu0 0.0
        %2381 = vmatprep.mubr.f32.mxu0 0.0
        %2382 = vmatmul.mubr.f32.gmra.mrb[0].mxu0 %v2315
        %v2383 = vpop.f32.mrb[0].mxu0
        %v2384 = vadd.f32 0.0, %v2383
        %v2385 = vpop.f32.mrb[0].mxu0
        %2386 = vdwg.mxu0
        %v2387 = vadd.f32 %v1901, %v2384
        %v2388 = vadd.f32 %v414, %v2387
        %v2389 = vlaneseq
        %v2390 = vshrl.u32 %v2389, 7
        %v2391 = vsub.s32 4, %v2390
        %v2392 = vrot.slane %v416, %v2391
        %v2393 = vadd.f32 %v2388, %v2392
        %v2394 = vsel %vm417, %v2393, 0.0
        %2395 = vadd.xlane.f32.xlu0 %v2394
        %v2396 = vpop.xlane.xlu0 %2395
        %v2397 = vmul.f32 %v2396, %v421
        %v2398 = vmul.f32 %v2393, %v2393
        %v2399 = vsel %vm417, %v2398, 0.0
        %2400 = vadd.xlane.f32.xlu0 %v2399
        %v2401 = vpop.xlane.xlu0 %2400
        %v2402 = vmul.f32 %v2401, %v421
        %v2403 = vmul.f32 %v2397, %v2397
        %v2404 = vsub.f32 %v2402, %v2403
        %v2405 = vsub.f32 %v2393, %v2397
        %v2406 = vadd.f32 %v2404, 1e-05
        %v2407 = vrsqrt.pop %v2406
        %v2408 = vmul.f32 %v2405, %v2407
        %v2409 = vlaneseq
        %v2410 = vshrl.u32 %v2409, 7
        %v2411 = vsub.s32 2, %v2410
        %v2412 = vrot.slane %v416, %v2411
        %v2413 = vmul.f32 %v2408, %v2412
        %v2414 = vlaneseq
        %v2415 = vshrl.u32 %v2414, 7
        %v2416 = vsub.s32 3, %v2415
        %v2417 = vrot.slane %v416, %v2416
        %v2418 = vadd.f32 %v2413, %v2417
        %v2419 = vld [vmem:[#allocation6] sm:$0xff]
        %v2420 = vld [vmem:[#allocation6 + $0x8] sm:$0xff]
        %v2421 = vld [vmem:[#allocation6 + $0x10] sm:$0xff]
        %v2422 = vld [vmem:[#allocation6 + $0x18] sm:$0xff]
        %v2423 = vld [vmem:[%s6] sm:$0x1]
        %v2425 = vlaneseq
        %v2426 = vshrl.u32 %v2425, 7
        %v2427 = vsub.s32 0, %v2426
        %v2428 = vrot.slane %v2423, %v2427
        %v2431 = vsel %vm417, %v2418, 0
        %2433 = vmatprep.subr.mxu0 0.0
        %2434 = vmatpush1.msra.mxu0 %v2419
        %2435 = vmatprep.subr.mxu0 0.0
        %2436 = vmatpush1.msra.mxu0 %v2420
        %2437 = vmatprep.subr.mxu0 0.0
        %2438 = vmatpush1.msra.mxu0 %v2421
        %2439 = vmatprep.subr.mxu0 0.0
        %2440 = vmatpush1.msra.mxu0 %v2422
        %2441 = vmatprep.subr.mxu0 0.0
        %2442 = vmatpush1.msra.mxu0 0.0
        %2443 = vmatprep.subr.mxu0 0.0
        %2444 = vmatpush1.msra.mxu0 0.0
        %2445 = vmatprep.subr.mxu0 0.0
        %2446 = vmatpush1.msra.mxu0 0.0
        %2447 = vmatprep.subr.mxu0 0.0
        %2448 = vmatpush1.msra.mxu0 0.0
        %2449 = vmatprep.subr.mxu0 0.0
        %2450 = vmatpush1.msra.mxu0 0.0
        %2451 = vmatprep.subr.mxu0 0.0
        %2452 = vmatpush1.msra.mxu0 0.0
        %2453 = vmatprep.subr.mxu0 0.0
        %2454 = vmatpush1.msra.mxu0 0.0
        %2455 = vmatprep.subr.mxu0 0.0
        %2456 = vmatpush1.msra.mxu0 0.0
        %2457 = vmatprep.subr.mxu0 0.0
        %2458 = vmatpush1.msra.mxu0 0.0
        %2459 = vmatprep.subr.mxu0 0.0
        %2460 = vmatpush1.msra.mxu0 0.0
        %2461 = vmatprep.subr.mxu0 0.0
        %2462 = vmatpush1.msra.mxu0 0.0
        %2463 = vmatprep.subr.mxu0 0.0
        %2464 = vmatpush1.msra.mxu0 0.0
        %2465 = vmatprep.subr.mxu0 0.0
        %2466 = vmatpush1.msra.mxu0 0.0
        %2467 = vmatprep.subr.mxu0 0.0
        %2468 = vmatpush1.msra.mxu0 0.0
        %2469 = vmatprep.subr.mxu0 0.0
        %2470 = vmatpush1.msra.mxu0 0.0
        %2471 = vmatprep.subr.mxu0 0.0
        %2472 = vmatpush1.msra.mxu0 0.0
        %2473 = vmatprep.subr.mxu0 0.0
        %2474 = vmatpush1.msra.mxu0 0.0
        %2475 = vmatprep.subr.mxu0 0.0
        %2476 = vmatpush1.msra.mxu0 0.0
        %2477 = vmatprep.subr.mxu0 0.0
        %2478 = vmatpush1.msra.mxu0 0.0
        %2479 = vmatprep.subr.mxu0 0.0
        %2480 = vmatpush1.msra.mxu0 0.0
        %2481 = vmatprep.subr.mxu0 0.0
        %2482 = vmatpush1.msra.mxu0 0.0
        %2483 = vmatprep.subr.mxu0 0.0
        %2484 = vmatpush1.msra.mxu0 0.0
        %2485 = vmatprep.subr.mxu0 0.0
        %2486 = vmatpush1.msra.mxu0 0.0
        %2487 = vmatprep.subr.mxu0 0.0
        %2488 = vmatpush1.msra.mxu0 0.0
        %2489 = vmatprep.subr.mxu0 0.0
        %2490 = vmatpush1.msra.mxu0 0.0
        %2491 = vmatprep.subr.mxu0 0.0
        %2492 = vmatpush1.msra.mxu0 0.0
        %2493 = vmatprep.subr.mxu0 0.0
        %2494 = vmatpush1.msra.mxu0 0.0
        %2495 = vmatprep.subr.mxu0 0.0
        %2496 = vmatpush1.msra.mxu0 0.0
        %2497 = vmatprep.mubr.f32.mxu0 0.0
        %2498 = vmatmul.mubr.f32.gmra.mrb[0].mxu0 %v2431
        %v2499 = vpop.f32.mrb[0].mxu0
        %v2500 = vadd.f32 %v2428, %v2499
        %v2501 = vpop.f32.mrb[0].mxu0
        %2502 = vdwg.mxu0
        %v2503 = vmul.f32 %v2500, 0.5
        %v2504 = vmul.f32 %v2500, 0.044715
        %v2505 = vmul.f32 %v2504, %v2500
        %v2506 = vmul.f32 %v2505, %v2500
        %v2507 = vadd.f32 %v2500, %v2506
        %v2508 = vmul.f32 %v2507, 0.7978846
        %v2509 = vtanh.pop %v2508
        %v2510 = vadd.f32 %v2509, 1.0
        %v2511 = vmul.f32 %v2503, %v2510
        %v2512 = vld [vmem:[%s7] sm:$0xff]
        %v2513 = vld [vmem:[%s7 + $0x8] sm:$0xff]
        %v2514 = vld [vmem:[%s7 + $0x10] sm:$0xff]
        %v2515 = vld [vmem:[%s7 + $0x18] sm:$0xff]
        %v2516 = vld [vmem:[%s7 + $0x20] sm:$0xff]
        %v2517 = vld [vmem:[%s7 + $0x28] sm:$0xff]
        %v2518 = vld [vmem:[%s7 + $0x30] sm:$0xff]
        %v2519 = vld [vmem:[%s7 + $0x38] sm:$0xff]
        %v2520 = vld [vmem:[%s7 + $0x40] sm:$0xff]
        %v2521 = vld [vmem:[%s7 + $0x48] sm:$0xff]
        %v2522 = vld [vmem:[%s7 + $0x50] sm:$0xff]
        %v2523 = vld [vmem:[%s7 + $0x58] sm:$0xff]
        %v2524 = vld [vmem:[%s7 + $0x60] sm:$0xff]
        %v2525 = vld [vmem:[%s7 + $0x68] sm:$0xff]
        %v2526 = vld [vmem:[%s7 + $0x70] sm:$0xff]
        %v2527 = vld [vmem:[%s7 + $0x78] sm:$0xff]
        %2528 = vmatprep.subr.mxu0 0.0
        %2529 = vmatpush1.msra.mxu0 %v2512
        %2530 = vmatprep.subr.mxu0 0.0
        %2531 = vmatpush1.msra.mxu0 %v2513
        %2532 = vmatprep.subr.mxu0 0.0
        %2533 = vmatpush1.msra.mxu0 %v2514
        %2534 = vmatprep.subr.mxu0 0.0
        %2535 = vmatpush1.msra.mxu0 %v2515
        %2536 = vmatprep.subr.mxu0 0.0
        %2537 = vmatpush1.msra.mxu0 %v2516
        %2538 = vmatprep.subr.mxu0 0.0
        %2539 = vmatpush1.msra.mxu0 %v2517
        %2540 = vmatprep.subr.mxu0 0.0
        %2541 = vmatpush1.msra.mxu0 %v2518
        %2542 = vmatprep.subr.mxu0 0.0
        %2543 = vmatpush1.msra.mxu0 %v2519
        %2544 = vmatprep.subr.mxu0 0.0
        %2545 = vmatpush1.msra.mxu0 %v2520
        %2546 = vmatprep.subr.mxu0 0.0
        %2547 = vmatpush1.msra.mxu0 %v2521
        %2548 = vmatprep.subr.mxu0 0.0
        %2549 = vmatpush1.msra.mxu0 %v2522
        %2550 = vmatprep.subr.mxu0 0.0
        %2551 = vmatpush1.msra.mxu0 %v2523
        %2552 = vmatprep.subr.mxu0 0.0
        %2553 = vmatpush1.msra.mxu0 %v2524
        %2554 = vmatprep.subr.mxu0 0.0
        %2555 = vmatpush1.msra.mxu0 %v2525
        %2556 = vmatprep.subr.mxu0 0.0
        %2557 = vmatpush1.msra.mxu0 %v2526
        %2558 = vmatprep.subr.mxu0 0.0
        %2559 = vmatpush1.msra.mxu0 %v2527
        %2560 = vmatprep.subr.mxu0 0.0
        %2561 = vmatpush1.msra.mxu0 0.0
        %2562 = vmatprep.subr.mxu0 0.0
        %2563 = vmatpush1.msra.mxu0 0.0
        %2564 = vmatprep.subr.mxu0 0.0
        %2565 = vmatpush1.msra.mxu0 0.0
        %2566 = vmatprep.subr.mxu0 0.0
        %2567 = vmatpush1.msra.mxu0 0.0
        %2568 = vmatprep.subr.mxu0 0.0
        %2569 = vmatpush1.msra.mxu0 0.0
        %2570 = vmatprep.subr.mxu0 0.0
        %2571 = vmatpush1.msra.mxu0 0.0
        %2572 = vmatprep.subr.mxu0 0.0
        %2573 = vmatpush1.msra.mxu0 0.0
        %2574 = vmatprep.subr.mxu0 0.0
        %2575 = vmatpush1.msra.mxu0 0.0
        %2576 = vmatprep.subr.mxu0 0.0
        %2577 = vmatpush1.msra.mxu0 0.0
        %2578 = vmatprep.subr.mxu0 0.0
        %2579 = vmatpush1.msra.mxu0 0.0
        %2580 = vmatprep.subr.mxu0 0.0
        %2581 = vmatpush1.msra.mxu0 0.0
        %2582 = vmatprep.subr.mxu0 0.0
        %2583 = vmatpush1.msra.mxu0 0.0
        %2584 = vmatprep.subr.mxu0 0.0
        %2585 = vmatpush1.msra.mxu0 0.0
        %2586 = vmatprep.subr.mxu0 0.0
        %2587 = vmatpush1.msra.mxu0 0.0
        %2588 = vmatprep.subr.mxu0 0.0
        %2589 = vmatpush1.msra.mxu0 0.0
        %2590 = vmatprep.subr.mxu0 0.0
        %2591 = vmatpush1.msra.mxu0 0.0
        %2592 = vmatprep.mubr.f32.mxu0 0.0
        %2593 = vmatmul.mubr.f32.gmra.mrb[0].mxu0 %v2511
        %v2594 = vpop.f32.mrb[0].mxu0
        %v2595 = vadd.f32 0.0, %v2594
        %v2596 = vpop.f32.mrb[0].mxu0
        %2597 = vdwg.mxu0
        %v2598 = vadd.f32 %v2393, %v2595
        %v2599 = vlaneseq
        %v2600 = vshrl.u32 %v2599, 7
        %v2601 = vsub.s32 5, %v2600
        %v2602 = vrot.slane %v416, %v2601
        %v2603 = vadd.f32 %v2598, %v2602
        %s2604 = scalar_lea.vmem %s8, 8
        %v2605 = vld [vmem:[%s2604] sm:$0x3f]
        %v2606 = vsel %vm417, %v2603, 0.0
        %2607 = vadd.xlane.f32.xlu0 %v2606
        %v2608 = vpop.xlane.xlu0 %2607
        %v2609 = vmul.f32 %v2608, %v421
        %v2610 = vmul.f32 %v2603, %v2603
        %v2611 = vsel %vm417, %v2610, 0.0
        %2612 = vadd.xlane.f32.xlu0 %v2611
        %v2613 = vpop.xlane.xlu0 %2612
        %v2614 = vmul.f32 %v2613, %v421
        %v2615 = vmul.f32 %v2609, %v2609
        %v2616 = vsub.f32 %v2614, %v2615
        %v2617 = vsub.f32 %v2603, %v2609
        %v2618 = vadd.f32 %v2616, 1e-05
        %v2619 = vrsqrt.pop %v2618
        %v2620 = vmul.f32 %v2617, %v2619
        %v2621 = vlaneseq
        %v2622 = vshrl.u32 %v2621, 7
        %v2623 = vsub.s32 0, %v2622
        %v2624 = vrot.slane %v2605, %v2623
        %v2625 = vmul.f32 %v2620, %v2624
        %v2626 = vlaneseq
        %v2627 = vshrl.u32 %v2626, 7
        %v2628 = vsub.s32 1, %v2627
        %v2629 = vrot.slane %v2605, %v2628
        %v2630 = vadd.f32 %v2625, %v2629
        %s2631 = scalar_lea.vmem [#allocation2], 384
        %v2632 = vld [vmem:[%s2631] sm:$0xff]
        %v2633 = vld [vmem:[%s2631 + $0x8] sm:$0xff]
        %v2634 = vld [vmem:[%s2631 + $0x10] sm:$0xff]
        %v2635 = vld [vmem:[%s2631 + $0x18] sm:$0xff]
        %s2636 = scalar_lea.vmem %s3, 12
        %v2637 = vld [vmem:[%s2636] sm:$0x1]
        %v2639 = vlaneseq
        %v2640 = vshrl.u32 %v2639, 7
        %v2641 = vsub.s32 0, %v2640
        %v2642 = vrot.slane %v2637, %v2641
        %v2645 = vsel %vm417, %v2630, 0
        %2647 = vmatprep.subr.mxu0 0.0
        %2648 = vmatpush1.msra.mxu0 %v2632
        %2649 = vmatprep.subr.mxu0 0.0
        %2650 = vmatpush1.msra.mxu0 %v2633
        %2651 = vmatprep.subr.mxu0 0.0
        %2652 = vmatpush1.msra.mxu0 %v2634
        %2653 = vmatprep.subr.mxu0 0.0
        %2654 = vmatpush1.msra.mxu0 %v2635
        %2655 = vmatprep.subr.mxu0 0.0
        %2656 = vmatpush1.msra.mxu0 0.0
        %2657 = vmatprep.subr.mxu0 0.0
        %2658 = vmatpush1.msra.mxu0 0.0
        %2659 = vmatprep.subr.mxu0 0.0
        %2660 = vmatpush1.msra.mxu0 0.0
        %2661 = vmatprep.subr.mxu0 0.0
        %2662 = vmatpush1.msra.mxu0 0.0
        %2663 = vmatprep.subr.mxu0 0.0
        %2664 = vmatpush1.msra.mxu0 0.0
        %2665 = vmatprep.subr.mxu0 0.0
        %2666 = vmatpush1.msra.mxu0 0.0
        %2667 = vmatprep.subr.mxu0 0.0
        %2668 = vmatpush1.msra.mxu0 0.0
        %2669 = vmatprep.subr.mxu0 0.0
        %2670 = vmatpush1.msra.mxu0 0.0
        %2671 = vmatprep.subr.mxu0 0.0
        %2672 = vmatpush1.msra.mxu0 0.0
        %2673 = vmatprep.subr.mxu0 0.0
        %2674 = vmatpush1.msra.mxu0 0.0
        %2675 = vmatprep.subr.mxu0 0.0
        %2676 = vmatpush1.msra.mxu0 0.0
        %2677 = vmatprep.subr.mxu0 0.0
        %2678 = vmatpush1.msra.mxu0 0.0
        %2679 = vmatprep.subr.mxu0 0.0
        %2680 = vmatpush1.msra.mxu0 0.0
        %2681 = vmatprep.subr.mxu0 0.0
        %2682 = vmatpush1.msra.mxu0 0.0
        %2683 = vmatprep.subr.mxu0 0.0
        %2684 = vmatpush1.msra.mxu0 0.0
        %2685 = vmatprep.subr.mxu0 0.0
        %2686 = vmatpush1.msra.mxu0 0.0
        %2687 = vmatprep.subr.mxu0 0.0
        %2688 = vmatpush1.msra.mxu0 0.0
        %2689 = vmatprep.subr.mxu0 0.0
        %2690 = vmatpush1.msra.mxu0 0.0
        %2691 = vmatprep.subr.mxu0 0.0
        %2692 = vmatpush1.msra.mxu0 0.0
        %2693 = vmatprep.subr.mxu0 0.0
        %2694 = vmatpush1.msra.mxu0 0.0
        %2695 = vmatprep.subr.mxu0 0.0
        %2696 = vmatpush1.msra.mxu0 0.0
        %2697 = vmatprep.subr.mxu0 0.0
        %2698 = vmatpush1.msra.mxu0 0.0
        %2699 = vmatprep.subr.mxu0 0.0
        %2700 = vmatpush1.msra.mxu0 0.0
        %2701 = vmatprep.subr.mxu0 0.0
        %2702 = vmatpush1.msra.mxu0 0.0
        %2703 = vmatprep.subr.mxu0 0.0
        %2704 = vmatpush1.msra.mxu0 0.0
        %2705 = vmatprep.subr.mxu0 0.0
        %2706 = vmatpush1.msra.mxu0 0.0
        %2707 = vmatprep.subr.mxu0 0.0
        %2708 = vmatpush1.msra.mxu0 0.0
        %2709 = vmatprep.subr.mxu0 0.0
        %2710 = vmatpush1.msra.mxu0 0.0
        %2711 = vmatprep.mubr.f32.mxu0 0.0
        %2712 = vmatmul.mubr.f32.gmra.mrb[0].mxu0 %v2645
        %v2713 = vpop.f32.mrb[0].mxu0
        %v2714 = vadd.f32 %v2642, %v2713
        %v2715 = vpop.f32.mrb[0].mxu0
        %2716 = vdwg.mxu0
        %s2717 = scalar_lea.vmem [#allocation2], 416
        %v2718 = vld [vmem:[%s2717] sm:$0xff]
        %v2719 = vld [vmem:[%s2717 + $0x8] sm:$0xff]
        %v2720 = vld [vmem:[%s2717 + $0x10] sm:$0xff]
        %v2721 = vld [vmem:[%s2717 + $0x18] sm:$0xff]
        %s2722 = scalar_lea.vmem %s3, 13
        %v2723 = vld [vmem:[%s2722] sm:$0x1]
        %v2725 = vlaneseq
        %v2726 = vshrl.u32 %v2725, 7
        %v2727 = vsub.s32 0, %v2726
        %v2728 = vrot.slane %v2723, %v2727
        %2730 = vmatprep.subr.mxu0 0.0
        %2731 = vmatpush1.msra.mxu0 %v2718
        %2732 = vmatprep.subr.mxu0 0.0
        %2733 = vmatpush1.msra.mxu0 %v2719
        %2734 = vmatprep.subr.mxu0 0.0
        %2735 = vmatpush1.msra.mxu0 %v2720
        %2736 = vmatprep.subr.mxu0 0.0
        %2737 = vmatpush1.msra.mxu0 %v2721
        %2738 = vmatprep.subr.mxu0 0.0
        %2739 = vmatpush1.msra.mxu0 0.0
        %2740 = vmatprep.subr.mxu0 0.0
        %2741 = vmatpush1.msra.mxu0 0.0
        %2742 = vmatprep.subr.mxu0 0.0
        %2743 = vmatpush1.msra.mxu0 0.0
        %2744 = vmatprep.subr.mxu0 0.0
        %2745 = vmatpush1.msra.mxu0 0.0
        %2746 = vmatprep.subr.mxu0 0.0
        %2747 = vmatpush1.msra.mxu0 0.0
        %2748 = vmatprep.subr.mxu0 0.0
        %2749 = vmatpush1.msra.mxu0 0.0
        %2750 = vmatprep.subr.mxu0 0.0
        %2751 = vmatpush1.msra.mxu0 0.0
        %2752 = vmatprep.subr.mxu0 0.0
        %2753 = vmatpush1.msra.mxu0 0.0
        %2754 = vmatprep.subr.mxu0 0.0
        %2755 = vmatpush1.msra.mxu0 0.0
        %2756 = vmatprep.subr.mxu0 0.0
        %2757 = vmatpush1.msra.mxu0 0.0
        %2758 = vmatprep.subr.mxu0 0.0
        %2759 = vmatpush1.msra.mxu0 0.0
        %2760 = vmatprep.subr.mxu0 0.0
        %2761 = vmatpush1.msra.mxu0 0.0
        %2762 = vmatprep.subr.mxu0 0.0
        %2763 = vmatpush1.msra.mxu0 0.0
        %2764 = vmatprep.subr.mxu0 0.0
        %2765 = vmatpush1.msra.mxu0 0.0
        %2766 = vmatprep.subr.mxu0 0.0
        %2767 = vmatpush1.msra.mxu0 0.0
        %2768 = vmatprep.subr.mxu0 0.0
        %2769 = vmatpush1.msra.mxu0 0.0
        %2770 = vmatprep.subr.mxu0 0.0
        %2771 = vmatpush1.msra.mxu0 0.0
        %2772 = vmatprep.subr.mxu0 0.0
        %2773 = vmatpush1.msra.mxu0 0.0
        %2774 = vmatprep.subr.mxu0 0.0
        %2775 = vmatpush1.msra.mxu0 0.0
        %2776 = vmatprep.subr.mxu0 0.0
        %2777 = vmatpush1.msra.mxu0 0.0
        %2778 = vmatprep.subr.mxu0 0.0
        %2779 = vmatpush1.msra.mxu0 0.0
        %2780 = vmatprep.subr.mxu0 0.0
        %2781 = vmatpush1.msra.mxu0 0.0
        %2782 = vmatprep.subr.mxu0 0.0
        %2783 = vmatpush1.msra.mxu0 0.0
        %2784 = vmatprep.subr.mxu0 0.0
        %2785 = vmatpush1.msra.mxu0 0.0
        %2786 = vmatprep.subr.mxu0 0.0
        %2787 = vmatpush1.msra.mxu0 0.0
        %2788 = vmatprep.subr.mxu0 0.0
        %2789 = vmatpush1.msra.mxu0 0.0
        %2790 = vmatprep.subr.mxu0 0.0
        %2791 = vmatpush1.msra.mxu0 0.0
        %2792 = vmatprep.subr.mxu0 0.0
        %2793 = vmatpush1.msra.mxu0 0.0
        %2794 = vmatprep.mubr.f32.mxu0 0.0
        %2795 = vmatmul.mubr.f32.gmra.mrb[0].mxu0 %v2645
        %v2796 = vpop.f32.mrb[0].mxu0
        %v2797 = vadd.f32 %v2728, %v2796
        %v2798 = vpop.f32.mrb[0].mxu0
        %2799 = vdwg.mxu0
        %s2800 = scalar_lea.vmem [#allocation2], 448
        %v2801 = vld [vmem:[%s2800] sm:$0xff]
        %v2802 = vld [vmem:[%s2800 + $0x8] sm:$0xff]
        %v2803 = vld [vmem:[%s2800 + $0x10] sm:$0xff]
        %v2804 = vld [vmem:[%s2800 + $0x18] sm:$0xff]
        %s2805 = scalar_lea.vmem %s3, 14
        %v2806 = vld [vmem:[%s2805] sm:$0x1]
        %v2808 = vlaneseq
        %v2809 = vshrl.u32 %v2808, 7
        %v2810 = vsub.s32 0, %v2809
        %v2811 = vrot.slane %v2806, %v2810
        %2813 = vmatprep.subr.mxu0 0.0
        %2814 = vmatpush1.msra.mxu0 %v2801
        %2815 = vmatprep.subr.mxu0 0.0
        %2816 = vmatpush1.msra.mxu0 %v2802
        %2817 = vmatprep.subr.mxu0 0.0
        %2818 = vmatpush1.msra.mxu0 %v2803
        %2819 = vmatprep.subr.mxu0 0.0
        %2820 = vmatpush1.msra.mxu0 %v2804
        %2821 = vmatprep.subr.mxu0 0.0
        %2822 = vmatpush1.msra.mxu0 0.0
        %2823 = vmatprep.subr.mxu0 0.0
        %2824 = vmatpush1.msra.mxu0 0.0
        %2825 = vmatprep.subr.mxu0 0.0
        %2826 = vmatpush1.msra.mxu0 0.0
        %2827 = vmatprep.subr.mxu0 0.0
        %2828 = vmatpush1.msra.mxu0 0.0
        %2829 = vmatprep.subr.mxu0 0.0
        %2830 = vmatpush1.msra.mxu0 0.0
        %2831 = vmatprep.subr.mxu0 0.0
        %2832 = vmatpush1.msra.mxu0 0.0
        %2833 = vmatprep.subr.mxu0 0.0
        %2834 = vmatpush1.msra.mxu0 0.0
        %2835 = vmatprep.subr.mxu0 0.0
        %2836 = vmatpush1.msra.mxu0 0.0
        %2837 = vmatprep.subr.mxu0 0.0
        %2838 = vmatpush1.msra.mxu0 0.0
        %2839 = vmatprep.subr.mxu0 0.0
        %2840 = vmatpush1.msra.mxu0 0.0
        %2841 = vmatprep.subr.mxu0 0.0
        %2842 = vmatpush1.msra.mxu0 0.0
        %2843 = vmatprep.subr.mxu0 0.0
        %2844 = vmatpush1.msra.mxu0 0.0
        %2845 = vmatprep.subr.mxu0 0.0
        %2846 = vmatpush1.msra.mxu0 0.0
        %2847 = vmatprep.subr.mxu0 0.0
        %2848 = vmatpush1.msra.mxu0 0.0
        %2849 = vmatprep.subr.mxu0 0.0
        %2850 = vmatpush1.msra.mxu0 0.0
        %2851 = vmatprep.subr.mxu0 0.0
        %2852 = vmatpush1.msra.mxu0 0.0
        %2853 = vmatprep.subr.mxu0 0.0
        %2854 = vmatpush1.msra.mxu0 0.0
        %2855 = vmatprep.subr.mxu0 0.0
        %2856 = vmatpush1.msra.mxu0 0.0
        %2857 = vmatprep.subr.mxu0 0.0
        %2858 = vmatpush1.msra.mxu0 0.0
        %2859 = vmatprep.subr.mxu0 0.0
        %2860 = vmatpush1.msra.mxu0 0.0
        %2861 = vmatprep.subr.mxu0 0.0
        %2862 = vmatpush1.msra.mxu0 0.0
        %2863 = vmatprep.subr.mxu0 0.0
        %2864 = vmatpush1.msra.mxu0 0.0
        %2865 = vmatprep.subr.mxu0 0.0
        %2866 = vmatpush1.msra.mxu0 0.0
        %2867 = vmatprep.subr.mxu0 0.0
        %2868 = vmatpush1.msra.mxu0 0.0
        %2869 = vmatprep.subr.mxu0 0.0
        %2870 = vmatpush1.msra.mxu0 0.0
        %2871 = vmatprep.subr.mxu0 0.0
        %2872 = vmatpush1.msra.mxu0 0.0
        %2873 = vmatprep.subr.mxu0 0.0
        %2874 = vmatpush1.msra.mxu0 0.0
        %2875 = vmatprep.subr.mxu0 0.0
        %2876 = vmatpush1.msra.mxu0 0.0
        %2877 = vmatprep.mubr.f32.mxu0 0.0
        %2878 = vmatmul.mubr.f32.gmra.mrb[0].mxu0 %v2645
        %v2879 = vpop.f32.mrb[0].mxu0
        %v2880 = vadd.f32 %v2811, %v2879
        %v2881 = vpop.f32.mrb[0].mxu0
        %2882 = vdwg.mxu0
        %v2884 = vsel %vm694, %v2714, 0
        %v2887 = vsel %vm694, %v2797, 0
        %2889 = vmatprep.subr.mxu0 0.0
        %2890 = vmatpush1.xpose.msra.mxu0 %v2887
        %2891 = vmatprep.subr.mxu0 0.0
        %2892 = vmatpush1.xpose.msra.mxu0 0.0
        %2893 = vmatprep.subr.mxu0 0.0
        %2894 = vmatpush1.xpose.msra.mxu0 0.0
        %2895 = vmatprep.subr.mxu0 0.0
        %2896 = vmatpush1.xpose.msra.mxu0 0.0
        %2897 = vmatprep.subr.mxu0 0.0
        %2898 = vmatpush1.xpose.msra.mxu0 0.0
        %2899 = vmatprep.subr.mxu0 0.0
        %2900 = vmatpush1.xpose.msra.mxu0 0.0
        %2901 = vmatprep.subr.mxu0 0.0
        %2902 = vmatpush1.xpose.msra.mxu0 0.0
        %2903 = vmatprep.subr.mxu0 0.0
        %2904 = vmatpush1.xpose.msra.mxu0 0.0
        %2905 = vmatprep.subr.mxu0 0.0
        %2906 = vmatpush1.xpose.msra.mxu0 0.0
        %2907 = vmatprep.subr.mxu0 0.0
        %2908 = vmatpush1.xpose.msra.mxu0 0.0
        %2909 = vmatprep.subr.mxu0 0.0
        %2910 = vmatpush1.xpose.msra.mxu0 0.0
        %2911 = vmatprep.subr.mxu0 0.0
        %2912 = vmatpush1.xpose.msra.mxu0 0.0
        %2913 = vmatprep.subr.mxu0 0.0
        %2914 = vmatpush1.xpose.msra.mxu0 0.0
        %2915 = vmatprep.subr.mxu0 0.0
        %2916 = vmatpush1.xpose.msra.mxu0 0.0
        %2917 = vmatprep.subr.mxu0 0.0
        %2918 = vmatpush1.xpose.msra.mxu0 0.0
        %2919 = vmatprep.subr.mxu0 0.0
        %2920 = vmatpush1.xpose.msra.mxu0 0.0
        %2921 = vmatprep.subr.mxu0 0.0
        %2922 = vmatpush1.xpose.msra.mxu0 0.0
        %2923 = vmatprep.subr.mxu0 0.0
        %2924 = vmatpush1.xpose.msra.mxu0 0.0
        %2925 = vmatprep.subr.mxu0 0.0
        %2926 = vmatpush1.xpose.msra.mxu0 0.0
        %2927 = vmatprep.subr.mxu0 0.0
        %2928 = vmatpush1.xpose.msra.mxu0 0.0
        %2929 = vmatprep.subr.mxu0 0.0
        %2930 = vmatpush1.xpose.msra.mxu0 0.0
        %2931 = vmatprep.subr.mxu0 0.0
        %2932 = vmatpush1.xpose.msra.mxu0 0.0
        %2933 = vmatprep.subr.mxu0 0.0
        %2934 = vmatpush1.xpose.msra.mxu0 0.0
        %2935 = vmatprep.subr.mxu0 0.0
        %2936 = vmatpush1.xpose.msra.mxu0 0.0
        %2937 = vmatprep.subr.mxu0 0.0
        %2938 = vmatpush1.xpose.msra.mxu0 0.0
        %2939 = vmatprep.subr.mxu0 0.0
        %2940 = vmatpush1.xpose.msra.mxu0 0.0
        %2941 = vmatprep.subr.mxu0 0.0
        %2942 = vmatpush1.xpose.msra.mxu0 0.0
        %2943 = vmatprep.subr.mxu0 0.0
        %2944 = vmatpush1.xpose.msra.mxu0 0.0
        %2945 = vmatprep.subr.mxu0 0.0
        %2946 = vmatpush1.xpose.msra.mxu0 0.0
        %2947 = vmatprep.subr.mxu0 0.0
        %2948 = vmatpush1.xpose.msra.mxu0 0.0
        %2949 = vmatprep.subr.mxu0 0.0
        %2950 = vmatpush1.xpose.msra.mxu0 0.0
        %2951 = vmatprep.subr.mxu0 0.0
        %2952 = vmatpush1.xpose.msra.mxu0 0.0
        %2953 = vmatprep.mubr.f32.mxu0 0.0
        %2954 = vmatmul.mubr.f32.gmra.mrb[0].mxu0 %v2884
        %v2955 = vpop.f32.mrb[0].mxu0
        %v2956 = vadd.f32 0.0, %v2955
        %v2957 = vpop.f32.mrb[0].mxu0
        %2958 = vdwg.mxu0
        %v2959 = vmul.f32 %v2956, 0.35355338
        %v2960 = vadd.f32 %v2959, %v415
        %v2961 = vsel %vm694, %v2960, -inf
        %2962 = vmax.xlane.f32.xlu0 %v2961
        %v2963 = vpop.xlane.xlu0 %2962
        %v2964 = vsub.f32 %v2960, %v2963
        %v2965 = vmul.f32 %v2964, 1.442695
        %v2966 = vpow.pop %v2965
        %v2967 = vsel %vm694, %v2966, 0.0
        %2968 = vadd.xlane.f32.xlu0 %v2967
        %v2969 = vpop.xlane.xlu0 %2968
        %v2970 = vrcp.pop %v2969
        %v2971 = vmul.f32 %v2966, %v2970
        %v2973 = vsel %vm694, %v2971, 0
        %2975 = vmatprep.subr.mxu0 0.0
        %2976 = vmatpush1.msra.mxu0 %v2880
        %2977 = vmatprep.subr.mxu0 0.0
        %2978 = vmatpush1.msra.mxu0 0.0
        %2979 = vmatprep.subr.mxu0 0.0
        %2980 = vmatpush1.msra.mxu0 0.0
        %2981 = vmatprep.subr.mxu0 0.0
        %2982 = vmatpush1.msra.mxu0 0.0
        %2983 = vmatprep.subr.mxu0 0.0
        %2984 = vmatpush1.msra.mxu0 0.0
        %2985 = vmatprep.subr.mxu0 0.0
        %2986 = vmatpush1.msra.mxu0 0.0
        %2987 = vmatprep.subr.mxu0 0.0
        %2988 = vmatpush1.msra.mxu0 0.0
        %2989 = vmatprep.subr.mxu0 0.0
        %2990 = vmatpush1.msra.mxu0 0.0
        %2991 = vmatprep.subr.mxu0 0.0
        %2992 = vmatpush1.msra.mxu0 0.0
        %2993 = vmatprep.subr.mxu0 0.0
        %2994 = vmatpush1.msra.mxu0 0.0
        %2995 = vmatprep.subr.mxu0 0.0
        %2996 = vmatpush1.msra.mxu0 0.0
        %2997 = vmatprep.subr.mxu0 0.0
        %2998 = vmatpush1.msra.mxu0 0.0
        %2999 = vmatprep.subr.mxu0 0.0
        %3000 = vmatpush1.msra.mxu0 0.0
        %3001 = vmatprep.subr.mxu0 0.0
        %3002 = vmatpush1.msra.mxu0 0.0
        %3003 = vmatprep.subr.mxu0 0.0
        %3004 = vmatpush1.msra.mxu0 0.0
        %3005 = vmatprep.subr.mxu0 0.0
        %3006 = vmatpush1.msra.mxu0 0.0
        %3007 = vmatprep.subr.mxu0 0.0
        %3008 = vmatpush1.msra.mxu0 0.0
        %3009 = vmatprep.subr.mxu0 0.0
        %3010 = vmatpush1.msra.mxu0 0.0
        %3011 = vmatprep.subr.mxu0 0.0
        %3012 = vmatpush1.msra.mxu0 0.0
        %3013 = vmatprep.subr.mxu0 0.0
        %3014 = vmatpush1.msra.mxu0 0.0
        %3015 = vmatprep.subr.mxu0 0.0
        %3016 = vmatpush1.msra.mxu0 0.0
        %3017 = vmatprep.subr.mxu0 0.0
        %3018 = vmatpush1.msra.mxu0 0.0
        %3019 = vmatprep.subr.mxu0 0.0
        %3020 = vmatpush1.msra.mxu0 0.0
        %3021 = vmatprep.subr.mxu0 0.0
        %3022 = vmatpush1.msra.mxu0 0.0
        %3023 = vmatprep.subr.mxu0 0.0
        %3024 = vmatpush1.msra.mxu0 0.0
        %3025 = vmatprep.subr.mxu0 0.0
        %3026 = vmatpush1.msra.mxu0 0.0
        %3027 = vmatprep.subr.mxu0 0.0
        %3028 = vmatpush1.msra.mxu0 0.0
        %3029 = vmatprep.subr.mxu0 0.0
        %3030 = vmatpush1.msra.mxu0 0.0
        %3031 = vmatprep.subr.mxu0 0.0
        %3032 = vmatpush1.msra.mxu0 0.0
        %3033 = vmatprep.subr.mxu0 0.0
        %3034 = vmatpush1.msra.mxu0 0.0
        %3035 = vmatprep.subr.mxu0 0.0
        %3036 = vmatpush1.msra.mxu0 0.0
        %3037 = vmatprep.subr.mxu0 0.0
        %3038 = vmatpush1.msra.mxu0 0.0
        %3039 = vmatprep.mubr.f32.mxu0 0.0
        %3040 = vmatmul.mubr.f32.gmra.mrb[0].mxu0 %v2973
        %v3041 = vpop.f32.mrb[0].mxu0
        %v3042 = vadd.f32 0.0, %v3041
        %v3043 = vpop.f32.mrb[0].mxu0
        %3044 = vdwg.mxu0
        %s3045 = scalar_lea.vmem [#allocation4], 32
        %v3046 = vld [vmem:[%s3045] sm:$0xff]
        %s3047 = scalar_lea.vmem [#allocation2], 480
        %v3048 = vld [vmem:[%s3047] sm:$0xff]
        %v3049 = vld [vmem:[%s3047 + $0x8] sm:$0xff]
        %v3050 = vld [vmem:[%s3047 + $0x10] sm:$0xff]
        %v3051 = vld [vmem:[%s3047 + $0x18] sm:$0xff]
        %s3052 = scalar_lea.vmem %s3, 15
        %v3053 = vld [vmem:[%s3052] sm:$0x1]
        %v3055 = vlaneseq
        %v3056 = vshrl.u32 %v3055, 7
        %v3057 = vsub.s32 0, %v3056
        %v3058 = vrot.slane %v3053, %v3057
        %3060 = vmatprep.subr.mxu0 0.0
        %3061 = vmatpush1.msra.mxu0 %v3048
        %3062 = vmatprep.subr.mxu0 0.0
        %3063 = vmatpush1.msra.mxu0 %v3049
        %3064 = vmatprep.subr.mxu0 0.0
        %3065 = vmatpush1.msra.mxu0 %v3050
        %3066 = vmatprep.subr.mxu0 0.0
        %3067 = vmatpush1.msra.mxu0 %v3051
        %3068 = vmatprep.subr.mxu0 0.0
        %3069 = vmatpush1.msra.mxu0 0.0
        %3070 = vmatprep.subr.mxu0 0.0
        %3071 = vmatpush1.msra.mxu0 0.0
        %3072 = vmatprep.subr.mxu0 0.0
        %3073 = vmatpush1.msra.mxu0 0.0
        %3074 = vmatprep.subr.mxu0 0.0
        %3075 = vmatpush1.msra.mxu0 0.0
        %3076 = vmatprep.subr.mxu0 0.0
        %3077 = vmatpush1.msra.mxu0 0.0
        %3078 = vmatprep.subr.mxu0 0.0
        %3079 = vmatpush1.msra.mxu0 0.0
        %3080 = vmatprep.subr.mxu0 0.0
        %3081 = vmatpush1.msra.mxu0 0.0
        %3082 = vmatprep.subr.mxu0 0.0
        %3083 = vmatpush1.msra.mxu0 0.0
        %3084 = vmatprep.subr.mxu0 0.0
        %3085 = vmatpush1.msra.mxu0 0.0
        %3086 = vmatprep.subr.mxu0 0.0
        %3087 = vmatpush1.msra.mxu0 0.0
        %3088 = vmatprep.subr.mxu0 0.0
        %3089 = vmatpush1.msra.mxu0 0.0
        %3090 = vmatprep.subr.mxu0 0.0
        %3091 = vmatpush1.msra.mxu0 0.0
        %3092 = vmatprep.subr.mxu0 0.0
        %3093 = vmatpush1.msra.mxu0 0.0
        %3094 = vmatprep.subr.mxu0 0.0
        %3095 = vmatpush1.msra.mxu0 0.0
        %3096 = vmatprep.subr.mxu0 0.0
        %3097 = vmatpush1.msra.mxu0 0.0
        %3098 = vmatprep.subr.mxu0 0.0
        %3099 = vmatpush1.msra.mxu0 0.0
        %3100 = vmatprep.subr.mxu0 0.0
        %3101 = vmatpush1.msra.mxu0 0.0
        %3102 = vmatprep.subr.mxu0 0.0
        %3103 = vmatpush1.msra.mxu0 0.0
        %3104 = vmatprep.subr.mxu0 0.0
        %3105 = vmatpush1.msra.mxu0 0.0
        %3106 = vmatprep.subr.mxu0 0.0
        %3107 = vmatpush1.msra.mxu0 0.0
        %3108 = vmatprep.subr.mxu0 0.0
        %3109 = vmatpush1.msra.mxu0 0.0
        %3110 = vmatprep.subr.mxu0 0.0
        %3111 = vmatpush1.msra.mxu0 0.0
        %3112 = vmatprep.subr.mxu0 0.0
        %3113 = vmatpush1.msra.mxu0 0.0
        %3114 = vmatprep.subr.mxu0 0.0
        %3115 = vmatpush1.msra.mxu0 0.0
        %3116 = vmatprep.subr.mxu0 0.0
        %3117 = vmatpush1.msra.mxu0 0.0
        %3118 = vmatprep.subr.mxu0 0.0
        %3119 = vmatpush1.msra.mxu0 0.0
        %3120 = vmatprep.subr.mxu0 0.0
        %3121 = vmatpush1.msra.mxu0 0.0
        %3122 = vmatprep.subr.mxu0 0.0
        %3123 = vmatpush1.msra.mxu0 0.0
        %3124 = vmatprep.mubr.f32.mxu0 0.0
        %3125 = vmatmul.mubr.f32.gmra.mrb[0].mxu0 %v2645
        %v3126 = vpop.f32.mrb[0].mxu0
        %v3127 = vadd.f32 %v3058, %v3126
        %v3128 = vpop.f32.mrb[0].mxu0
        %3129 = vdwg.mxu0
        %s3130 = scalar_lea.vmem [#allocation2], 512
        %v3131 = vld [vmem:[%s3130] sm:$0xff]
        %v3132 = vld [vmem:[%s3130 + $0x8] sm:$0xff]
        %v3133 = vld [vmem:[%s3130 + $0x10] sm:$0xff]
        %v3134 = vld [vmem:[%s3130 + $0x18] sm:$0xff]
        %s3135 = scalar_lea.vmem %s3, 16
        %v3136 = vld [vmem:[%s3135] sm:$0x1]
        %v3138 = vlaneseq
        %v3139 = vshrl.u32 %v3138, 7
        %v3140 = vsub.s32 0, %v3139
        %v3141 = vrot.slane %v3136, %v3140
        %3143 = vmatprep.subr.mxu0 0.0
        %3144 = vmatpush1.msra.mxu0 %v3131
        %3145 = vmatprep.subr.mxu0 0.0
        %3146 = vmatpush1.msra.mxu0 %v3132
        %3147 = vmatprep.subr.mxu0 0.0
        %3148 = vmatpush1.msra.mxu0 %v3133
        %3149 = vmatprep.subr.mxu0 0.0
        %3150 = vmatpush1.msra.mxu0 %v3134
        %3151 = vmatprep.subr.mxu0 0.0
        %3152 = vmatpush1.msra.mxu0 0.0
        %3153 = vmatprep.subr.mxu0 0.0
        %3154 = vmatpush1.msra.mxu0 0.0
        %3155 = vmatprep.subr.mxu0 0.0
        %3156 = vmatpush1.msra.mxu0 0.0
        %3157 = vmatprep.subr.mxu0 0.0
        %3158 = vmatpush1.msra.mxu0 0.0
        %3159 = vmatprep.subr.mxu0 0.0
        %3160 = vmatpush1.msra.mxu0 0.0
        %3161 = vmatprep.subr.mxu0 0.0
        %3162 = vmatpush1.msra.mxu0 0.0
        %3163 = vmatprep.subr.mxu0 0.0
        %3164 = vmatpush1.msra.mxu0 0.0
        %3165 = vmatprep.subr.mxu0 0.0
        %3166 = vmatpush1.msra.mxu0 0.0
        %3167 = vmatprep.subr.mxu0 0.0
        %3168 = vmatpush1.msra.mxu0 0.0
        %3169 = vmatprep.subr.mxu0 0.0
        %3170 = vmatpush1.msra.mxu0 0.0
        %3171 = vmatprep.subr.mxu0 0.0
        %3172 = vmatpush1.msra.mxu0 0.0
        %3173 = vmatprep.subr.mxu0 0.0
        %3174 = vmatpush1.msra.mxu0 0.0
        %3175 = vmatprep.subr.mxu0 0.0
        %3176 = vmatpush1.msra.mxu0 0.0
        %3177 = vmatprep.subr.mxu0 0.0
        %3178 = vmatpush1.msra.mxu0 0.0
        %3179 = vmatprep.subr.mxu0 0.0
        %3180 = vmatpush1.msra.mxu0 0.0
        %3181 = vmatprep.subr.mxu0 0.0
        %3182 = vmatpush1.msra.mxu0 0.0
        %3183 = vmatprep.subr.mxu0 0.0
        %3184 = vmatpush1.msra.mxu0 0.0
        %3185 = vmatprep.subr.mxu0 0.0
        %3186 = vmatpush1.msra.mxu0 0.0
        %3187 = vmatprep.subr.mxu0 0.0
        %3188 = vmatpush1.msra.mxu0 0.0
        %3189 = vmatprep.subr.mxu0 0.0
        %3190 = vmatpush1.msra.mxu0 0.0
        %3191 = vmatprep.subr.mxu0 0.0
        %3192 = vmatpush1.msra.mxu0 0.0
        %3193 = vmatprep.subr.mxu0 0.0
        %3194 = vmatpush1.msra.mxu0 0.0
        %3195 = vmatprep.subr.mxu0 0.0
        %3196 = vmatpush1.msra.mxu0 0.0
        %3197 = vmatprep.subr.mxu0 0.0
        %3198 = vmatpush1.msra.mxu0 0.0
        %3199 = vmatprep.subr.mxu0 0.0
        %3200 = vmatpush1.msra.mxu0 0.0
        %3201 = vmatprep.subr.mxu0 0.0
        %3202 = vmatpush1.msra.mxu0 0.0
        %3203 = vmatprep.subr.mxu0 0.0
        %3204 = vmatpush1.msra.mxu0 0.0
        %3205 = vmatprep.subr.mxu0 0.0
        %3206 = vmatpush1.msra.mxu0 0.0
        %3207 = vmatprep.mubr.f32.mxu0 0.0
        %3208 = vmatmul.mubr.f32.gmra.mrb[0].mxu0 %v2645
        %v3209 = vpop.f32.mrb[0].mxu0
        %v3210 = vadd.f32 %v3141, %v3209
        %v3211 = vpop.f32.mrb[0].mxu0
        %3212 = vdwg.mxu0
        %s3213 = scalar_lea.vmem [#allocation2], 544
        %v3214 = vld [vmem:[%s3213] sm:$0xff]
        %v3215 = vld [vmem:[%s3213 + $0x8] sm:$0xff]
        %v3216 = vld [vmem:[%s3213 + $0x10] sm:$0xff]
        %v3217 = vld [vmem:[%s3213 + $0x18] sm:$0xff]
        %s3218 = scalar_lea.vmem %s3, 17
        %v3219 = vld [vmem:[%s3218] sm:$0x1]
        %v3221 = vlaneseq
        %v3222 = vshrl.u32 %v3221, 7
        %v3223 = vsub.s32 0, %v3222
        %v3224 = vrot.slane %v3219, %v3223
        %3226 = vmatprep.subr.mxu0 0.0
        %3227 = vmatpush1.msra.mxu0 %v3214
        %3228 = vmatprep.subr.mxu0 0.0
        %3229 = vmatpush1.msra.mxu0 %v3215
        %3230 = vmatprep.subr.mxu0 0.0
        %3231 = vmatpush1.msra.mxu0 %v3216
        %3232 = vmatprep.subr.mxu0 0.0
        %3233 = vmatpush1.msra.mxu0 %v3217
        %3234 = vmatprep.subr.mxu0 0.0
        %3235 = vmatpush1.msra.mxu0 0.0
        %3236 = vmatprep.subr.mxu0 0.0
        %3237 = vmatpush1.msra.mxu0 0.0
        %3238 = vmatprep.subr.mxu0 0.0
        %3239 = vmatpush1.msra.mxu0 0.0
        %3240 = vmatprep.subr.mxu0 0.0
        %3241 = vmatpush1.msra.mxu0 0.0
        %3242 = vmatprep.subr.mxu0 0.0
        %3243 = vmatpush1.msra.mxu0 0.0
        %3244 = vmatprep.subr.mxu0 0.0
        %3245 = vmatpush1.msra.mxu0 0.0
        %3246 = vmatprep.subr.mxu0 0.0
        %3247 = vmatpush1.msra.mxu0 0.0
        %3248 = vmatprep.subr.mxu0 0.0
        %3249 = vmatpush1.msra.mxu0 0.0
        %3250 = vmatprep.subr.mxu0 0.0
        %3251 = vmatpush1.msra.mxu0 0.0
        %3252 = vmatprep.subr.mxu0 0.0
        %3253 = vmatpush1.msra.mxu0 0.0
        %3254 = vmatprep.subr.mxu0 0.0
        %3255 = vmatpush1.msra.mxu0 0.0
        %3256 = vmatprep.subr.mxu0 0.0
        %3257 = vmatpush1.msra.mxu0 0.0
        %3258 = vmatprep.subr.mxu0 0.0
        %3259 = vmatpush1.msra.mxu0 0.0
        %3260 = vmatprep.subr.mxu0 0.0
        %3261 = vmatpush1.msra.mxu0 0.0
        %3262 = vmatprep.subr.mxu0 0.0
        %3263 = vmatpush1.msra.mxu0 0.0
        %3264 = vmatprep.subr.mxu0 0.0
        %3265 = vmatpush1.msra.mxu0 0.0
        %3266 = vmatprep.subr.mxu0 0.0
        %3267 = vmatpush1.msra.mxu0 0.0
        %3268 = vmatprep.subr.mxu0 0.0
        %3269 = vmatpush1.msra.mxu0 0.0
        %3270 = vmatprep.subr.mxu0 0.0
        %3271 = vmatpush1.msra.mxu0 0.0
        %3272 = vmatprep.subr.mxu0 0.0
        %3273 = vmatpush1.msra.mxu0 0.0
        %3274 = vmatprep.subr.mxu0 0.0
        %3275 = vmatpush1.msra.mxu0 0.0
        %3276 = vmatprep.subr.mxu0 0.0
        %3277 = vmatpush1.msra.mxu0 0.0
        %3278 = vmatprep.subr.mxu0 0.0
        %3279 = vmatpush1.msra.mxu0 0.0
        %3280 = vmatprep.subr.mxu0 0.0
        %3281 = vmatpush1.msra.mxu0 0.0
        %3282 = vmatprep.subr.mxu0 0.0
        %3283 = vmatpush1.msra.mxu0 0.0
        %3284 = vmatprep.subr.mxu0 0.0
        %3285 = vmatpush1.msra.mxu0 0.0
        %3286 = vmatprep.subr.mxu0 0.0
        %3287 = vmatpush1.msra.mxu0 0.0
        %3288 = vmatprep.subr.mxu0 0.0
        %3289 = vmatpush1.msra.mxu0 0.0
        %3290 = vmatprep.mubr.f32.mxu0 0.0
        %3291 = vmatmul.mubr.f32.gmra.mrb[0].mxu0 %v2645
        %v3292 = vpop.f32.mrb[0].mxu0
        %v3293 = vadd.f32 %v3224, %v3292
        %v3294 = vpop.f32.mrb[0].mxu0
        %3295 = vdwg.mxu0
        %v3297 = vsel %vm694, %v3127, 0
        %v3300 = vsel %vm694, %v3210, 0
        %3302 = vmatprep.subr.mxu0 0.0
        %3303 = vmatpush1.xpose.msra.mxu0 %v3300
        %3304 = vmatprep.subr.mxu0 0.0
        %3305 = vmatpush1.xpose.msra.mxu0 0.0
        %3306 = vmatprep.subr.mxu0 0.0
        %3307 = vmatpush1.xpose.msra.mxu0 0.0
        %3308 = vmatprep.subr.mxu0 0.0
        %3309 = vmatpush1.xpose.msra.mxu0 0.0
        %3310 = vmatprep.subr.mxu0 0.0
        %3311 = vmatpush1.xpose.msra.mxu0 0.0
        %3312 = vmatprep.subr.mxu0 0.0
        %3313 = vmatpush1.xpose.msra.mxu0 0.0
        %3314 = vmatprep.subr.mxu0 0.0
        %3315 = vmatpush1.xpose.msra.mxu0 0.0
        %3316 = vmatprep.subr.mxu0 0.0
        %3317 = vmatpush1.xpose.msra.mxu0 0.0
        %3318 = vmatprep.subr.mxu0 0.0
        %3319 = vmatpush1.xpose.msra.mxu0 0.0
        %3320 = vmatprep.subr.mxu0 0.0
        %3321 = vmatpush1.xpose.msra.mxu0 0.0
        %3322 = vmatprep.subr.mxu0 0.0
        %3323 = vmatpush1.xpose.msra.mxu0 0.0
        %3324 = vmatprep.subr.mxu0 0.0
        %3325 = vmatpush1.xpose.msra.mxu0 0.0
        %3326 = vmatprep.subr.mxu0 0.0
        %3327 = vmatpush1.xpose.msra.mxu0 0.0
        %3328 = vmatprep.subr.mxu0 0.0
        %3329 = vmatpush1.xpose.msra.mxu0 0.0
        %3330 = vmatprep.subr.mxu0 0.0
        %3331 = vmatpush1.xpose.msra.mxu0 0.0
        %3332 = vmatprep.subr.mxu0 0.0
        %3333 = vmatpush1.xpose.msra.mxu0 0.0
        %3334 = vmatprep.subr.mxu0 0.0
        %3335 = vmatpush1.xpose.msra.mxu0 0.0
        %3336 = vmatprep.subr.mxu0 0.0
        %3337 = vmatpush1.xpose.msra.mxu0 0.0
        %3338 = vmatprep.subr.mxu0 0.0
        %3339 = vmatpush1.xpose.msra.mxu0 0.0
        %3340 = vmatprep.subr.mxu0 0.0
        %3341 = vmatpush1.xpose.msra.mxu0 0.0
        %3342 = vmatprep.subr.mxu0 0.0
        %3343 = vmatpush1.xpose.msra.mxu0 0.0
        %3344 = vmatprep.subr.mxu0 0.0
        %3345 = vmatpush1.xpose.msra.mxu0 0.0
        %3346 = vmatprep.subr.mxu0 0.0
        %3347 = vmatpush1.xpose.msra.mxu0 0.0
        %3348 = vmatprep.subr.mxu0 0.0
        %3349 = vmatpush1.xpose.msra.mxu0 0.0
        %3350 = vmatprep.subr.mxu0 0.0
        %3351 = vmatpush1.xpose.msra.mxu0 0.0
        %3352 = vmatprep.subr.mxu0 0.0
        %3353 = vmatpush1.xpose.msra.mxu0 0.0
        %3354 = vmatprep.subr.mxu0 0.0
        %3355 = vmatpush1.xpose.msra.mxu0 0.0
        %3356 = vmatprep.subr.mxu0 0.0
        %3357 = vmatpush1.xpose.msra.mxu0 0.0
        %3358 = vmatprep.subr.mxu0 0.0
        %3359 = vmatpush1.xpose.msra.mxu0 0.0
        %3360 = vmatprep.subr.mxu0 0.0
        %3361 = vmatpush1.xpose.msra.mxu0 0.0
        %3362 = vmatprep.subr.mxu0 0.0
        %3363 = vmatpush1.xpose.msra.mxu0 0.0
        %3364 = vmatprep.subr.mxu0 0.0
        %3365 = vmatpush1.xpose.msra.mxu0 0.0
        %3366 = vmatprep.mubr.f32.mxu0 0.0
        %3367 = vmatmul.mubr.f32.gmra.mrb[0].mxu0 %v3297
        %v3368 = vpop.f32.mrb[0].mxu0
        %v3369 = vadd.f32 0.0, %v3368
        %v3370 = vpop.f32.mrb[0].mxu0
        %3371 = vdwg.mxu0
        %v3372 = vmul.f32 %v3369, 0.35355338
        %v3373 = vadd.f32 %v3372, %v415
        %v3374 = vsel %vm694, %v3373, -inf
        %3375 = vmax.xlane.f32.xlu0 %v3374
        %v3376 = vpop.xlane.xlu0 %3375
        %v3377 = vsub.f32 %v3373, %v3376
        %v3378 = vmul.f32 %v3377, 1.442695
        %v3379 = vpow.pop %v3378
        %v3380 = vsel %vm694, %v3379, 0.0
        %3381 = vadd.xlane.f32.xlu0 %v3380
        %v3382 = vpop.xlane.xlu0 %3381
        %v3383 = vrcp.pop %v3382
        %v3384 = vmul.f32 %v3379, %v3383
        %v3386 = vsel %vm694, %v3384, 0
        %3388 = vmatprep.subr.mxu0 0.0
        %3389 = vmatpush1.msra.mxu0 %v3293
        %3390 = vmatprep.subr.mxu0 0.0
        %3391 = vmatpush1.msra.mxu0 0.0
        %3392 = vmatprep.subr.mxu0 0.0
        %3393 = vmatpush1.msra.mxu0 0.0
        %3394 = vmatprep.subr.mxu0 0.0
        %3395 = vmatpush1.msra.mxu0 0.0
        %3396 = vmatprep.subr.mxu0 0.0
        %3397 = vmatpush1.msra.mxu0 0.0
        %3398 = vmatprep.subr.mxu0 0.0
        %3399 = vmatpush1.msra.mxu0 0.0
        %3400 = vmatprep.subr.mxu0 0.0
        %3401 = vmatpush1.msra.mxu0 0.0
        %3402 = vmatprep.subr.mxu0 0.0
        %3403 = vmatpush1.msra.mxu0 0.0
        %3404 = vmatprep.subr.mxu0 0.0
        %3405 = vmatpush1.msra.mxu0 0.0
        %3406 = vmatprep.subr.mxu0 0.0
        %3407 = vmatpush1.msra.mxu0 0.0
        %3408 = vmatprep.subr.mxu0 0.0
        %3409 = vmatpush1.msra.mxu0 0.0
        %3410 = vmatprep.subr.mxu0 0.0
        %3411 = vmatpush1.msra.mxu0 0.0
        %3412 = vmatprep.subr.mxu0 0.0
        %3413 = vmatpush1.msra.mxu0 0.0
        %3414 = vmatprep.subr.mxu0 0.0
        %3415 = vmatpush1.msra.mxu0 0.0
        %3416 = vmatprep.subr.mxu0 0.0
        %3417 = vmatpush1.msra.mxu0 0.0
        %3418 = vmatprep.subr.mxu0 0.0
        %3419 = vmatpush1.msra.mxu0 0.0
        %3420 = vmatprep.subr.mxu0 0.0
        %3421 = vmatpush1.msra.mxu0 0.0
        %3422 = vmatprep.subr.mxu0 0.0
        %3423 = vmatpush1.msra.mxu0 0.0
        %3424 = vmatprep.subr.mxu0 0.0
        %3425 = vmatpush1.msra.mxu0 0.0
        %3426 = vmatprep.subr.mxu0 0.0
        %3427 = vmatpush1.msra.mxu0 0.0
        %3428 = vmatprep.subr.mxu0 0.0
        %3429 = vmatpush1.msra.mxu0 0.0
        %3430 = vmatprep.subr.mxu0 0.0
        %3431 = vmatpush1.msra.mxu0 0.0
        %3432 = vmatprep.subr.mxu0 0.0
        %3433 = vmatpush1.msra.mxu0 0.0
        %3434 = vmatprep.subr.mxu0 0.0
        %3435 = vmatpush1.msra.mxu0 0.0
        %3436 = vmatprep.subr.mxu0 0.0
        %3437 = vmatpush1.msra.mxu0 0.0
        %3438 = vmatprep.subr.mxu0 0.0
        %3439 = vmatpush1.msra.mxu0 0.0
        %3440 = vmatprep.subr.mxu0 0.0
        %3441 = vmatpush1.msra.mxu0 0.0
        %3442 = vmatprep.subr.mxu0 0.0
        %3443 = vmatpush1.msra.mxu0 0.0
        %3444 = vmatprep.subr.mxu0 0.0
        %3445 = vmatpush1.msra.mxu0 0.0
        %3446 = vmatprep.subr.mxu0 0.0
        %3447 = vmatpush1.msra.mxu0 0.0
        %3448 = vmatprep.subr.mxu0 0.0
        %3449 = vmatpush1.msra.mxu0 0.0
        %3450 = vmatprep.subr.mxu0 0.0
        %3451 = vmatpush1.msra.mxu0 0.0
        %3452 = vmatprep.mubr.f32.mxu0 0.0
        %3453 = vmatmul.mubr.f32.gmra.mrb[0].mxu0 %v3386
        %v3454 = vpop.f32.mrb[0].mxu0
        %v3455 = vadd.f32 0.0, %v3454
        %v3456 = vpop.f32.mrb[0].mxu0
        %3457 = vdwg.mxu0
        %v3458 = vld [vmem:[%s3045 + $0x8] sm:$0xff]
        %v3460 = vsel %vm694, %v3455, 0
        %3462 = vmatprep.subr.mxu0 0.0
        %3463 = vmatpush1.msra.mxu0 %v3458
        %3464 = vmatprep.subr.mxu0 0.0
        %3465 = vmatpush1.msra.mxu0 0.0
        %3466 = vmatprep.subr.mxu0 0.0
        %3467 = vmatpush1.msra.mxu0 0.0
        %3468 = vmatprep.subr.mxu0 0.0
        %3469 = vmatpush1.msra.mxu0 0.0
        %3470 = vmatprep.subr.mxu0 0.0
        %3471 = vmatpush1.msra.mxu0 0.0
        %3472 = vmatprep.subr.mxu0 0.0
        %3473 = vmatpush1.msra.mxu0 0.0
        %3474 = vmatprep.subr.mxu0 0.0
        %3475 = vmatpush1.msra.mxu0 0.0
        %3476 = vmatprep.subr.mxu0 0.0
        %3477 = vmatpush1.msra.mxu0 0.0
        %3478 = vmatprep.subr.mxu0 0.0
        %3479 = vmatpush1.msra.mxu0 0.0
        %3480 = vmatprep.subr.mxu0 0.0
        %3481 = vmatpush1.msra.mxu0 0.0
        %3482 = vmatprep.subr.mxu0 0.0
        %3483 = vmatpush1.msra.mxu0 0.0
        %3484 = vmatprep.subr.mxu0 0.0
        %3485 = vmatpush1.msra.mxu0 0.0
        %3486 = vmatprep.subr.mxu0 0.0
        %3487 = vmatpush1.msra.mxu0 0.0
        %3488 = vmatprep.subr.mxu0 0.0
        %3489 = vmatpush1.msra.mxu0 0.0
        %3490 = vmatprep.subr.mxu0 0.0
        %3491 = vmatpush1.msra.mxu0 0.0
        %3492 = vmatprep.subr.mxu0 0.0
        %3493 = vmatpush1.msra.mxu0 0.0
        %3494 = vmatprep.subr.mxu0 0.0
        %3495 = vmatpush1.msra.mxu0 0.0
        %3496 = vmatprep.subr.mxu0 0.0
        %3497 = vmatpush1.msra.mxu0 0.0
        %3498 = vmatprep.subr.mxu0 0.0
        %3499 = vmatpush1.msra.mxu0 0.0
        %3500 = vmatprep.subr.mxu0 0.0
        %3501 = vmatpush1.msra.mxu0 0.0
        %3502 = vmatprep.subr.mxu0 0.0
        %3503 = vmatpush1.msra.mxu0 0.0
        %3504 = vmatprep.subr.mxu0 0.0
        %3505 = vmatpush1.msra.mxu0 0.0
        %3506 = vmatprep.subr.mxu0 0.0
        %3507 = vmatpush1.msra.mxu0 0.0
        %3508 = vmatprep.subr.mxu0 0.0
        %3509 = vmatpush1.msra.mxu0 0.0
        %3510 = vmatprep.subr.mxu0 0.0
        %3511 = vmatpush1.msra.mxu0 0.0
        %3512 = vmatprep.subr.mxu0 0.0
        %3513 = vmatpush1.msra.mxu0 0.0
        %3514 = vmatprep.subr.mxu0 0.0
        %3515 = vmatpush1.msra.mxu0 0.0
        %3516 = vmatprep.subr.mxu0 0.0
        %3517 = vmatpush1.msra.mxu0 0.0
        %3518 = vmatprep.subr.mxu0 0.0
        %3519 = vmatpush1.msra.mxu0 0.0
        %3520 = vmatprep.subr.mxu0 0.0
        %3521 = vmatpush1.msra.mxu0 0.0
        %3522 = vmatprep.subr.mxu0 0.0
        %3523 = vmatpush1.msra.mxu0 0.0
        %3524 = vmatprep.subr.mxu0 0.0
        %3525 = vmatpush1.msra.mxu0 0.0
        %3526 = vmatprep.mubr.f32.mxu0 0.0
        %3527 = vmatmul.mubr.f32.gmra.mrb[0].mxu0 %v3460
        %v3528 = vpop.f32.mrb[0].mxu0
        %v3529 = vadd.f32 0.0, %v3528
        %v3530 = vpop.f32.mrb[0].mxu0
        %3531 = vdwg.mxu0
        %v3533 = vsel %vm694, %v3042, 0
        %3535 = vmatprep.subr.mxu0 0.0
        %3536 = vmatpush1.msra.mxu0 %v3046
        %3537 = vmatprep.subr.mxu0 0.0
        %3538 = vmatpush1.msra.mxu0 0.0
        %3539 = vmatprep.subr.mxu0 0.0
        %3540 = vmatpush1.msra.mxu0 0.0
        %3541 = vmatprep.subr.mxu0 0.0
        %3542 = vmatpush1.msra.mxu0 0.0
        %3543 = vmatprep.subr.mxu0 0.0
        %3544 = vmatpush1.msra.mxu0 0.0
        %3545 = vmatprep.subr.mxu0 0.0
        %3546 = vmatpush1.msra.mxu0 0.0
        %3547 = vmatprep.subr.mxu0 0.0
        %3548 = vmatpush1.msra.mxu0 0.0
        %3549 = vmatprep.subr.mxu0 0.0
        %3550 = vmatpush1.msra.mxu0 0.0
        %3551 = vmatprep.subr.mxu0 0.0
        %3552 = vmatpush1.msra.mxu0 0.0
        %3553 = vmatprep.subr.mxu0 0.0
        %3554 = vmatpush1.msra.mxu0 0.0
        %3555 = vmatprep.subr.mxu0 0.0
        %3556 = vmatpush1.msra.mxu0 0.0
        %3557 = vmatprep.subr.mxu0 0.0
        %3558 = vmatpush1.msra.mxu0 0.0
        %3559 = vmatprep.subr.mxu0 0.0
        %3560 = vmatpush1.msra.mxu0 0.0
        %3561 = vmatprep.subr.mxu0 0.0
        %3562 = vmatpush1.msra.mxu0 0.0
        %3563 = vmatprep.subr.mxu0 0.0
        %3564 = vmatpush1.msra.mxu0 0.0
        %3565 = vmatprep.subr.mxu0 0.0
        %3566 = vmatpush1.msra.mxu0 0.0
        %3567 = vmatprep.subr.mxu0 0.0
        %3568 = vmatpush1.msra.mxu0 0.0
        %3569 = vmatprep.subr.mxu0 0.0
        %3570 = vmatpush1.msra.mxu0 0.0
        %3571 = vmatprep.subr.mxu0 0.0
        %3572 = vmatpush1.msra.mxu0 0.0
        %3573 = vmatprep.subr.mxu0 0.0
        %3574 = vmatpush1.msra.mxu0 0.0
        %3575 = vmatprep.subr.mxu0 0.0
        %3576 = vmatpush1.msra.mxu0 0.0
        %3577 = vmatprep.subr.mxu0 0.0
        %3578 = vmatpush1.msra.mxu0 0.0
        %3579 = vmatprep.subr.mxu0 0.0
        %3580 = vmatpush1.msra.mxu0 0.0
        %3581 = vmatprep.subr.mxu0 0.0
        %3582 = vmatpush1.msra.mxu0 0.0
        %3583 = vmatprep.subr.mxu0 0.0
        %3584 = vmatpush1.msra.mxu0 0.0
        %3585 = vmatprep.subr.mxu0 0.0
        %3586 = vmatpush1.msra.mxu0 0.0
        %3587 = vmatprep.subr.mxu0 0.0
        %3588 = vmatpush1.msra.mxu0 0.0
        %3589 = vmatprep.subr.mxu0 0.0
        %3590 = vmatpush1.msra.mxu0 0.0
        %3591 = vmatprep.subr.mxu0 0.0
        %3592 = vmatpush1.msra.mxu0 0.0
        %3593 = vmatprep.subr.mxu0 0.0
        %3594 = vmatpush1.msra.mxu0 0.0
        %3595 = vmatprep.subr.mxu0 0.0
        %3596 = vmatpush1.msra.mxu0 0.0
        %3597 = vmatprep.subr.mxu0 0.0
        %3598 = vmatpush1.msra.mxu0 0.0
        %3599 = vmatprep.mubr.f32.mxu0 0.0
        %3600 = vmatmul.mubr.f32.gmra.mrb[0].mxu0 %v3533
        %v3601 = vpop.f32.mrb[0].mxu0
        %v3602 = vadd.f32 %v3529, %v3601
        %v3603 = vpop.f32.mrb[0].mxu0
        %3604 = vdwg.mxu0
        %s3605 = scalar_lea.vmem [#allocation2], 576
        %v3606 = vld [vmem:[%s3605] sm:$0xff]
        %v3607 = vld [vmem:[%s3605 + $0x8] sm:$0xff]
        %v3608 = vld [vmem:[%s3605 + $0x10] sm:$0xff]
        %v3609 = vld [vmem:[%s3605 + $0x18] sm:$0xff]
        %s3610 = scalar_lea.vmem %s3, 18
        %v3611 = vld [vmem:[%s3610] sm:$0x1]
        %v3613 = vlaneseq
        %v3614 = vshrl.u32 %v3613, 7
        %v3615 = vsub.s32 0, %v3614
        %v3616 = vrot.slane %v3611, %v3615
        %3618 = vmatprep.subr.mxu0 0.0
        %3619 = vmatpush1.msra.mxu0 %v3606
        %3620 = vmatprep.subr.mxu0 0.0
        %3621 = vmatpush1.msra.mxu0 %v3607
        %3622 = vmatprep.subr.mxu0 0.0
        %3623 = vmatpush1.msra.mxu0 %v3608
        %3624 = vmatprep.subr.mxu0 0.0
        %3625 = vmatpush1.msra.mxu0 %v3609
        %3626 = vmatprep.subr.mxu0 0.0
        %3627 = vmatpush1.msra.mxu0 0.0
        %3628 = vmatprep.subr.mxu0 0.0
        %3629 = vmatpush1.msra.mxu0 0.0
        %3630 = vmatprep.subr.mxu0 0.0
        %3631 = vmatpush1.msra.mxu0 0.0
        %3632 = vmatprep.subr.mxu0 0.0
        %3633 = vmatpush1.msra.mxu0 0.0
        %3634 = vmatprep.subr.mxu0 0.0
        %3635 = vmatpush1.msra.mxu0 0.0
        %3636 = vmatprep.subr.mxu0 0.0
        %3637 = vmatpush1.msra.mxu0 0.0
        %3638 = vmatprep.subr.mxu0 0.0
        %3639 = vmatpush1.msra.mxu0 0.0
        %3640 = vmatprep.subr.mxu0 0.0
        %3641 = vmatpush1.msra.mxu0 0.0
        %3642 = vmatprep.subr.mxu0 0.0
        %3643 = vmatpush1.msra.mxu0 0.0
        %3644 = vmatprep.subr.mxu0 0.0
        %3645 = vmatpush1.msra.mxu0 0.0
        %3646 = vmatprep.subr.mxu0 0.0
        %3647 = vmatpush1.msra.mxu0 0.0
        %3648 = vmatprep.subr.mxu0 0.0
        %3649 = vmatpush1.msra.mxu0 0.0
        %3650 = vmatprep.subr.mxu0 0.0
        %3651 = vmatpush1.msra.mxu0 0.0
        %3652 = vmatprep.subr.mxu0 0.0
        %3653 = vmatpush1.msra.mxu0 0.0
        %3654 = vmatprep.subr.mxu0 0.0
        %3655 = vmatpush1.msra.mxu0 0.0
        %3656 = vmatprep.subr.mxu0 0.0
        %3657 = vmatpush1.msra.mxu0 0.0
        %3658 = vmatprep.subr.mxu0 0.0
        %3659 = vmatpush1.msra.mxu0 0.0
        %3660 = vmatprep.subr.mxu0 0.0
        %3661 = vmatpush1.msra.mxu0 0.0
        %3662 = vmatprep.subr.mxu0 0.0
        %3663 = vmatpush1.msra.mxu0 0.0
        %3664 = vmatprep.subr.mxu0 0.0
        %3665 = vmatpush1.msra.mxu0 0.0
        %3666 = vmatprep.subr.mxu0 0.0
        %3667 = vmatpush1.msra.mxu0 0.0
        %3668 = vmatprep.subr.mxu0 0.0
        %3669 = vmatpush1.msra.mxu0 0.0
        %3670 = vmatprep.subr.mxu0 0.0
        %3671 = vmatpush1.msra.mxu0 0.0
        %3672 = vmatprep.subr.mxu0 0.0
        %3673 = vmatpush1.msra.mxu0 0.0
        %3674 = vmatprep.subr.mxu0 0.0
        %3675 = vmatpush1.msra.mxu0 0.0
        %3676 = vmatprep.subr.mxu0 0.0
        %3677 = vmatpush1.msra.mxu0 0.0
        %3678 = vmatprep.subr.mxu0 0.0
        %3679 = vmatpush1.msra.mxu0 0.0
        %3680 = vmatprep.subr.mxu0 0.0
        %3681 = vmatpush1.msra.mxu0 0.0
        %3682 = vmatprep.mubr.f32.mxu0 0.0
        %3683 = vmatmul.mubr.f32.gmra.mrb[0].mxu0 %v2645
        %v3684 = vpop.f32.mrb[0].mxu0
        %v3685 = vadd.f32 %v3616, %v3684
        %v3686 = vpop.f32.mrb[0].mxu0
        %3687 = vdwg.mxu0
        %s3688 = scalar_lea.vmem [#allocation2], 608
        %v3689 = vld [vmem:[%s3688] sm:$0xff]
        %v3690 = vld [vmem:[%s3688 + $0x8] sm:$0xff]
        %v3691 = vld [vmem:[%s3688 + $0x10] sm:$0xff]
        %v3692 = vld [vmem:[%s3688 + $0x18] sm:$0xff]
        %s3693 = scalar_lea.vmem %s3, 19
        %v3694 = vld [vmem:[%s3693] sm:$0x1]
        %v3696 = vlaneseq
        %v3697 = vshrl.u32 %v3696, 7
        %v3698 = vsub.s32 0, %v3697
        %v3699 = vrot.slane %v3694, %v3698
        %3701 = vmatprep.subr.mxu0 0.0
        %3702 = vmatpush1.msra.mxu0 %v3689
        %3703 = vmatprep.subr.mxu0 0.0
        %3704 = vmatpush1.msra.mxu0 %v3690
        %3705 = vmatprep.subr.mxu0 0.0
        %3706 = vmatpush1.msra.mxu0 %v3691
        %3707 = vmatprep.subr.mxu0 0.0
        %3708 = vmatpush1.msra.mxu0 %v3692
        %3709 = vmatprep.subr.mxu0 0.0
        %3710 = vmatpush1.msra.mxu0 0.0
        %3711 = vmatprep.subr.mxu0 0.0
        %3712 = vmatpush1.msra.mxu0 0.0
        %3713 = vmatprep.subr.mxu0 0.0
        %3714 = vmatpush1.msra.mxu0 0.0
        %3715 = vmatprep.subr.mxu0 0.0
        %3716 = vmatpush1.msra.mxu0 0.0
        %3717 = vmatprep.subr.mxu0 0.0
        %3718 = vmatpush1.msra.mxu0 0.0
        %3719 = vmatprep.subr.mxu0 0.0
        %3720 = vmatpush1.msra.mxu0 0.0
        %3721 = vmatprep.subr.mxu0 0.0
        %3722 = vmatpush1.msra.mxu0 0.0
        %3723 = vmatprep.subr.mxu0 0.0
        %3724 = vmatpush1.msra.mxu0 0.0
        %3725 = vmatprep.subr.mxu0 0.0
        %3726 = vmatpush1.msra.mxu0 0.0
        %3727 = vmatprep.subr.mxu0 0.0
        %3728 = vmatpush1.msra.mxu0 0.0
        %3729 = vmatprep.subr.mxu0 0.0
        %3730 = vmatpush1.msra.mxu0 0.0
        %3731 = vmatprep.subr.mxu0 0.0
        %3732 = vmatpush1.msra.mxu0 0.0
        %3733 = vmatprep.subr.mxu0 0.0
        %3734 = vmatpush1.msra.mxu0 0.0
        %3735 = vmatprep.subr.mxu0 0.0
        %3736 = vmatpush1.msra.mxu0 0.0
        %3737 = vmatprep.subr.mxu0 0.0
        %3738 = vmatpush1.msra.mxu0 0.0
        %3739 = vmatprep.subr.mxu0 0.0
        %3740 = vmatpush1.msra.mxu0 0.0
        %3741 = vmatprep.subr.mxu0 0.0
        %3742 = vmatpush1.msra.mxu0 0.0
        %3743 = vmatprep.subr.mxu0 0.0
        %3744 = vmatpush1.msra.mxu0 0.0
        %3745 = vmatprep.subr.mxu0 0.0
        %3746 = vmatpush1.msra.mxu0 0.0
        %3747 = vmatprep.subr.mxu0 0.0
        %3748 = vmatpush1.msra.mxu0 0.0
        %3749 = vmatprep.subr.mxu0 0.0
        %3750 = vmatpush1.msra.mxu0 0.0
        %3751 = vmatprep.subr.mxu0 0.0
        %3752 = vmatpush1.msra.mxu0 0.0
        %3753 = vmatprep.subr.mxu0 0.0
        %3754 = vmatpush1.msra.mxu0 0.0
        %3755 = vmatprep.subr.mxu0 0.0
        %3756 = vmatpush1.msra.mxu0 0.0
        %3757 = vmatprep.subr.mxu0 0.0
        %3758 = vmatpush1.msra.mxu0 0.0
        %3759 = vmatprep.subr.mxu0 0.0
        %3760 = vmatpush1.msra.mxu0 0.0
        %3761 = vmatprep.subr.mxu0 0.0
        %3762 = vmatpush1.msra.mxu0 0.0
        %3763 = vmatprep.subr.mxu0 0.0
        %3764 = vmatpush1.msra.mxu0 0.0
        %3765 = vmatprep.mubr.f32.mxu0 0.0
        %3766 = vmatmul.mubr.f32.gmra.mrb[0].mxu0 %v2645
        %v3767 = vpop.f32.mrb[0].mxu0
        %v3768 = vadd.f32 %v3699, %v3767
        %v3769 = vpop.f32.mrb[0].mxu0
        %3770 = vdwg.mxu0
        %s3771 = scalar_lea.vmem [#allocation2], 640
        %v3772 = vld [vmem:[%s3771] sm:$0xff]
        %v3773 = vld [vmem:[%s3771 + $0x8] sm:$0xff]
        %v3774 = vld [vmem:[%s3771 + $0x10] sm:$0xff]
        %v3775 = vld [vmem:[%s3771 + $0x18] sm:$0xff]
        %s3776 = scalar_lea.vmem %s3, 20
        %v3777 = vld [vmem:[%s3776] sm:$0x1]
        %v3779 = vlaneseq
        %v3780 = vshrl.u32 %v3779, 7
        %v3781 = vsub.s32 0, %v3780
        %v3782 = vrot.slane %v3777, %v3781
        %3784 = vmatprep.subr.mxu0 0.0
        %3785 = vmatpush1.msra.mxu0 %v3772
        %3786 = vmatprep.subr.mxu0 0.0
        %3787 = vmatpush1.msra.mxu0 %v3773
        %3788 = vmatprep.subr.mxu0 0.0
        %3789 = vmatpush1.msra.mxu0 %v3774
        %3790 = vmatprep.subr.mxu0 0.0
        %3791 = vmatpush1.msra.mxu0 %v3775
        %3792 = vmatprep.subr.mxu0 0.0
        %3793 = vmatpush1.msra.mxu0 0.0
        %3794 = vmatprep.subr.mxu0 0.0
        %3795 = vmatpush1.msra.mxu0 0.0
        %3796 = vmatprep.subr.mxu0 0.0
        %3797 = vmatpush1.msra.mxu0 0.0
        %3798 = vmatprep.subr.mxu0 0.0
        %3799 = vmatpush1.msra.mxu0 0.0
        %3800 = vmatprep.subr.mxu0 0.0
        %3801 = vmatpush1.msra.mxu0 0.0
        %3802 = vmatprep.subr.mxu0 0.0
        %3803 = vmatpush1.msra.mxu0 0.0
        %3804 = vmatprep.subr.mxu0 0.0
        %3805 = vmatpush1.msra.mxu0 0.0
        %3806 = vmatprep.subr.mxu0 0.0
        %3807 = vmatpush1.msra.mxu0 0.0
        %3808 = vmatprep.subr.mxu0 0.0
        %3809 = vmatpush1.msra.mxu0 0.0
        %3810 = vmatprep.subr.mxu0 0.0
        %3811 = vmatpush1.msra.mxu0 0.0
        %3812 = vmatprep.subr.mxu0 0.0
        %3813 = vmatpush1.msra.mxu0 0.0
        %3814 = vmatprep.subr.mxu0 0.0
        %3815 = vmatpush1.msra.mxu0 0.0
        %3816 = vmatprep.subr.mxu0 0.0
        %3817 = vmatpush1.msra.mxu0 0.0
        %3818 = vmatprep.subr.mxu0 0.0
        %3819 = vmatpush1.msra.mxu0 0.0
        %3820 = vmatprep.subr.mxu0 0.0
        %3821 = vmatpush1.msra.mxu0 0.0
        %3822 = vmatprep.subr.mxu0 0.0
        %3823 = vmatpush1.msra.mxu0 0.0
        %3824 = vmatprep.subr.mxu0 0.0
        %3825 = vmatpush1.msra.mxu0 0.0
        %3826 = vmatprep.subr.mxu0 0.0
        %3827 = vmatpush1.msra.mxu0 0.0
        %3828 = vmatprep.subr.mxu0 0.0
        %3829 = vmatpush1.msra.mxu0 0.0
        %3830 = vmatprep.subr.mxu0 0.0
        %3831 = vmatpush1.msra.mxu0 0.0
        %3832 = vmatprep.subr.mxu0 0.0
        %3833 = vmatpush1.msra.mxu0 0.0
        %3834 = vmatprep.subr.mxu0 0.0
        %3835 = vmatpush1.msra.mxu0 0.0
        %3836 = vmatprep.subr.mxu0 0.0
        %3837 = vmatpush1.msra.mxu0 0.0
        %3838 = vmatprep.subr.mxu0 0.0
        %3839 = vmatpush1.msra.mxu0 0.0
        %3840 = vmatprep.subr.mxu0 0.0
        %3841 = vmatpush1.msra.mxu0 0.0
        %3842 = vmatprep.subr.mxu0 0.0
        %3843 = vmatpush1.msra.mxu0 0.0
        %3844 = vmatprep.subr.mxu0 0.0
        %3845 = vmatpush1.msra.mxu0 0.0
        %3846 = vmatprep.subr.mxu0 0.0
        %3847 = vmatpush1.msra.mxu0 0.0
        %3848 = vmatprep.mubr.f32.mxu0 0.0
        %3849 = vmatmul.mubr.f32.gmra.mrb[0].mxu0 %v2645
        %v3850 = vpop.f32.mrb[0].mxu0
        %v3851 = vadd.f32 %v3782, %v3850
        %v3852 = vpop.f32.mrb[0].mxu0
        %3853 = vdwg.mxu0
        %v3855 = vsel %vm694, %v3685, 0
        %v3858 = vsel %vm694, %v3768, 0
        %3860 = vmatprep.subr.mxu0 0.0
        %3861 = vmatpush1.xpose.msra.mxu0 %v3858
        %3862 = vmatprep.subr.mxu0 0.0
        %3863 = vmatpush1.xpose.msra.mxu0 0.0
        %3864 = vmatprep.subr.mxu0 0.0
        %3865 = vmatpush1.xpose.msra.mxu0 0.0
        %3866 = vmatprep.subr.mxu0 0.0
        %3867 = vmatpush1.xpose.msra.mxu0 0.0
        %3868 = vmatprep.subr.mxu0 0.0
        %3869 = vmatpush1.xpose.msra.mxu0 0.0
        %3870 = vmatprep.subr.mxu0 0.0
        %3871 = vmatpush1.xpose.msra.mxu0 0.0
        %3872 = vmatprep.subr.mxu0 0.0
        %3873 = vmatpush1.xpose.msra.mxu0 0.0
        %3874 = vmatprep.subr.mxu0 0.0
        %3875 = vmatpush1.xpose.msra.mxu0 0.0
        %3876 = vmatprep.subr.mxu0 0.0
        %3877 = vmatpush1.xpose.msra.mxu0 0.0
        %3878 = vmatprep.subr.mxu0 0.0
        %3879 = vmatpush1.xpose.msra.mxu0 0.0
        %3880 = vmatprep.subr.mxu0 0.0
        %3881 = vmatpush1.xpose.msra.mxu0 0.0
        %3882 = vmatprep.subr.mxu0 0.0
        %3883 = vmatpush1.xpose.msra.mxu0 0.0
        %3884 = vmatprep.subr.mxu0 0.0
        %3885 = vmatpush1.xpose.msra.mxu0 0.0
        %3886 = vmatprep.subr.mxu0 0.0
        %3887 = vmatpush1.xpose.msra.mxu0 0.0
        %3888 = vmatprep.subr.mxu0 0.0
        %3889 = vmatpush1.xpose.msra.mxu0 0.0
        %3890 = vmatprep.subr.mxu0 0.0
        %3891 = vmatpush1.xpose.msra.mxu0 0.0
        %3892 = vmatprep.subr.mxu0 0.0
        %3893 = vmatpush1.xpose.msra.mxu0 0.0
        %3894 = vmatprep.subr.mxu0 0.0
        %3895 = vmatpush1.xpose.msra.mxu0 0.0
        %3896 = vmatprep.subr.mxu0 0.0
        %3897 = vmatpush1.xpose.msra.mxu0 0.0
        %3898 = vmatprep.subr.mxu0 0.0
        %3899 = vmatpush1.xpose.msra.mxu0 0.0
        %3900 = vmatprep.subr.mxu0 0.0
        %3901 = vmatpush1.xpose.msra.mxu0 0.0
        %3902 = vmatprep.subr.mxu0 0.0
        %3903 = vmatpush1.xpose.msra.mxu0 0.0
        %3904 = vmatprep.subr.mxu0 0.0
        %3905 = vmatpush1.xpose.msra.mxu0 0.0
        %3906 = vmatprep.subr.mxu0 0.0
        %3907 = vmatpush1.xpose.msra.mxu0 0.0
        %3908 = vmatprep.subr.mxu0 0.0
        %3909 = vmatpush1.xpose.msra.mxu0 0.0
        %3910 = vmatprep.subr.mxu0 0.0
        %3911 = vmatpush1.xpose.msra.mxu0 0.0
        %3912 = vmatprep.subr.mxu0 0.0
        %3913 = vmatpush1.xpose.msra.mxu0 0.0
        %3914 = vmatprep.subr.mxu0 0.0
        %3915 = vmatpush1.xpose.msra.mxu0 0.0
        %3916 = vmatprep.subr.mxu0 0.0
        %3917 = vmatpush1.xpose.msra.mxu0 0.0
        %3918 = vmatprep.subr.mxu0 0.0
        %3919 = vmatpush1.xpose.msra.mxu0 0.0
        %3920 = vmatprep.subr.mxu0 0.0
        %3921 = vmatpush1.xpose.msra.mxu0 0.0
        %3922 = vmatprep.subr.mxu0 0.0
        %3923 = vmatpush1.xpose.msra.mxu0 0.0
        %3924 = vmatprep.mubr.f32.mxu0 0.0
        %3925 = vmatmul.mubr.f32.gmra.mrb[0].mxu0 %v3855
        %v3926 = vpop.f32.mrb[0].mxu0
        %v3927 = vadd.f32 0.0, %v3926
        %v3928 = vpop.f32.mrb[0].mxu0
        %3929 = vdwg.mxu0
        %v3930 = vmul.f32 %v3927, 0.35355338
        %v3931 = vadd.f32 %v3930, %v415
        %v3932 = vsel %vm694, %v3931, -inf
        %3933 = vmax.xlane.f32.xlu0 %v3932
        %v3934 = vpop.xlane.xlu0 %3933
        %v3935 = vsub.f32 %v3931, %v3934
        %v3936 = vmul.f32 %v3935, 1.442695
        %v3937 = vpow.pop %v3936
        %v3938 = vsel %vm694, %v3937, 0.0
        %3939 = vadd.xlane.f32.xlu0 %v3938
        %v3940 = vpop.xlane.xlu0 %3939
        %v3941 = vrcp.pop %v3940
        %v3942 = vmul.f32 %v3937, %v3941
        %v3944 = vsel %vm694, %v3942, 0
        %3946 = vmatprep.subr.mxu0 0.0
        %3947 = vmatpush1.msra.mxu0 %v3851
        %3948 = vmatprep.subr.mxu0 0.0
        %3949 = vmatpush1.msra.mxu0 0.0
        %3950 = vmatprep.subr.mxu0 0.0
        %3951 = vmatpush1.msra.mxu0 0.0
        %3952 = vmatprep.subr.mxu0 0.0
        %3953 = vmatpush1.msra.mxu0 0.0
        %3954 = vmatprep.subr.mxu0 0.0
        %3955 = vmatpush1.msra.mxu0 0.0
        %3956 = vmatprep.subr.mxu0 0.0
        %3957 = vmatpush1.msra.mxu0 0.0
        %3958 = vmatprep.subr.mxu0 0.0
        %3959 = vmatpush1.msra.mxu0 0.0
        %3960 = vmatprep.subr.mxu0 0.0
        %3961 = vmatpush1.msra.mxu0 0.0
        %3962 = vmatprep.subr.mxu0 0.0
        %3963 = vmatpush1.msra.mxu0 0.0
        %3964 = vmatprep.subr.mxu0 0.0
        %3965 = vmatpush1.msra.mxu0 0.0
        %3966 = vmatprep.subr.mxu0 0.0
        %3967 = vmatpush1.msra.mxu0 0.0
        %3968 = vmatprep.subr.mxu0 0.0
        %3969 = vmatpush1.msra.mxu0 0.0
        %3970 = vmatprep.subr.mxu0 0.0
        %3971 = vmatpush1.msra.mxu0 0.0
        %3972 = vmatprep.subr.mxu0 0.0
        %3973 = vmatpush1.msra.mxu0 0.0
        %3974 = vmatprep.subr.mxu0 0.0
        %3975 = vmatpush1.msra.mxu0 0.0
        %3976 = vmatprep.subr.mxu0 0.0
        %3977 = vmatpush1.msra.mxu0 0.0
        %3978 = vmatprep.subr.mxu0 0.0
        %3979 = vmatpush1.msra.mxu0 0.0
        %3980 = vmatprep.subr.mxu0 0.0
        %3981 = vmatpush1.msra.mxu0 0.0
        %3982 = vmatprep.subr.mxu0 0.0
        %3983 = vmatpush1.msra.mxu0 0.0
        %3984 = vmatprep.subr.mxu0 0.0
        %3985 = vmatpush1.msra.mxu0 0.0
        %3986 = vmatprep.subr.mxu0 0.0
        %3987 = vmatpush1.msra.mxu0 0.0
        %3988 = vmatprep.subr.mxu0 0.0
        %3989 = vmatpush1.msra.mxu0 0.0
        %3990 = vmatprep.subr.mxu0 0.0
        %3991 = vmatpush1.msra.mxu0 0.0
        %3992 = vmatprep.subr.mxu0 0.0
        %3993 = vmatpush1.msra.mxu0 0.0
        %3994 = vmatprep.subr.mxu0 0.0
        %3995 = vmatpush1.msra.mxu0 0.0
        %3996 = vmatprep.subr.mxu0 0.0
        %3997 = vmatpush1.msra.mxu0 0.0
        %3998 = vmatprep.subr.mxu0 0.0
        %3999 = vmatpush1.msra.mxu0 0.0
        %4000 = vmatprep.subr.mxu0 0.0
        %4001 = vmatpush1.msra.mxu0 0.0
        %4002 = vmatprep.subr.mxu0 0.0
        %4003 = vmatpush1.msra.mxu0 0.0
        %4004 = vmatprep.subr.mxu0 0.0
        %4005 = vmatpush1.msra.mxu0 0.0
        %4006 = vmatprep.subr.mxu0 0.0
        %4007 = vmatpush1.msra.mxu0 0.0
        %4008 = vmatprep.subr.mxu0 0.0
        %4009 = vmatpush1.msra.mxu0 0.0
        %4010 = vmatprep.mubr.f32.mxu0 0.0
        %4011 = vmatmul.mubr.f32.gmra.mrb[0].mxu0 %v3944
        %v4012 = vpop.f32.mrb[0].mxu0
        %v4013 = vadd.f32 0.0, %v4012
        %v4014 = vpop.f32.mrb[0].mxu0
        %4015 = vdwg.mxu0
        %v4016 = vld [vmem:[%s3045 + $0x10] sm:$0xff]
        %v4018 = vsel %vm694, %v4013, 0
        %4020 = vmatprep.subr.mxu0 0.0
        %4021 = vmatpush1.msra.mxu0 %v4016
        %4022 = vmatprep.subr.mxu0 0.0
        %4023 = vmatpush1.msra.mxu0 0.0
        %4024 = vmatprep.subr.mxu0 0.0
        %4025 = vmatpush1.msra.mxu0 0.0
        %4026 = vmatprep.subr.mxu0 0.0
        %4027 = vmatpush1.msra.mxu0 0.0
        %4028 = vmatprep.subr.mxu0 0.0
        %4029 = vmatpush1.msra.mxu0 0.0
        %4030 = vmatprep.subr.mxu0 0.0
        %4031 = vmatpush1.msra.mxu0 0.0
        %4032 = vmatprep.subr.mxu0 0.0
        %4033 = vmatpush1.msra.mxu0 0.0
        %4034 = vmatprep.subr.mxu0 0.0
        %4035 = vmatpush1.msra.mxu0 0.0
        %4036 = vmatprep.subr.mxu0 0.0
        %4037 = vmatpush1.msra.mxu0 0.0
        %4038 = vmatprep.subr.mxu0 0.0
        %4039 = vmatpush1.msra.mxu0 0.0
        %4040 = vmatprep.subr.mxu0 0.0
        %4041 = vmatpush1.msra.mxu0 0.0
        %4042 = vmatprep.subr.mxu0 0.0
        %4043 = vmatpush1.msra.mxu0 0.0
        %4044 = vmatprep.subr.mxu0 0.0
        %4045 = vmatpush1.msra.mxu0 0.0
        %4046 = vmatprep.subr.mxu0 0.0
        %4047 = vmatpush1.msra.mxu0 0.0
        %4048 = vmatprep.subr.mxu0 0.0
        %4049 = vmatpush1.msra.mxu0 0.0
        %4050 = vmatprep.subr.mxu0 0.0
        %4051 = vmatpush1.msra.mxu0 0.0
        %4052 = vmatprep.subr.mxu0 0.0
        %4053 = vmatpush1.msra.mxu0 0.0
        %4054 = vmatprep.subr.mxu0 0.0
        %4055 = vmatpush1.msra.mxu0 0.0
        %4056 = vmatprep.subr.mxu0 0.0
        %4057 = vmatpush1.msra.mxu0 0.0
        %4058 = vmatprep.subr.mxu0 0.0
        %4059 = vmatpush1.msra.mxu0 0.0
        %4060 = vmatprep.subr.mxu0 0.0
        %4061 = vmatpush1.msra.mxu0 0.0
        %4062 = vmatprep.subr.mxu0 0.0
        %4063 = vmatpush1.msra.mxu0 0.0
        %4064 = vmatprep.subr.mxu0 0.0
        %4065 = vmatpush1.msra.mxu0 0.0
        %4066 = vmatprep.subr.mxu0 0.0
        %4067 = vmatpush1.msra.mxu0 0.0
        %4068 = vmatprep.subr.mxu0 0.0
        %4069 = vmatpush1.msra.mxu0 0.0
        %4070 = vmatprep.subr.mxu0 0.0
        %4071 = vmatpush1.msra.mxu0 0.0
        %4072 = vmatprep.subr.mxu0 0.0
        %4073 = vmatpush1.msra.mxu0 0.0
        %4074 = vmatprep.subr.mxu0 0.0
        %4075 = vmatpush1.msra.mxu0 0.0
        %4076 = vmatprep.subr.mxu0 0.0
        %4077 = vmatpush1.msra.mxu0 0.0
        %4078 = vmatprep.subr.mxu0 0.0
        %4079 = vmatpush1.msra.mxu0 0.0
        %4080 = vmatprep.subr.mxu0 0.0
        %4081 = vmatpush1.msra.mxu0 0.0
        %4082 = vmatprep.subr.mxu0 0.0
        %4083 = vmatpush1.msra.mxu0 0.0
        %4084 = vmatprep.mubr.f32.mxu0 0.0
        %4085 = vmatmul.mubr.f32.gmra.mrb[0].mxu0 %v4018
        %v4086 = vpop.f32.mrb[0].mxu0
        %v4087 = vadd.f32 0.0, %v4086
        %v4088 = vpop.f32.mrb[0].mxu0
        %4089 = vdwg.mxu0
        %v4090 = vadd.f32 %v3602, %v4087
        %s4091 = scalar_lea.vmem [#allocation2], 672
        %v4092 = vld [vmem:[%s4091] sm:$0xff]
        %v4093 = vld [vmem:[%s4091 + $0x8] sm:$0xff]
        %v4094 = vld [vmem:[%s4091 + $0x10] sm:$0xff]
        %v4095 = vld [vmem:[%s4091 + $0x18] sm:$0xff]
        %s4096 = scalar_lea.vmem %s3, 21
        %v4097 = vld [vmem:[%s4096] sm:$0x1]
        %v4099 = vlaneseq
        %v4100 = vshrl.u32 %v4099, 7
        %v4101 = vsub.s32 0, %v4100
        %v4102 = vrot.slane %v4097, %v4101
        %4104 = vmatprep.subr.mxu0 0.0
        %4105 = vmatpush1.msra.mxu0 %v4092
        %4106 = vmatprep.subr.mxu0 0.0
        %4107 = vmatpush1.msra.mxu0 %v4093
        %4108 = vmatprep.subr.mxu0 0.0
        %4109 = vmatpush1.msra.mxu0 %v4094
        %4110 = vmatprep.subr.mxu0 0.0
        %4111 = vmatpush1.msra.mxu0 %v4095
        %4112 = vmatprep.subr.mxu0 0.0
        %4113 = vmatpush1.msra.mxu0 0.0
        %4114 = vmatprep.subr.mxu0 0.0
        %4115 = vmatpush1.msra.mxu0 0.0
        %4116 = vmatprep.subr.mxu0 0.0
        %4117 = vmatpush1.msra.mxu0 0.0
        %4118 = vmatprep.subr.mxu0 0.0
        %4119 = vmatpush1.msra.mxu0 0.0
        %4120 = vmatprep.subr.mxu0 0.0
        %4121 = vmatpush1.msra.mxu0 0.0
        %4122 = vmatprep.subr.mxu0 0.0
        %4123 = vmatpush1.msra.mxu0 0.0
        %4124 = vmatprep.subr.mxu0 0.0
        %4125 = vmatpush1.msra.mxu0 0.0
        %4126 = vmatprep.subr.mxu0 0.0
        %4127 = vmatpush1.msra.mxu0 0.0
        %4128 = vmatprep.subr.mxu0 0.0
        %4129 = vmatpush1.msra.mxu0 0.0
        %4130 = vmatprep.subr.mxu0 0.0
        %4131 = vmatpush1.msra.mxu0 0.0
        %4132 = vmatprep.subr.mxu0 0.0
        %4133 = vmatpush1.msra.mxu0 0.0
        %4134 = vmatprep.subr.mxu0 0.0
        %4135 = vmatpush1.msra.mxu0 0.0
        %4136 = vmatprep.subr.mxu0 0.0
        %4137 = vmatpush1.msra.mxu0 0.0
        %4138 = vmatprep.subr.mxu0 0.0
        %4139 = vmatpush1.msra.mxu0 0.0
        %4140 = vmatprep.subr.mxu0 0.0
        %4141 = vmatpush1.msra.mxu0 0.0
        %4142 = vmatprep.subr.mxu0 0.0
        %4143 = vmatpush1.msra.mxu0 0.0
        %4144 = vmatprep.subr.mxu0 0.0
        %4145 = vmatpush1.msra.mxu0 0.0
        %4146 = vmatprep.subr.mxu0 0.0
        %4147 = vmatpush1.msra.mxu0 0.0
        %4148 = vmatprep.subr.mxu0 0.0
        %4149 = vmatpush1.msra.mxu0 0.0
        %4150 = vmatprep.subr.mxu0 0.0
        %4151 = vmatpush1.msra.mxu0 0.0
        %4152 = vmatprep.subr.mxu0 0.0
        %4153 = vmatpush1.msra.mxu0 0.0
        %4154 = vmatprep.subr.mxu0 0.0
        %4155 = vmatpush1.msra.mxu0 0.0
        %4156 = vmatprep.subr.mxu0 0.0
        %4157 = vmatpush1.msra.mxu0 0.0
        %4158 = vmatprep.subr.mxu0 0.0
        %4159 = vmatpush1.msra.mxu0 0.0
        %4160 = vmatprep.subr.mxu0 0.0
        %4161 = vmatpush1.msra.mxu0 0.0
        %4162 = vmatprep.subr.mxu0 0.0
        %4163 = vmatpush1.msra.mxu0 0.0
        %4164 = vmatprep.subr.mxu0 0.0
        %4165 = vmatpush1.msra.mxu0 0.0
        %4166 = vmatprep.subr.mxu0 0.0
        %4167 = vmatpush1.msra.mxu0 0.0
        %4168 = vmatprep.mubr.f32.mxu0 0.0
        %4169 = vmatmul.mubr.f32.gmra.mrb[0].mxu0 %v2645
        %v4170 = vpop.f32.mrb[0].mxu0
        %v4171 = vadd.f32 %v4102, %v4170
        %v4172 = vpop.f32.mrb[0].mxu0
        %4173 = vdwg.mxu0
        %s4174 = scalar_lea.vmem [#allocation2], 704
        %v4175 = vld [vmem:[%s4174] sm:$0xff]
        %v4176 = vld [vmem:[%s4174 + $0x8] sm:$0xff]
        %v4177 = vld [vmem:[%s4174 + $0x10] sm:$0xff]
        %v4178 = vld [vmem:[%s4174 + $0x18] sm:$0xff]
        %s4179 = scalar_lea.vmem %s3, 22
        %v4180 = vld [vmem:[%s4179] sm:$0x1]
        %v4182 = vlaneseq
        %v4183 = vshrl.u32 %v4182, 7
        %v4184 = vsub.s32 0, %v4183
        %v4185 = vrot.slane %v4180, %v4184
        %4187 = vmatprep.subr.mxu0 0.0
        %4188 = vmatpush1.msra.mxu0 %v4175
        %4189 = vmatprep.subr.mxu0 0.0
        %4190 = vmatpush1.msra.mxu0 %v4176
        %4191 = vmatprep.subr.mxu0 0.0
        %4192 = vmatpush1.msra.mxu0 %v4177
        %4193 = vmatprep.subr.mxu0 0.0
        %4194 = vmatpush1.msra.mxu0 %v4178
        %4195 = vmatprep.subr.mxu0 0.0
        %4196 = vmatpush1.msra.mxu0 0.0
        %4197 = vmatprep.subr.mxu0 0.0
        %4198 = vmatpush1.msra.mxu0 0.0
        %4199 = vmatprep.subr.mxu0 0.0
        %4200 = vmatpush1.msra.mxu0 0.0
        %4201 = vmatprep.subr.mxu0 0.0
        %4202 = vmatpush1.msra.mxu0 0.0
        %4203 = vmatprep.subr.mxu0 0.0
        %4204 = vmatpush1.msra.mxu0 0.0
        %4205 = vmatprep.subr.mxu0 0.0
        %4206 = vmatpush1.msra.mxu0 0.0
        %4207 = vmatprep.subr.mxu0 0.0
        %4208 = vmatpush1.msra.mxu0 0.0
        %4209 = vmatprep.subr.mxu0 0.0
        %4210 = vmatpush1.msra.mxu0 0.0
        %4211 = vmatprep.subr.mxu0 0.0
        %4212 = vmatpush1.msra.mxu0 0.0
        %4213 = vmatprep.subr.mxu0 0.0
        %4214 = vmatpush1.msra.mxu0 0.0
        %4215 = vmatprep.subr.mxu0 0.0
        %4216 = vmatpush1.msra.mxu0 0.0
        %4217 = vmatprep.subr.mxu0 0.0
        %4218 = vmatpush1.msra.mxu0 0.0
        %4219 = vmatprep.subr.mxu0 0.0
        %4220 = vmatpush1.msra.mxu0 0.0
        %4221 = vmatprep.subr.mxu0 0.0
        %4222 = vmatpush1.msra.mxu0 0.0
        %4223 = vmatprep.subr.mxu0 0.0
        %4224 = vmatpush1.msra.mxu0 0.0
        %4225 = vmatprep.subr.mxu0 0.0
        %4226 = vmatpush1.msra.mxu0 0.0
        %4227 = vmatprep.subr.mxu0 0.0
        %4228 = vmatpush1.msra.mxu0 0.0
        %4229 = vmatprep.subr.mxu0 0.0
        %4230 = vmatpush1.msra.mxu0 0.0
        %4231 = vmatprep.subr.mxu0 0.0
        %4232 = vmatpush1.msra.mxu0 0.0
        %4233 = vmatprep.subr.mxu0 0.0
        %4234 = vmatpush1.msra.mxu0 0.0
        %4235 = vmatprep.subr.mxu0 0.0
        %4236 = vmatpush1.msra.mxu0 0.0
        %4237 = vmatprep.subr.mxu0 0.0
        %4238 = vmatpush1.msra.mxu0 0.0
        %4239 = vmatprep.subr.mxu0 0.0
        %4240 = vmatpush1.msra.mxu0 0.0
        %4241 = vmatprep.subr.mxu0 0.0
        %4242 = vmatpush1.msra.mxu0 0.0
        %4243 = vmatprep.subr.mxu0 0.0
        %4244 = vmatpush1.msra.mxu0 0.0
        %4245 = vmatprep.subr.mxu0 0.0
        %4246 = vmatpush1.msra.mxu0 0.0
        %4247 = vmatprep.subr.mxu0 0.0
        %4248 = vmatpush1.msra.mxu0 0.0
        %4249 = vmatprep.subr.mxu0 0.0
        %4250 = vmatpush1.msra.mxu0 0.0
        %4251 = vmatprep.mubr.f32.mxu0 0.0
        %4252 = vmatmul.mubr.f32.gmra.mrb[0].mxu0 %v2645
        %v4253 = vpop.f32.mrb[0].mxu0
        %v4254 = vadd.f32 %v4185, %v4253
        %v4255 = vpop.f32.mrb[0].mxu0
        %4256 = vdwg.mxu0
        %s4257 = scalar_lea.vmem [#allocation2], 736
        %v4258 = vld [vmem:[%s4257] sm:$0xff]
        %v4259 = vld [vmem:[%s4257 + $0x8] sm:$0xff]
        %v4260 = vld [vmem:[%s4257 + $0x10] sm:$0xff]
        %v4261 = vld [vmem:[%s4257 + $0x18] sm:$0xff]
        %s4262 = scalar_lea.vmem %s3, 23
        %v4263 = vld [vmem:[%s4262] sm:$0x1]
        %v4265 = vlaneseq
        %v4266 = vshrl.u32 %v4265, 7
        %v4267 = vsub.s32 0, %v4266
        %v4268 = vrot.slane %v4263, %v4267
        %4270 = vmatprep.subr.mxu0 0.0
        %4271 = vmatpush1.msra.mxu0 %v4258
        %4272 = vmatprep.subr.mxu0 0.0
        %4273 = vmatpush1.msra.mxu0 %v4259
        %4274 = vmatprep.subr.mxu0 0.0
        %4275 = vmatpush1.msra.mxu0 %v4260
        %4276 = vmatprep.subr.mxu0 0.0
        %4277 = vmatpush1.msra.mxu0 %v4261
        %4278 = vmatprep.subr.mxu0 0.0
        %4279 = vmatpush1.msra.mxu0 0.0
        %4280 = vmatprep.subr.mxu0 0.0
        %4281 = vmatpush1.msra.mxu0 0.0
        %4282 = vmatprep.subr.mxu0 0.0
        %4283 = vmatpush1.msra.mxu0 0.0
        %4284 = vmatprep.subr.mxu0 0.0
        %4285 = vmatpush1.msra.mxu0 0.0
        %4286 = vmatprep.subr.mxu0 0.0
        %4287 = vmatpush1.msra.mxu0 0.0
        %4288 = vmatprep.subr.mxu0 0.0
        %4289 = vmatpush1.msra.mxu0 0.0
        %4290 = vmatprep.subr.mxu0 0.0
        %4291 = vmatpush1.msra.mxu0 0.0
        %4292 = vmatprep.subr.mxu0 0.0
        %4293 = vmatpush1.msra.mxu0 0.0
        %4294 = vmatprep.subr.mxu0 0.0
        %4295 = vmatpush1.msra.mxu0 0.0
        %4296 = vmatprep.subr.mxu0 0.0
        %4297 = vmatpush1.msra.mxu0 0.0
        %4298 = vmatprep.subr.mxu0 0.0
        %4299 = vmatpush1.msra.mxu0 0.0
        %4300 = vmatprep.subr.mxu0 0.0
        %4301 = vmatpush1.msra.mxu0 0.0
        %4302 = vmatprep.subr.mxu0 0.0
        %4303 = vmatpush1.msra.mxu0 0.0
        %4304 = vmatprep.subr.mxu0 0.0
        %4305 = vmatpush1.msra.mxu0 0.0
        %4306 = vmatprep.subr.mxu0 0.0
        %4307 = vmatpush1.msra.mxu0 0.0
        %4308 = vmatprep.subr.mxu0 0.0
        %4309 = vmatpush1.msra.mxu0 0.0
        %4310 = vmatprep.subr.mxu0 0.0
        %4311 = vmatpush1.msra.mxu0 0.0
        %4312 = vmatprep.subr.mxu0 0.0
        %4313 = vmatpush1.msra.mxu0 0.0
        %4314 = vmatprep.subr.mxu0 0.0
        %4315 = vmatpush1.msra.mxu0 0.0
        %4316 = vmatprep.subr.mxu0 0.0
        %4317 = vmatpush1.msra.mxu0 0.0
        %4318 = vmatprep.subr.mxu0 0.0
        %4319 = vmatpush1.msra.mxu0 0.0
        %4320 = vmatprep.subr.mxu0 0.0
        %4321 = vmatpush1.msra.mxu0 0.0
        %4322 = vmatprep.subr.mxu0 0.0
        %4323 = vmatpush1.msra.mxu0 0.0
        %4324 = vmatprep.subr.mxu0 0.0
        %4325 = vmatpush1.msra.mxu0 0.0
        %4326 = vmatprep.subr.mxu0 0.0
        %4327 = vmatpush1.msra.mxu0 0.0
        %4328 = vmatprep.subr.mxu0 0.0
        %4329 = vmatpush1.msra.mxu0 0.0
        %4330 = vmatprep.subr.mxu0 0.0
        %4331 = vmatpush1.msra.mxu0 0.0
        %4332 = vmatprep.subr.mxu0 0.0
        %4333 = vmatpush1.msra.mxu0 0.0
        %4334 = vmatprep.mubr.f32.mxu0 0.0
        %4335 = vmatmul.mubr.f32.gmra.mrb[0].mxu0 %v2645
        %v4336 = vpop.f32.mrb[0].mxu0
        %v4337 = vadd.f32 %v4268, %v4336
        %v4338 = vpop.f32.mrb[0].mxu0
        %4339 = vdwg.mxu0
        %v4341 = vsel %vm694, %v4171, 0
        %v4344 = vsel %vm694, %v4254, 0
        %4346 = vmatprep.subr.mxu0 0.0
        %4347 = vmatpush1.xpose.msra.mxu0 %v4344
        %4348 = vmatprep.subr.mxu0 0.0
        %4349 = vmatpush1.xpose.msra.mxu0 0.0
        %4350 = vmatprep.subr.mxu0 0.0
        %4351 = vmatpush1.xpose.msra.mxu0 0.0
        %4352 = vmatprep.subr.mxu0 0.0
        %4353 = vmatpush1.xpose.msra.mxu0 0.0
        %4354 = vmatprep.subr.mxu0 0.0
        %4355 = vmatpush1.xpose.msra.mxu0 0.0
        %4356 = vmatprep.subr.mxu0 0.0
        %4357 = vmatpush1.xpose.msra.mxu0 0.0
        %4358 = vmatprep.subr.mxu0 0.0
        %4359 = vmatpush1.xpose.msra.mxu0 0.0
        %4360 = vmatprep.subr.mxu0 0.0
        %4361 = vmatpush1.xpose.msra.mxu0 0.0
        %4362 = vmatprep.subr.mxu0 0.0
        %4363 = vmatpush1.xpose.msra.mxu0 0.0
        %4364 = vmatprep.subr.mxu0 0.0
        %4365 = vmatpush1.xpose.msra.mxu0 0.0
        %4366 = vmatprep.subr.mxu0 0.0
        %4367 = vmatpush1.xpose.msra.mxu0 0.0
        %4368 = vmatprep.subr.mxu0 0.0
        %4369 = vmatpush1.xpose.msra.mxu0 0.0
        %4370 = vmatprep.subr.mxu0 0.0
        %4371 = vmatpush1.xpose.msra.mxu0 0.0
        %4372 = vmatprep.subr.mxu0 0.0
        %4373 = vmatpush1.xpose.msra.mxu0 0.0
        %4374 = vmatprep.subr.mxu0 0.0
        %4375 = vmatpush1.xpose.msra.mxu0 0.0
        %4376 = vmatprep.subr.mxu0 0.0
        %4377 = vmatpush1.xpose.msra.mxu0 0.0
        %4378 = vmatprep.subr.mxu0 0.0
        %4379 = vmatpush1.xpose.msra.mxu0 0.0
        %4380 = vmatprep.subr.mxu0 0.0
        %4381 = vmatpush1.xpose.msra.mxu0 0.0
        %4382 = vmatprep.subr.mxu0 0.0
        %4383 = vmatpush1.xpose.msra.mxu0 0.0
        %4384 = vmatprep.subr.mxu0 0.0
        %4385 = vmatpush1.xpose.msra.mxu0 0.0
        %4386 = vmatprep.subr.mxu0 0.0
        %4387 = vmatpush1.xpose.msra.mxu0 0.0
        %4388 = vmatprep.subr.mxu0 0.0
        %4389 = vmatpush1.xpose.msra.mxu0 0.0
        %4390 = vmatprep.subr.mxu0 0.0
        %4391 = vmatpush1.xpose.msra.mxu0 0.0
        %4392 = vmatprep.subr.mxu0 0.0
        %4393 = vmatpush1.xpose.msra.mxu0 0.0
        %4394 = vmatprep.subr.mxu0 0.0
        %4395 = vmatpush1.xpose.msra.mxu0 0.0
        %4396 = vmatprep.subr.mxu0 0.0
        %4397 = vmatpush1.xpose.msra.mxu0 0.0
        %4398 = vmatprep.subr.mxu0 0.0
        %4399 = vmatpush1.xpose.msra.mxu0 0.0
        %4400 = vmatprep.subr.mxu0 0.0
        %4401 = vmatpush1.xpose.msra.mxu0 0.0
        %4402 = vmatprep.subr.mxu0 0.0
        %4403 = vmatpush1.xpose.msra.mxu0 0.0
        %4404 = vmatprep.subr.mxu0 0.0
        %4405 = vmatpush1.xpose.msra.mxu0 0.0
        %4406 = vmatprep.subr.mxu0 0.0
        %4407 = vmatpush1.xpose.msra.mxu0 0.0
        %4408 = vmatprep.subr.mxu0 0.0
        %4409 = vmatpush1.xpose.msra.mxu0 0.0
        %4410 = vmatprep.mubr.f32.mxu0 0.0
        %4411 = vmatmul.mubr.f32.gmra.mrb[0].mxu0 %v4341
        %v4412 = vpop.f32.mrb[0].mxu0
        %v4413 = vadd.f32 0.0, %v4412
        %v4414 = vpop.f32.mrb[0].mxu0
        %4415 = vdwg.mxu0
        %v4416 = vmul.f32 %v4413, 0.35355338
        %v4417 = vadd.f32 %v4416, %v415
        %v4418 = vsel %vm694, %v4417, -inf
        %4419 = vmax.xlane.f32.xlu0 %v4418
        %v4420 = vpop.xlane.xlu0 %4419
        %v4421 = vsub.f32 %v4417, %v4420
        %v4422 = vmul.f32 %v4421, 1.442695
        %v4423 = vpow.pop %v4422
        %v4424 = vsel %vm694, %v4423, 0.0
        %4425 = vadd.xlane.f32.xlu0 %v4424
        %v4426 = vpop.xlane.xlu0 %4425
        %v4427 = vrcp.pop %v4426
        %v4428 = vmul.f32 %v4423, %v4427
        %v4430 = vsel %vm694, %v4428, 0
        %4432 = vmatprep.subr.mxu0 0.0
        %4433 = vmatpush1.msra.mxu0 %v4337
        %4434 = vmatprep.subr.mxu0 0.0
        %4435 = vmatpush1.msra.mxu0 0.0
        %4436 = vmatprep.subr.mxu0 0.0
        %4437 = vmatpush1.msra.mxu0 0.0
        %4438 = vmatprep.subr.mxu0 0.0
        %4439 = vmatpush1.msra.mxu0 0.0
        %4440 = vmatprep.subr.mxu0 0.0
        %4441 = vmatpush1.msra.mxu0 0.0
        %4442 = vmatprep.subr.mxu0 0.0
        %4443 = vmatpush1.msra.mxu0 0.0
        %4444 = vmatprep.subr.mxu0 0.0
        %4445 = vmatpush1.msra.mxu0 0.0
        %4446 = vmatprep.subr.mxu0 0.0
        %4447 = vmatpush1.msra.mxu0 0.0
        %4448 = vmatprep.subr.mxu0 0.0
        %4449 = vmatpush1.msra.mxu0 0.0
        %4450 = vmatprep.subr.mxu0 0.0
        %4451 = vmatpush1.msra.mxu0 0.0
        %4452 = vmatprep.subr.mxu0 0.0
        %4453 = vmatpush1.msra.mxu0 0.0
        %4454 = vmatprep.subr.mxu0 0.0
        %4455 = vmatpush1.msra.mxu0 0.0
        %4456 = vmatprep.subr.mxu0 0.0
        %4457 = vmatpush1.msra.mxu0 0.0
        %4458 = vmatprep.subr.mxu0 0.0
        %4459 = vmatpush1.msra.mxu0 0.0
        %4460 = vmatprep.subr.mxu0 0.0
        %4461 = vmatpush1.msra.mxu0 0.0
        %4462 = vmatprep.subr.mxu0 0.0
        %4463 = vmatpush1.msra.mxu0 0.0
        %4464 = vmatprep.subr.mxu0 0.0
        %4465 = vmatpush1.msra.mxu0 0.0
        %4466 = vmatprep.subr.mxu0 0.0
        %4467 = vmatpush1.msra.mxu0 0.0
        %4468 = vmatprep.subr.mxu0 0.0
        %4469 = vmatpush1.msra.mxu0 0.0
        %4470 = vmatprep.subr.mxu0 0.0
        %4471 = vmatpush1.msra.mxu0 0.0
        %4472 = vmatprep.subr.mxu0 0.0
        %4473 = vmatpush1.msra.mxu0 0.0
        %4474 = vmatprep.subr.mxu0 0.0
        %4475 = vmatpush1.msra.mxu0 0.0
        %4476 = vmatprep.subr.mxu0 0.0
        %4477 = vmatpush1.msra.mxu0 0.0
        %4478 = vmatprep.subr.mxu0 0.0
        %4479 = vmatpush1.msra.mxu0 0.0
        %4480 = vmatprep.subr.mxu0 0.0
        %4481 = vmatpush1.msra.mxu0 0.0
        %4482 = vmatprep.subr.mxu0 0.0
        %4483 = vmatpush1.msra.mxu0 0.0
        %4484 = vmatprep.subr.mxu0 0.0
        %4485 = vmatpush1.msra.mxu0 0.0
        %4486 = vmatprep.subr.mxu0 0.0
        %4487 = vmatpush1.msra.mxu0 0.0
        %4488 = vmatprep.subr.mxu0 0.0
        %4489 = vmatpush1.msra.mxu0 0.0
        %4490 = vmatprep.subr.mxu0 0.0
        %4491 = vmatpush1.msra.mxu0 0.0
        %4492 = vmatprep.subr.mxu0 0.0
        %4493 = vmatpush1.msra.mxu0 0.0
        %4494 = vmatprep.subr.mxu0 0.0
        %4495 = vmatpush1.msra.mxu0 0.0
        %4496 = vmatprep.mubr.f32.mxu0 0.0
        %4497 = vmatmul.mubr.f32.gmra.mrb[0].mxu0 %v4430
        %v4498 = vpop.f32.mrb[0].mxu0
        %v4499 = vadd.f32 0.0, %v4498
        %v4500 = vpop.f32.mrb[0].mxu0
        %4501 = vdwg.mxu0
        %v4502 = vld [vmem:[%s3045 + $0x18] sm:$0xff]
        %v4504 = vsel %vm694, %v4499, 0
        %4506 = vmatprep.subr.mxu0 0.0
        %4507 = vmatpush1.msra.mxu0 %v4502
        %4508 = vmatprep.subr.mxu0 0.0
        %4509 = vmatpush1.msra.mxu0 0.0
        %4510 = vmatprep.subr.mxu0 0.0
        %4511 = vmatpush1.msra.mxu0 0.0
        %4512 = vmatprep.subr.mxu0 0.0
        %4513 = vmatpush1.msra.mxu0 0.0
        %4514 = vmatprep.subr.mxu0 0.0
        %4515 = vmatpush1.msra.mxu0 0.0
        %4516 = vmatprep.subr.mxu0 0.0
        %4517 = vmatpush1.msra.mxu0 0.0
        %4518 = vmatprep.subr.mxu0 0.0
        %4519 = vmatpush1.msra.mxu0 0.0
        %4520 = vmatprep.subr.mxu0 0.0
        %4521 = vmatpush1.msra.mxu0 0.0
        %4522 = vmatprep.subr.mxu0 0.0
        %4523 = vmatpush1.msra.mxu0 0.0
        %4524 = vmatprep.subr.mxu0 0.0
        %4525 = vmatpush1.msra.mxu0 0.0
        %4526 = vmatprep.subr.mxu0 0.0
        %4527 = vmatpush1.msra.mxu0 0.0
        %4528 = vmatprep.subr.mxu0 0.0
        %4529 = vmatpush1.msra.mxu0 0.0
        %4530 = vmatprep.subr.mxu0 0.0
        %4531 = vmatpush1.msra.mxu0 0.0
        %4532 = vmatprep.subr.mxu0 0.0
        %4533 = vmatpush1.msra.mxu0 0.0
        %4534 = vmatprep.subr.mxu0 0.0
        %4535 = vmatpush1.msra.mxu0 0.0
        %4536 = vmatprep.subr.mxu0 0.0
        %4537 = vmatpush1.msra.mxu0 0.0
        %4538 = vmatprep.subr.mxu0 0.0
        %4539 = vmatpush1.msra.mxu0 0.0
        %4540 = vmatprep.subr.mxu0 0.0
        %4541 = vmatpush1.msra.mxu0 0.0
        %4542 = vmatprep.subr.mxu0 0.0
        %4543 = vmatpush1.msra.mxu0 0.0
        %4544 = vmatprep.subr.mxu0 0.0
        %4545 = vmatpush1.msra.mxu0 0.0
        %4546 = vmatprep.subr.mxu0 0.0
        %4547 = vmatpush1.msra.mxu0 0.0
        %4548 = vmatprep.subr.mxu0 0.0
        %4549 = vmatpush1.msra.mxu0 0.0
        %4550 = vmatprep.subr.mxu0 0.0
        %4551 = vmatpush1.msra.mxu0 0.0
        %4552 = vmatprep.subr.mxu0 0.0
        %4553 = vmatpush1.msra.mxu0 0.0
        %4554 = vmatprep.subr.mxu0 0.0
        %4555 = vmatpush1.msra.mxu0 0.0
        %4556 = vmatprep.subr.mxu0 0.0
        %4557 = vmatpush1.msra.mxu0 0.0
        %4558 = vmatprep.subr.mxu0 0.0
        %4559 = vmatpush1.msra.mxu0 0.0
        %4560 = vmatprep.subr.mxu0 0.0
        %4561 = vmatpush1.msra.mxu0 0.0
        %4562 = vmatprep.subr.mxu0 0.0
        %4563 = vmatpush1.msra.mxu0 0.0
        %4564 = vmatprep.subr.mxu0 0.0
        %4565 = vmatpush1.msra.mxu0 0.0
        %4566 = vmatprep.subr.mxu0 0.0
        %4567 = vmatpush1.msra.mxu0 0.0
        %4568 = vmatprep.subr.mxu0 0.0
        %4569 = vmatpush1.msra.mxu0 0.0
        %4570 = vmatprep.mubr.f32.mxu0 0.0
        %4571 = vmatmul.mubr.f32.gmra.mrb[0].mxu0 %v4504
        %v4572 = vpop.f32.mrb[0].mxu0
        %v4573 = vadd.f32 0.0, %v4572
        %v4574 = vpop.f32.mrb[0].mxu0
        %4575 = vdwg.mxu0
        %v4576 = vadd.f32 %v4090, %v4573
        %v4577 = vadd.f32 %v2603, %v4576
        %v4578 = vlaneseq
        %v4579 = vshrl.u32 %v4578, 7
        %v4580 = vsub.s32 4, %v4579
        %v4581 = vrot.slane %v2605, %v4580
        %v4582 = vadd.f32 %v4577, %v4581
        %v4583 = vsel %vm417, %v4582, 0.0
        %4584 = vadd.xlane.f32.xlu0 %v4583
        %v4585 = vpop.xlane.xlu0 %4584
        %v4586 = vmul.f32 %v4585, %v421
        %v4587 = vmul.f32 %v4582, %v4582
        %v4588 = vsel %vm417, %v4587, 0.0
        %4589 = vadd.xlane.f32.xlu0 %v4588
        %v4590 = vpop.xlane.xlu0 %4589
        %v4591 = vmul.f32 %v4590, %v421
        %v4592 = vmul.f32 %v4586, %v4586
        %v4593 = vsub.f32 %v4591, %v4592
        %v4594 = vsub.f32 %v4582, %v4586
        %v4595 = vadd.f32 %v4593, 1e-05
        %v4596 = vrsqrt.pop %v4595
        %v4597 = vmul.f32 %v4594, %v4596
        %v4598 = vlaneseq
        %v4599 = vshrl.u32 %v4598, 7
        %v4600 = vsub.s32 2, %v4599
        %v4601 = vrot.slane %v2605, %v4600
        %v4602 = vmul.f32 %v4597, %v4601
        %v4603 = vlaneseq
        %v4604 = vshrl.u32 %v4603, 7
        %v4605 = vsub.s32 3, %v4604
        %v4606 = vrot.slane %v2605, %v4605
        %v4607 = vadd.f32 %v4602, %v4606
        %s4608 = scalar_lea.vmem [#allocation6], 32
        %v4609 = vld [vmem:[%s4608] sm:$0xff]
        %v4610 = vld [vmem:[%s4608 + $0x8] sm:$0xff]
        %v4611 = vld [vmem:[%s4608 + $0x10] sm:$0xff]
        %v4612 = vld [vmem:[%s4608 + $0x18] sm:$0xff]
        %s4613 = scalar_lea.vmem %s6, 1
        %v4614 = vld [vmem:[%s4613] sm:$0x1]
        %v4616 = vlaneseq
        %v4617 = vshrl.u32 %v4616, 7
        %v4618 = vsub.s32 0, %v4617
        %v4619 = vrot.slane %v4614, %v4618
        %v4622 = vsel %vm417, %v4607, 0
        %4624 = vmatprep.subr.mxu0 0.0
        %4625 = vmatpush1.msra.mxu0 %v4609
        %4626 = vmatprep.subr.mxu0 0.0
        %4627 = vmatpush1.msra.mxu0 %v4610
        %4628 = vmatprep.subr.mxu0 0.0
        %4629 = vmatpush1.msra.mxu0 %v4611
        %4630 = vmatprep.subr.mxu0 0.0
        %4631 = vmatpush1.msra.mxu0 %v4612
        %4632 = vmatprep.subr.mxu0 0.0
        %4633 = vmatpush1.msra.mxu0 0.0
        %4634 = vmatprep.subr.mxu0 0.0
        %4635 = vmatpush1.msra.mxu0 0.0
        %4636 = vmatprep.subr.mxu0 0.0
        %4637 = vmatpush1.msra.mxu0 0.0
        %4638 = vmatprep.subr.mxu0 0.0
        %4639 = vmatpush1.msra.mxu0 0.0
        %4640 = vmatprep.subr.mxu0 0.0
        %4641 = vmatpush1.msra.mxu0 0.0
        %4642 = vmatprep.subr.mxu0 0.0
        %4643 = vmatpush1.msra.mxu0 0.0
        %4644 = vmatprep.subr.mxu0 0.0
        %4645 = vmatpush1.msra.mxu0 0.0
        %4646 = vmatprep.subr.mxu0 0.0
        %4647 = vmatpush1.msra.mxu0 0.0
        %4648 = vmatprep.subr.mxu0 0.0
        %4649 = vmatpush1.msra.mxu0 0.0
        %4650 = vmatprep.subr.mxu0 0.0
        %4651 = vmatpush1.msra.mxu0 0.0
        %4652 = vmatprep.subr.mxu0 0.0
        %4653 = vmatpush1.msra.mxu0 0.0
        %4654 = vmatprep.subr.mxu0 0.0
        %4655 = vmatpush1.msra.mxu0 0.0
        %4656 = vmatprep.subr.mxu0 0.0
        %4657 = vmatpush1.msra.mxu0 0.0
        %4658 = vmatprep.subr.mxu0 0.0
        %4659 = vmatpush1.msra.mxu0 0.0
        %4660 = vmatprep.subr.mxu0 0.0
        %4661 = vmatpush1.msra.mxu0 0.0
        %4662 = vmatprep.subr.mxu0 0.0
        %4663 = vmatpush1.msra.mxu0 0.0
        %4664 = vmatprep.subr.mxu0 0.0
        %4665 = vmatpush1.msra.mxu0 0.0
        %4666 = vmatprep.subr.mxu0 0.0
        %4667 = vmatpush1.msra.mxu0 0.0
        %4668 = vmatprep.subr.mxu0 0.0
        %4669 = vmatpush1.msra.mxu0 0.0
        %4670 = vmatprep.subr.mxu0 0.0
        %4671 = vmatpush1.msra.mxu0 0.0
        %4672 = vmatprep.subr.mxu0 0.0
        %4673 = vmatpush1.msra.mxu0 0.0
        %4674 = vmatprep.subr.mxu0 0.0
        %4675 = vmatpush1.msra.mxu0 0.0
        %4676 = vmatprep.subr.mxu0 0.0
        %4677 = vmatpush1.msra.mxu0 0.0
        %4678 = vmatprep.subr.mxu0 0.0
        %4679 = vmatpush1.msra.mxu0 0.0
        %4680 = vmatprep.subr.mxu0 0.0
        %4681 = vmatpush1.msra.mxu0 0.0
        %4682 = vmatprep.subr.mxu0 0.0
        %4683 = vmatpush1.msra.mxu0 0.0
        %4684 = vmatprep.subr.mxu0 0.0
        %4685 = vmatpush1.msra.mxu0 0.0
        %4686 = vmatprep.subr.mxu0 0.0
        %4687 = vmatpush1.msra.mxu0 0.0
        %4688 = vmatprep.mubr.f32.mxu0 0.0
        %4689 = vmatmul.mubr.f32.gmra.mrb[0].mxu0 %v4622
        %v4690 = vpop.f32.mrb[0].mxu0
        %v4691 = vadd.f32 %v4619, %v4690
        %v4692 = vpop.f32.mrb[0].mxu0
        %4693 = vdwg.mxu0
        %v4694 = vmul.f32 %v4691, 0.5
        %v4695 = vmul.f32 %v4691, 0.044715
        %v4696 = vmul.f32 %v4695, %v4691
        %v4697 = vmul.f32 %v4696, %v4691
        %v4698 = vadd.f32 %v4691, %v4697
        %v4699 = vmul.f32 %v4698, 0.7978846
        %v4700 = vtanh.pop %v4699
        %v4701 = vadd.f32 %v4700, 1.0
        %v4702 = vmul.f32 %v4694, %v4701
        %s4703 = scalar_lea.vmem %s7, 128
        %v4704 = vld [vmem:[%s4703] sm:$0xff]
        %v4705 = vld [vmem:[%s4703 + $0x8] sm:$0xff]
        %v4706 = vld [vmem:[%s4703 + $0x10] sm:$0xff]
        %v4707 = vld [vmem:[%s4703 + $0x18] sm:$0xff]
        %v4708 = vld [vmem:[%s4703 + $0x20] sm:$0xff]
        %v4709 = vld [vmem:[%s4703 + $0x28] sm:$0xff]
        %v4710 = vld [vmem:[%s4703 + $0x30] sm:$0xff]
        %v4711 = vld [vmem:[%s4703 + $0x38] sm:$0xff]
        %v4712 = vld [vmem:[%s4703 + $0x40] sm:$0xff]
        %v4713 = vld [vmem:[%s4703 + $0x48] sm:$0xff]
        %v4714 = vld [vmem:[%s4703 + $0x50] sm:$0xff]
        %v4715 = vld [vmem:[%s4703 + $0x58] sm:$0xff]
        %v4716 = vld [vmem:[%s4703 + $0x60] sm:$0xff]
        %v4717 = vld [vmem:[%s4703 + $0x68] sm:$0xff]
        %v4718 = vld [vmem:[%s4703 + $0x70] sm:$0xff]
        %v4719 = vld [vmem:[%s4703 + $0x78] sm:$0xff]
        %4720 = vmatprep.subr.mxu0 0.0
        %4721 = vmatpush1.msra.mxu0 %v4704
        %4722 = vmatprep.subr.mxu0 0.0
        %4723 = vmatpush1.msra.mxu0 %v4705
        %4724 = vmatprep.subr.mxu0 0.0
        %4725 = vmatpush1.msra.mxu0 %v4706
        %4726 = vmatprep.subr.mxu0 0.0
        %4727 = vmatpush1.msra.mxu0 %v4707
        %4728 = vmatprep.subr.mxu0 0.0
        %4729 = vmatpush1.msra.mxu0 %v4708
        %4730 = vmatprep.subr.mxu0 0.0
        %4731 = vmatpush1.msra.mxu0 %v4709
        %4732 = vmatprep.subr.mxu0 0.0
        %4733 = vmatpush1.msra.mxu0 %v4710
        %4734 = vmatprep.subr.mxu0 0.0
        %4735 = vmatpush1.msra.mxu0 %v4711
        %4736 = vmatprep.subr.mxu0 0.0
        %4737 = vmatpush1.msra.mxu0 %v4712
        %4738 = vmatprep.subr.mxu0 0.0
        %4739 = vmatpush1.msra.mxu0 %v4713
        %4740 = vmatprep.subr.mxu0 0.0
        %4741 = vmatpush1.msra.mxu0 %v4714
        %4742 = vmatprep.subr.mxu0 0.0
        %4743 = vmatpush1.msra.mxu0 %v4715
        %4744 = vmatprep.subr.mxu0 0.0
        %4745 = vmatpush1.msra.mxu0 %v4716
        %4746 = vmatprep.subr.mxu0 0.0
        %4747 = vmatpush1.msra.mxu0 %v4717
        %4748 = vmatprep.subr.mxu0 0.0
        %4749 = vmatpush1.msra.mxu0 %v4718
        %4750 = vmatprep.subr.mxu0 0.0
        %4751 = vmatpush1.msra.mxu0 %v4719
        %4752 = vmatprep.subr.mxu0 0.0
        %4753 = vmatpush1.msra.mxu0 0.0
        %4754 = vmatprep.subr.mxu0 0.0
        %4755 = vmatpush1.msra.mxu0 0.0
        %4756 = vmatprep.subr.mxu0 0.0
        %4757 = vmatpush1.msra.mxu0 0.0
        %4758 = vmatprep.subr.mxu0 0.0
        %4759 = vmatpush1.msra.mxu0 0.0
        %4760 = vmatprep.subr.mxu0 0.0
        %4761 = vmatpush1.msra.mxu0 0.0
        %4762 = vmatprep.subr.mxu0 0.0
        %4763 = vmatpush1.msra.mxu0 0.0
        %4764 = vmatprep.subr.mxu0 0.0
        %4765 = vmatpush1.msra.mxu0 0.0
        %4766 = vmatprep.subr.mxu0 0.0
        %4767 = vmatpush1.msra.mxu0 0.0
        %4768 = vmatprep.subr.mxu0 0.0
        %4769 = vmatpush1.msra.mxu0 0.0
        %4770 = vmatprep.subr.mxu0 0.0
        %4771 = vmatpush1.msra.mxu0 0.0
        %4772 = vmatprep.subr.mxu0 0.0
        %4773 = vmatpush1.msra.mxu0 0.0
        %4774 = vmatprep.subr.mxu0 0.0
        %4775 = vmatpush1.msra.mxu0 0.0
        %4776 = vmatprep.subr.mxu0 0.0
        %4777 = vmatpush1.msra.mxu0 0.0
        %4778 = vmatprep.subr.mxu0 0.0
        %4779 = vmatpush1.msra.mxu0 0.0
        %4780 = vmatprep.subr.mxu0 0.0
        %4781 = vmatpush1.msra.mxu0 0.0
        %4782 = vmatprep.subr.mxu0 0.0
        %4783 = vmatpush1.msra.mxu0 0.0
        %4784 = vmatprep.mubr.f32.mxu0 0.0
        %4785 = vmatmul.mubr.f32.gmra.mrb[0].mxu0 %v4702
        %v4786 = vpop.f32.mrb[0].mxu0
        %v4787 = vadd.f32 0.0, %v4786
        %v4788 = vpop.f32.mrb[0].mxu0
        %4789 = vdwg.mxu0
        %v4790 = vadd.f32 %v4582, %v4787
        %v4791 = vlaneseq
        %v4792 = vshrl.u32 %v4791, 7
        %v4793 = vsub.s32 5, %v4792
        %v4794 = vrot.slane %v2605, %v4793
        %v4795 = vadd.f32 %v4790, %v4794
        %v4796 = vld [vmem:[%s9] sm:$0xf]
        %v4797 = vsel %vm417, %v4795, 0.0
        %4798 = vadd.xlane.f32.xlu0 %v4797
        %v4799 = vpop.xlane.xlu0 %4798
        %v4800 = vmul.f32 %v4799, %v421
        %v4801 = vmul.f32 %v4795, %v4795
        %v4802 = vsel %vm417, %v4801, 0.0
        %4803 = vadd.xlane.f32.xlu0 %v4802
        %v4804 = vpop.xlane.xlu0 %4803
        %v4805 = vmul.f32 %v4804, %v421
        %v4806 = vmul.f32 %v4800, %v4800
        %v4807 = vsub.f32 %v4805, %v4806
        %v4808 = vsub.f32 %v4795, %v4800
        %v4809 = vadd.f32 %v4807, 1e-05
        %v4810 = vrsqrt.pop %v4809
        %v4811 = vmul.f32 %v4808, %v4810
        %v4812 = vlaneseq
        %v4813 = vshrl.u32 %v4812, 7
        %v4814 = vsub.s32 0, %v4813
        %v4815 = vrot.slane %v4796, %v4814
        %v4816 = vmul.f32 %v4811, %v4815
        %v4817 = vlaneseq
        %v4818 = vshrl.u32 %v4817, 7
        %v4819 = vsub.s32 1, %v4818
        %v4820 = vrot.slane %v4796, %v4819
        %v4821 = vadd.f32 %v4816, %v4820
        %v4823 = vrot.slane %v4796, 3
        %v4825 = vmul.f32 %v4821, %v4823
        %vm4826 = vcmask 261127
        %v4827 = vsel %vm4826, %v4825, 0.0
        %4828 = vadd.xlane.f32.xlu0 %v4827
        %v4829 = vpop.xlane.xlu0 %4828
        %v4830 = vrot.slane %v4796, 4
        %v4832 = vadd.f32 %v4829, %v4830
        %vm4833 = vcmask 7175
        %4834 = vst.msk [vmem:[%s413 - $0x7] sm:$0x80] %vm4833, %v4832
        %p4835 = scmp.lt.s32.totalorder %s23, 1
        %s4836 = scalar_select %p4835, %s23, 1
        %s4837 = scalar_lea.vmem %s10, %s4836
        // Predicated region
        $region73: #{gpt2_regressor_forward.1} parent=59 // pred_check
          %p4838 = pneg %p261
        $region74: #{gpt2_regressor_forward.1} parent=59 // pred_check_branch
          %4840 = sbr.rel (%p4838) target = $region76
        $region75: #{gpt2_regressor_forward.1} parent=59 // pred_region
          _
        $region76: #{gpt2_regressor_forward.1} parent=59 // pred_fallthru
          _
      $region60: #{gpt2_regressor_forward.1} parent=5 // pred_fallthru
        _
      %p4841 = scmp.le.s32.totalorder 2, %s18
      // Predicated region
      $region77: #{gpt2_regressor_forward.1} parent=5 // pred_check
        %p4842 = pneg %p4841
      $region78: #{gpt2_regressor_forward.1} parent=5 // pred_check_branch
        %4844 = sbr.rel (%p4842) target = $region80
      $region79: #{gpt2_regressor_forward.1} parent=5 // pred_region
        %s4845 = ssub.s32 %s18, 2
        // Predicated region
        $region81: #{gpt2_regressor_forward.1} parent=79 // pred_check
          %p4846 = pneg %p267
        $region82: #{gpt2_regressor_forward.1} parent=79 // pred_check_branch
          %4848 = sbr.rel (%p4846) target = $region84
        $region83: #{gpt2_regressor_forward.1} parent=79 // pred_region
          %p4849 = scmp.lt.s32.totalorder %s24, 1
          %s4850 = scalar_select %p4849, %s24, 1
          %s4851 = scalar_lea.vmem %s10, %s4850
        $region84: #{gpt2_regressor_forward.1} parent=79 // pred_fallthru
          _
      $region80: #{gpt2_regressor_forward.1} parent=5 // pred_fallthru
        _
    $region6: #{gpt2_regressor_forward.1} parent=1 // loop_footer
      %s22 = sadd.s32 1, %s18
    $region7: #{gpt2_regressor_forward.1} parent=1 // loop_footer_branch
      %17 = sbr.rel target = $region3
    $region8: #{gpt2_regressor_forward.1} parent=1 // loop_exit
      _
    %4852 = vsyncpa [#allocation3], 1
    %s4853 = scalar_lea.sflag [#allocation3], 1
    %4854 = vsyncpa %s4853, 1
    %4855 = vsyncpa [#allocation5], 1

</llo_original>
